<compile_context>
chip_gen: v7x
topology: tpu7x:2x2x1
jax: 0.10.0
libtpu: 0.0.40
codegen_flags: <defaults>
</compile_context>

<pallas_src>
import functools

import jax
import jax.numpy as jnp
from jax import lax
from jax.experimental import pallas as pl
from jax.experimental.pallas import tpu as pltpu


def _downblock_kernel(x_ref, w1_ref, w3_ref, b3_ref, w4_ref, wc_ref, bb_ref,
                      mask_ref, o_ref, *, s_pad, c_pad, mid_pad):
    # x_ref:    (1, c_pad, 9*s_pad)  tap-major lanes: tap k = lanes [k*s_pad, (k+1)*s_pad)
    # w1_ref:   (c_pad, 9*s_pad)     bn1-folded dw-conv1 weights, broadcast per tap segment
    # w3_ref:   (mid_pad, c_pad)     bn3-folded conv3 (1x1)
    # b3_ref:   (mid_pad, 1)         bn3 bias
    # w4_ref:   (mid_pad, 9*s_pad)   bn4-folded dw-conv4 weights, broadcast per tap segment
    # wc_ref:   (om_pad, c_pad+mid_pad) [conv2 | conv5], rows interleaved = channel shuffle
    # bb_ref:   (om_pad, 1)          final bias, already shuffled
    # mask_ref: (1, 9*s_pad)         1 where tap k reads a real pixel, 0 on conv4's pad ring
    hp = lax.Precision.HIGHEST
    x_all = x_ref[0]                                     # (c_pad, 9*s_pad)

    # Branch 2: conv3(1x1)+bn3+relu over all 9 taps in ONE MXU matmul, then
    # zero positions whose tap falls on conv4's zero padding.
    t_all = jnp.dot(w3_ref[...], x_all,
                    preferred_element_type=jnp.float32, precision=hp)
    t_all = jnp.maximum(t_all + b3_ref[...], 0.0) * mask_ref[...]

    # Depthwise 3x3 stride-2 convs (conv1 / conv4): per-channel weighted sums
    # of the 9 lane-aligned tap segments on the VPU.
    d1 = jnp.zeros((c_pad, s_pad), jnp.float32)
    d2 = jnp.zeros((mid_pad, s_pad), jnp.float32)
    for k in range(9):                                   # static unroll
        lo = k * s_pad
        d1 = d1 + w1_ref[:, lo:lo + s_pad] * x_ref[0, :, lo:lo + s_pad]
        d2 = d2 + w4_ref[:, lo:lo + s_pad] * t_all[:, lo:lo + s_pad]

    # conv2 / conv5 + bias + relu as ONE fused MXU matmul; concat + channel
    # shuffle live in wc's interleaved rows, so this is a single dense,
    # lane-major store in the final (shuffled) channel order.
    d = jnp.concatenate([d1, d2], axis=0)                # (c_pad+mid_pad, s_pad)
    out = jnp.dot(wc_ref[...], d,
                  preferred_element_type=jnp.float32, precision=hp)
    out = jnp.maximum(out + bb_ref[...], 0.0)
    o_ref[0] = out.astype(o_ref.dtype)


def down_block(x, params, eps=1e-5):
    """Pallas equivalent of DownBlock(in_channels, out_channels)(x), NCHW."""
    n, c_in, h, w = x.shape
    mid = params['w2'].shape[0]
    two_mid = 2 * mid
    ho = (h - 1) // 2 + 1
    wo = (w - 1) // 2 + 1
    s = ho * wo
    f32 = jnp.float32

    def rup(v, m):
        return (v + m - 1) // m * m

    s_pad = rup(s, 128)      # lane-dense output (multiple of 128)
    c_pad = rup(c_in, 8)     # sublane-aligned channels (f32 -> multiple of 8)
    mid_pad = rup(mid, 8)
    om_pad = rup(two_mid, 8)

    def fold(gamma, beta, mean, var):
        sc = gamma / jnp.sqrt(var + eps)
        return sc.astype(f32), (beta - mean * sc).astype(f32)

    s1, b1 = fold(*params['bn1'])
    s2, b2 = fold(*params['bn2'])
    s3, b3 = fold(*params['bn3'])
    s4, b4 = fold(*params['bn4'])
    s5, b5 = fold(*params['bn5'])

    # Fold BN scales into conv weights; fold pre-1x1-conv biases through the
    # following 1x1 conv so each branch keeps a single trailing bias.
    w1f = s1[:, None] * params['w1'].reshape(c_in, 9).astype(f32)
    w2f = s2[:, None] * params['w2'].reshape(mid, c_in).astype(f32)
    w3f = s3[:, None] * params['w3'].reshape(mid, c_in).astype(f32)
    w4f = s4[:, None] * params['w4'].reshape(mid, 9).astype(f32)
    w5f = s5[:, None] * params['w5'].reshape(mid, mid).astype(f32)
    b_out1 = w2f @ b1 + b2
    b_out2 = w5f @ b4 + b5

    # Depthwise weights broadcast along each tap's lane segment, zero-padded
    # rows so every in-kernel slice is (8,128)-tile aligned.
    w1b = jnp.zeros((c_pad, 9 * s_pad), f32).at[:c_in].set(
        jnp.repeat(w1f, s_pad, axis=1))
    w4b = jnp.zeros((mid_pad, 9 * s_pad), f32).at[:mid].set(
        jnp.repeat(w4f, s_pad, axis=1))

    w3p = jnp.zeros((mid_pad, c_pad), f32).at[:mid, :c_in].set(w3f)
    b3p = jnp.zeros((mid_pad, 1), f32).at[:mid, 0].set(b3)

    # conv2/conv5 + concat + channel shuffle (groups=2) folded into one weight
    # matrix: shuffled channel 2j <- branch1 ch j, 2j+1 <- branch2 ch j.
    wc = jnp.zeros((om_pad, c_pad + mid_pad), f32)
    wc = wc.at[0:two_mid:2, :c_in].set(w2f)
    wc = wc.at[1:two_mid:2, c_pad:c_pad + mid].set(w5f)
    bbig = jnp.zeros((om_pad, 1), f32)
    bbig = bbig.at[0:two_mid:2, 0].set(b_out1).at[1:two_mid:2, 0].set(b_out2)

    # Stride-2 3x3 taps of the zero-padded input, laid out as a lane-dense
    # (c_pad, 9*s_pad) slab per image (tap k = lanes [k*s_pad, (k+1)*s_pad)).
    xp = jnp.pad(x.astype(f32), ((0, 0), (0, 0), (1, 1), (1, 1)))
    segs = []
    for di in range(3):
        for dj in range(3):
            tap = xp[:, :, di:di + 2 * ho:2, dj:dj + 2 * wo:2].reshape(n, c_in, s)
            segs.append(jnp.pad(tap, ((0, 0), (0, 0), (0, s_pad - s))))
    x_all = jnp.concatenate(segs, axis=2)                          # (n, c_in, 9*s_pad)
    x_all = jnp.pad(x_all, ((0, 0), (0, c_pad - c_in), (0, 0)))    # (n, c_pad, 9*s_pad)

    # Per-tap validity mask: 1 where the tap reads a real pixel of conv4's
    # input, 0 where it reads the zero-padding ring (or lane padding).
    ii = lax.broadcasted_iota(jnp.int32, (ho, wo), 0)
    jj = lax.broadcasted_iota(jnp.int32, (ho, wo), 1)
    msegs = []
    for di in range(3):
        for dj in range(3):
            r = 2 * ii + di
            c = 2 * jj + dj
            valid = ((r >= 1) & (r <= h) & (c >= 1) & (c <= w)).astype(f32)
            msegs.append(jnp.pad(valid.reshape(s), (0, s_pad - s)))
    mask = jnp.concatenate(msegs).reshape(1, 9 * s_pad)

    kernel = functools.partial(_downblock_kernel, s_pad=s_pad, c_pad=c_pad,
                               mid_pad=mid_pad)

    out = pl.pallas_call(
        kernel,
        out_shape=jax.ShapeDtypeStruct((n, om_pad, s_pad), x.dtype),
        grid_spec=pltpu.PrefetchScalarGridSpec(
            num_scalar_prefetch=0,
            grid=(n,),
            in_specs=[
                pl.BlockSpec((1, c_pad, 9 * s_pad), lambda i: (i, 0, 0)),
                pl.BlockSpec((c_pad, 9 * s_pad), lambda i: (0, 0)),
                pl.BlockSpec((mid_pad, c_pad), lambda i: (0, 0)),
                pl.BlockSpec((mid_pad, 1), lambda i: (0, 0)),
                pl.BlockSpec((mid_pad, 9 * s_pad), lambda i: (0, 0)),
                pl.BlockSpec((om_pad, c_pad + mid_pad), lambda i: (0, 0)),
                pl.BlockSpec((om_pad, 1), lambda i: (0, 0)),
                pl.BlockSpec((1, 9 * s_pad), lambda i: (0, 0)),
            ],
            out_specs=pl.BlockSpec((1, om_pad, s_pad), lambda i: (i, 0, 0)),
        ),
        compiler_params=pltpu.CompilerParams(
            dimension_semantics=("parallel",),
        ),
    )(x_all, w1b, w3p, b3p, w4b, wc, bbig, mask)

    return out[:, :two_mid, :s].reshape(n, two_mid, ho, wo)


# ----------------------------- pure-JAX reference -----------------------------

def _bn(x, gamma, beta, mean, var, eps=1e-5):
    sc = gamma / jnp.sqrt(var + eps)
    b = beta - mean * sc
    return x * sc[None, :, None, None] + b[None, :, None, None]


def ref_downblock(x, p):
    dn = ('NCHW', 'OIHW', 'NCHW')
    hp = lax.Precision.HIGHEST
    out1 = lax.conv_general_dilated(x, p['w1'], (2, 2), ((1, 1), (1, 1)),
                                    dimension_numbers=dn,
                                    feature_group_count=x.shape[1],
                                    precision=hp)
    out1 = _bn(out1, *p['bn1'])
    out1 = lax.conv_general_dilated(out1, p['w2'], (1, 1), ((0, 0), (0, 0)),
                                    dimension_numbers=dn, precision=hp)
    out1 = jax.nn.relu(_bn(out1, *p['bn2']))

    out2 = lax.conv_general_dilated(x, p['w3'], (1, 1), ((0, 0), (0, 0)),
                                    dimension_numbers=dn, precision=hp)
    out2 = jax.nn.relu(_bn(out2, *p['bn3']))
    out2 = lax.conv_general_dilated(out2, p['w4'], (2, 2), ((1, 1), (1, 1)),
                                    dimension_numbers=dn,
                                    feature_group_count=out2.shape[1],
                                    precision=hp)
    out2 = _bn(out2, *p['bn4'])
    out2 = lax.conv_general_dilated(out2, p['w5'], (1, 1), ((0, 0), (0, 0)),
                                    dimension_numbers=dn, precision=hp)
    out2 = jax.nn.relu(_bn(out2, *p['bn5']))

    out = jnp.concatenate([out1, out2], axis=1)
    n, c, h, w = out.shape
    g = 2
    return out.reshape(n, g, c // g, h, w).transpose(0, 2, 1, 3, 4).reshape(n, c, h, w)


if __name__ == "__main__":
    key = jax.random.PRNGKey(0)
    in_channels, out_channels = 4, 8
    mid = out_channels // 2
    n, h, w = 2, 16, 16

    keys = jax.random.split(key, 11)
    x = jax.random.normal(keys[0], (n, in_channels, h, w), dtype=jnp.float32)

    def bn_params(k, c):
        k1, k2, k3, k4 = jax.random.split(k, 4)
        gamma = 1.0 + 0.1 * jax.random.normal(k1, (c,), jnp.float32)
        beta = 0.1 * jax.random.normal(k2, (c,), jnp.float32)
        mean = 0.1 * jax.random.normal(k3, (c,), jnp.float32)
        var = jax.random.uniform(k4, (c,), jnp.float32, minval=0.5, maxval=1.5)
        return gamma, beta, mean, var

    params = {
        'w1': 0.3 * jax.random.normal(keys[1], (in_channels, 1, 3, 3), jnp.float32),
        'w2': 0.3 * jax.random.normal(keys[2], (mid, in_channels, 1, 1), jnp.float32),
        'w3': 0.3 * jax.random.normal(keys[3], (mid, in_channels, 1, 1), jnp.float32),
        'w4': 0.3 * jax.random.normal(keys[4], (mid, 1, 3, 3), jnp.float32),
        'w5': 0.3 * jax.random.normal(keys[5], (mid, mid, 1, 1), jnp.float32),
        'bn1': bn_params(keys[6], in_channels),
        'bn2': bn_params(keys[7], mid),
        'bn3': bn_params(keys[8], mid),
        'bn4': bn_params(keys[9], mid),
        'bn5': bn_params(keys[10], mid),
    }

    out = jax.jit(down_block)(x, params)
    jax.block_until_ready(out)

    ref = ref_downblock(x, params)
    jax.block_until_ready(ref)

    assert out.shape == ref.shape == (n, out_channels, h // 2, w // 2)
    assert out.dtype == ref.dtype
    max_err = float(jnp.max(jnp.abs(out - ref)))
    # Tolerance relaxed slightly vs exact-f32 path: the 1x1 convs now run on
    # the MXU (HIGHEST precision multi-pass f32).
    assert max_err < 1e-3, f"max abs error {max_err}"
    print("KERNEL_OK")
</pallas_src>

<mosaic_0001>
module attributes {stable_mosaic.version = 11 : i64} {
  func.func @_downblock_kernel(%arg0: i32, %arg1: memref<1x8x1152xf32, #tpu.memory_space<vmem>>, %arg2: memref<8x1152xf32, #tpu.memory_space<vmem>>, %arg3: memref<8x8xf32, #tpu.memory_space<vmem>>, %arg4: memref<8x1xf32, #tpu.memory_space<vmem>>, %arg5: memref<8x1152xf32, #tpu.memory_space<vmem>>, %arg6: memref<8x16xf32, #tpu.memory_space<vmem>>, %arg7: memref<8x1xf32, #tpu.memory_space<vmem>>, %arg8: memref<1x1152xf32, #tpu.memory_space<vmem>>, %arg9: memref<1x8x128xf32, #tpu.memory_space<vmem>>) attributes {dimension_semantics = [#tpu.dimension_semantics<parallel>], iteration_bounds = array<i64: 2>, scalar_prefetch = 0 : i64, scratch_operands = 0 : i64, tpu.core_type = #tpu.core_type<tc>, window_params = [{transform_indices = @transform_0, window_bounds = array<i64: 1, 8, 1152>}, {pipeline_mode = #tpu.pipeline_mode<synchronous>, transform_indices = @transform_1, window_bounds = array<i64: 8, 1152>}, {pipeline_mode = #tpu.pipeline_mode<synchronous>, transform_indices = @transform_2, window_bounds = array<i64: 8, 8>}, {pipeline_mode = #tpu.pipeline_mode<synchronous>, transform_indices = @transform_3, window_bounds = array<i64: 8, 1>}, {pipeline_mode = #tpu.pipeline_mode<synchronous>, transform_indices = @transform_4, window_bounds = array<i64: 8, 1152>}, {pipeline_mode = #tpu.pipeline_mode<synchronous>, transform_indices = @transform_5, window_bounds = array<i64: 8, 16>}, {pipeline_mode = #tpu.pipeline_mode<synchronous>, transform_indices = @transform_6, window_bounds = array<i64: 8, 1>}, {pipeline_mode = #tpu.pipeline_mode<synchronous>, transform_indices = @transform_7, window_bounds = array<i64: 1, 1152>}, {transform_indices = @transform_8, window_bounds = array<i64: 1, 8, 128>}]} {
    %c0 = arith.constant 0 : index
    %c0_0 = arith.constant 0 : index
    %c0_1 = arith.constant 0 : index
    %0 = vector.load %arg1[%c0, %c0_0, %c0_1] : memref<1x8x1152xf32, #tpu.memory_space<vmem>>, vector<1x8x1152xf32>
    %1 = vector.shape_cast %0 : vector<1x8x1152xf32> to vector<8x1152xf32>
    %c0_2 = arith.constant 0 : index
    %c0_3 = arith.constant 0 : index
    %2 = vector.load %arg3[%c0_2, %c0_3] : memref<8x8xf32, #tpu.memory_space<vmem>>, vector<8x8xf32>
    %cst = arith.constant dense<0.000000e+00> : vector<8x1152xf32>
    %3 = tpu.matmul %2, %1, %cst {dimension_numbers = #tpu.dot_dimension_numbers<[1], [0], [0], [1], [0, 0, 1, 1], [], []>, precision = #tpu.contract_precision<fp32>} : vector<8x8xf32>, vector<8x1152xf32>, vector<8x1152xf32> -> vector<8x1152xf32>
    %c0_4 = arith.constant 0 : index
    %c0_5 = arith.constant 0 : index
    %4 = vector.load %arg4[%c0_4, %c0_5] : memref<8x1xf32, #tpu.memory_space<vmem>>, vector<8x1xf32>
    %5 = vector.broadcast %4 : vector<8x1xf32> to vector<8x1152xf32>
    %6 = arith.addf %3, %5 : vector<8x1152xf32>
    %cst_6 = arith.constant 0.000000e+00 : f32
    %7 = vector.broadcast %cst_6 : f32 to vector<8x1152xf32>
    %8 = arith.maximumf %6, %7 : vector<8x1152xf32>
    %c0_7 = arith.constant 0 : index
    %c0_8 = arith.constant 0 : index
    %9 = vector.load %arg8[%c0_7, %c0_8] : memref<1x1152xf32, #tpu.memory_space<vmem>>, vector<1x1152xf32>
    %10 = vector.broadcast %9 : vector<1x1152xf32> to vector<8x1152xf32>
    %11 = arith.mulf %8, %10 : vector<8x1152xf32>
    %cst_9 = arith.constant 0.000000e+00 : f32
    %12 = vector.broadcast %cst_9 : f32 to vector<8x128xf32>
    %cst_10 = arith.constant 0.000000e+00 : f32
    %13 = vector.broadcast %cst_10 : f32 to vector<8x128xf32>
    %c0_11 = arith.constant 0 : index
    %c0_12 = arith.constant 0 : index
    %14 = vector.load %arg2[%c0_11, %c0_12] : memref<8x1152xf32, #tpu.memory_space<vmem>>, vector<8x128xf32>
    %c0_13 = arith.constant 0 : index
    %c0_14 = arith.constant 0 : index
    %c0_15 = arith.constant 0 : index
    %15 = vector.load %arg1[%c0_13, %c0_14, %c0_15] : memref<1x8x1152xf32, #tpu.memory_space<vmem>>, vector<1x8x128xf32>
    %16 = vector.shape_cast %15 : vector<1x8x128xf32> to vector<8x128xf32>
    %17 = arith.mulf %14, %16 : vector<8x128xf32>
    %18 = arith.addf %12, %17 : vector<8x128xf32>
    %c0_16 = arith.constant 0 : index
    %c0_17 = arith.constant 0 : index
    %19 = vector.load %arg5[%c0_16, %c0_17] : memref<8x1152xf32, #tpu.memory_space<vmem>>, vector<8x128xf32>
    %20 = vector.extract_strided_slice %11 {offsets = [0, 0], sizes = [8, 128], strides = [1, 1]} : vector<8x1152xf32> to vector<8x128xf32>
    %21 = arith.mulf %19, %20 : vector<8x128xf32>
    %22 = arith.addf %13, %21 : vector<8x128xf32>
    %c0_18 = arith.constant 0 : index
    %c128 = arith.constant 128 : index
    %23 = vector.load %arg2[%c0_18, %c128] : memref<8x1152xf32, #tpu.memory_space<vmem>>, vector<8x128xf32>
    %c0_19 = arith.constant 0 : index
    %c0_20 = arith.constant 0 : index
    %c128_21 = arith.constant 128 : index
    %24 = vector.load %arg1[%c0_19, %c0_20, %c128_21] : memref<1x8x1152xf32, #tpu.memory_space<vmem>>, vector<1x8x128xf32>
    %25 = vector.shape_cast %24 : vector<1x8x128xf32> to vector<8x128xf32>
    %26 = arith.mulf %23, %25 : vector<8x128xf32>
    %27 = arith.addf %18, %26 : vector<8x128xf32>
    %c0_22 = arith.constant 0 : index
    %c128_23 = arith.constant 128 : index
    %28 = vector.load %arg5[%c0_22, %c128_23] : memref<8x1152xf32, #tpu.memory_space<vmem>>, vector<8x128xf32>
    %29 = vector.extract_strided_slice %11 {offsets = [0, 128], sizes = [8, 128], strides = [1, 1]} : vector<8x1152xf32> to vector<8x128xf32>
    %30 = arith.mulf %28, %29 : vector<8x128xf32>
    %31 = arith.addf %22, %30 : vector<8x128xf32>
    %c0_24 = arith.constant 0 : index
    %c256 = arith.constant 256 : index
    %32 = vector.load %arg2[%c0_24, %c256] : memref<8x1152xf32, #tpu.memory_space<vmem>>, vector<8x128xf32>
    %c0_25 = arith.constant 0 : index
    %c0_26 = arith.constant 0 : index
    %c256_27 = arith.constant 256 : index
    %33 = vector.load %arg1[%c0_25, %c0_26, %c256_27] : memref<1x8x1152xf32, #tpu.memory_space<vmem>>, vector<1x8x128xf32>
    %34 = vector.shape_cast %33 : vector<1x8x128xf32> to vector<8x128xf32>
    %35 = arith.mulf %32, %34 : vector<8x128xf32>
    %36 = arith.addf %27, %35 : vector<8x128xf32>
    %c0_28 = arith.constant 0 : index
    %c256_29 = arith.constant 256 : index
    %37 = vector.load %arg5[%c0_28, %c256_29] : memref<8x1152xf32, #tpu.memory_space<vmem>>, vector<8x128xf32>
    %38 = vector.extract_strided_slice %11 {offsets = [0, 256], sizes = [8, 128], strides = [1, 1]} : vector<8x1152xf32> to vector<8x128xf32>
    %39 = arith.mulf %37, %38 : vector<8x128xf32>
    %40 = arith.addf %31, %39 : vector<8x128xf32>
    %c0_30 = arith.constant 0 : index
    %c384 = arith.constant 384 : index
    %41 = vector.load %arg2[%c0_30, %c384] : memref<8x1152xf32, #tpu.memory_space<vmem>>, vector<8x128xf32>
    %c0_31 = arith.constant 0 : index
    %c0_32 = arith.constant 0 : index
    %c384_33 = arith.constant 384 : index
    %42 = vector.load %arg1[%c0_31, %c0_32, %c384_33] : memref<1x8x1152xf32, #tpu.memory_space<vmem>>, vector<1x8x128xf32>
    %43 = vector.shape_cast %42 : vector<1x8x128xf32> to vector<8x128xf32>
    %44 = arith.mulf %41, %43 : vector<8x128xf32>
    %45 = arith.addf %36, %44 : vector<8x128xf32>
    %c0_34 = arith.constant 0 : index
    %c384_35 = arith.constant 384 : index
    %46 = vector.load %arg5[%c0_34, %c384_35] : memref<8x1152xf32, #tpu.memory_space<vmem>>, vector<8x128xf32>
    %47 = vector.extract_strided_slice %11 {offsets = [0, 384], sizes = [8, 128], strides = [1, 1]} : vector<8x1152xf32> to vector<8x128xf32>
    %48 = arith.mulf %46, %47 : vector<8x128xf32>
    %49 = arith.addf %40, %48 : vector<8x128xf32>
    %c0_36 = arith.constant 0 : index
    %c512 = arith.constant 512 : index
    %50 = vector.load %arg2[%c0_36, %c512] : memref<8x1152xf32, #tpu.memory_space<vmem>>, vector<8x128xf32>
    %c0_37 = arith.constant 0 : index
    %c0_38 = arith.constant 0 : index
    %c512_39 = arith.constant 512 : index
    %51 = vector.load %arg1[%c0_37, %c0_38, %c512_39] : memref<1x8x1152xf32, #tpu.memory_space<vmem>>, vector<1x8x128xf32>
    %52 = vector.shape_cast %51 : vector<1x8x128xf32> to vector<8x128xf32>
    %53 = arith.mulf %50, %52 : vector<8x128xf32>
    %54 = arith.addf %45, %53 : vector<8x128xf32>
    %c0_40 = arith.constant 0 : index
    %c512_41 = arith.constant 512 : index
    %55 = vector.load %arg5[%c0_40, %c512_41] : memref<8x1152xf32, #tpu.memory_space<vmem>>, vector<8x128xf32>
    %56 = vector.extract_strided_slice %11 {offsets = [0, 512], sizes = [8, 128], strides = [1, 1]} : vector<8x1152xf32> to vector<8x128xf32>
    %57 = arith.mulf %55, %56 : vector<8x128xf32>
    %58 = arith.addf %49, %57 : vector<8x128xf32>
    %c0_42 = arith.constant 0 : index
    %c640 = arith.constant 640 : index
    %59 = vector.load %arg2[%c0_42, %c640] : memref<8x1152xf32, #tpu.memory_space<vmem>>, vector<8x128xf32>
    %c0_43 = arith.constant 0 : index
    %c0_44 = arith.constant 0 : index
    %c640_45 = arith.constant 640 : index
    %60 = vector.load %arg1[%c0_43, %c0_44, %c640_45] : memref<1x8x1152xf32, #tpu.memory_space<vmem>>, vector<1x8x128xf32>
    %61 = vector.shape_cast %60 : vector<1x8x128xf32> to vector<8x128xf32>
    %62 = arith.mulf %59, %61 : vector<8x128xf32>
    %63 = arith.addf %54, %62 : vector<8x128xf32>
    %c0_46 = arith.constant 0 : index
    %c640_47 = arith.constant 640 : index
    %64 = vector.load %arg5[%c0_46, %c640_47] : memref<8x1152xf32, #tpu.memory_space<vmem>>, vector<8x128xf32>
    %65 = vector.extract_strided_slice %11 {offsets = [0, 640], sizes = [8, 128], strides = [1, 1]} : vector<8x1152xf32> to vector<8x128xf32>
    %66 = arith.mulf %64, %65 : vector<8x128xf32>
    %67 = arith.addf %58, %66 : vector<8x128xf32>
    %c0_48 = arith.constant 0 : index
    %c768 = arith.constant 768 : index
    %68 = vector.load %arg2[%c0_48, %c768] : memref<8x1152xf32, #tpu.memory_space<vmem>>, vector<8x128xf32>
    %c0_49 = arith.constant 0 : index
    %c0_50 = arith.constant 0 : index
    %c768_51 = arith.constant 768 : index
    %69 = vector.load %arg1[%c0_49, %c0_50, %c768_51] : memref<1x8x1152xf32, #tpu.memory_space<vmem>>, vector<1x8x128xf32>
    %70 = vector.shape_cast %69 : vector<1x8x128xf32> to vector<8x128xf32>
    %71 = arith.mulf %68, %70 : vector<8x128xf32>
    %72 = arith.addf %63, %71 : vector<8x128xf32>
    %c0_52 = arith.constant 0 : index
    %c768_53 = arith.constant 768 : index
    %73 = vector.load %arg5[%c0_52, %c768_53] : memref<8x1152xf32, #tpu.memory_space<vmem>>, vector<8x128xf32>
    %74 = vector.extract_strided_slice %11 {offsets = [0, 768], sizes = [8, 128], strides = [1, 1]} : vector<8x1152xf32> to vector<8x128xf32>
    %75 = arith.mulf %73, %74 : vector<8x128xf32>
    %76 = arith.addf %67, %75 : vector<8x128xf32>
    %c0_54 = arith.constant 0 : index
    %c896 = arith.constant 896 : index
    %77 = vector.load %arg2[%c0_54, %c896] : memref<8x1152xf32, #tpu.memory_space<vmem>>, vector<8x128xf32>
    %c0_55 = arith.constant 0 : index
    %c0_56 = arith.constant 0 : index
    %c896_57 = arith.constant 896 : index
    %78 = vector.load %arg1[%c0_55, %c0_56, %c896_57] : memref<1x8x1152xf32, #tpu.memory_space<vmem>>, vector<1x8x128xf32>
    %79 = vector.shape_cast %78 : vector<1x8x128xf32> to vector<8x128xf32>
    %80 = arith.mulf %77, %79 : vector<8x128xf32>
    %81 = arith.addf %72, %80 : vector<8x128xf32>
    %c0_58 = arith.constant 0 : index
    %c896_59 = arith.constant 896 : index
    %82 = vector.load %arg5[%c0_58, %c896_59] : memref<8x1152xf32, #tpu.memory_space<vmem>>, vector<8x128xf32>
    %83 = vector.extract_strided_slice %11 {offsets = [0, 896], sizes = [8, 128], strides = [1, 1]} : vector<8x1152xf32> to vector<8x128xf32>
    %84 = arith.mulf %82, %83 : vector<8x128xf32>
    %85 = arith.addf %76, %84 : vector<8x128xf32>
    %c0_60 = arith.constant 0 : index
    %c1024 = arith.constant 1024 : index
    %86 = vector.load %arg2[%c0_60, %c1024] : memref<8x1152xf32, #tpu.memory_space<vmem>>, vector<8x128xf32>
    %c0_61 = arith.constant 0 : index
    %c0_62 = arith.constant 0 : index
    %c1024_63 = arith.constant 1024 : index
    %87 = vector.load %arg1[%c0_61, %c0_62, %c1024_63] : memref<1x8x1152xf32, #tpu.memory_space<vmem>>, vector<1x8x128xf32>
    %88 = vector.shape_cast %87 : vector<1x8x128xf32> to vector<8x128xf32>
    %89 = arith.mulf %86, %88 : vector<8x128xf32>
    %90 = arith.addf %81, %89 : vector<8x128xf32>
    %c0_64 = arith.constant 0 : index
    %c1024_65 = arith.constant 1024 : index
    %91 = vector.load %arg5[%c0_64, %c1024_65] : memref<8x1152xf32, #tpu.memory_space<vmem>>, vector<8x128xf32>
    %92 = vector.extract_strided_slice %11 {offsets = [0, 1024], sizes = [8, 128], strides = [1, 1]} : vector<8x1152xf32> to vector<8x128xf32>
    %93 = arith.mulf %91, %92 : vector<8x128xf32>
    %94 = arith.addf %85, %93 : vector<8x128xf32>
    %95 = tpu.concatenate %90, %94 in 0 : vector<8x128xf32>, vector<8x128xf32> -> vector<16x128xf32>
    %c0_66 = arith.constant 0 : index
    %c0_67 = arith.constant 0 : index
    %96 = vector.load %arg6[%c0_66, %c0_67] : memref<8x16xf32, #tpu.memory_space<vmem>>, vector<8x16xf32>
    %cst_68 = arith.constant dense<0.000000e+00> : vector<8x128xf32>
    %97 = tpu.matmul %96, %95, %cst_68 {dimension_numbers = #tpu.dot_dimension_numbers<[1], [0], [0], [1], [0, 0, 1, 1], [], []>, precision = #tpu.contract_precision<fp32>} : vector<8x16xf32>, vector<16x128xf32>, vector<8x128xf32> -> vector<8x128xf32>
    %c0_69 = arith.constant 0 : index
    %c0_70 = arith.constant 0 : index
    %98 = vector.load %arg7[%c0_69, %c0_70] : memref<8x1xf32, #tpu.memory_space<vmem>>, vector<8x1xf32>
    %99 = vector.broadcast %98 : vector<8x1xf32> to vector<8x128xf32>
    %100 = arith.addf %97, %99 : vector<8x128xf32>
    %cst_71 = arith.constant 0.000000e+00 : f32
    %101 = vector.broadcast %cst_71 : f32 to vector<8x128xf32>
    %102 = arith.maximumf %100, %101 : vector<8x128xf32>
    %c0_72 = arith.constant 0 : index
    %c0_73 = arith.constant 0 : index
    %c0_74 = arith.constant 0 : index
    %103 = vector.load %arg9[%c0_72, %c0_73, %c0_74] : memref<1x8x128xf32, #tpu.memory_space<vmem>>, vector<1x8x128xf32>
    %104 = vector.shape_cast %103 : vector<1x8x128xf32> to vector<8x128xf32>
    %105 = vector.shape_cast %102 : vector<8x128xf32> to vector<1x8x128xf32>
    tpu.vector_store %arg9[%c0_72, %c0_73, %c0_74], %105 {strides = array<i32>} : memref<1x8x128xf32, #tpu.memory_space<vmem>>, vector<1x8x128xf32>,
    return
  }
  func.func @transform_0(%arg0: i32) -> (i32, i32, i32) {
    %c0_i32 = arith.constant 0 : i32
    %c0_i32_0 = arith.constant 0 : i32
    %c0_i32_1 = arith.constant 0 : i32
    return %arg0, %c0_i32, %c0_i32_0 : i32, i32, i32
  }
  func.func @transform_1(%arg0: i32) -> (i32, i32) {
    %c0_i32 = arith.constant 0 : i32
    %c0_i32_0 = arith.constant 0 : i32
    %c0_i32_1 = arith.constant 0 : i32
    return %c0_i32, %c0_i32_0 : i32, i32
  }
  func.func @transform_2(%arg0: i32) -> (i32, i32) {
    %c0_i32 = arith.constant 0 : i32
    %c0_i32_0 = arith.constant 0 : i32
    %c0_i32_1 = arith.constant 0 : i32
    return %c0_i32, %c0_i32_0 : i32, i32
  }
  func.func @transform_3(%arg0: i32) -> (i32, i32) {
    %c0_i32 = arith.constant 0 : i32
    %c0_i32_0 = arith.constant 0 : i32
    %c0_i32_1 = arith.constant 0 : i32
    return %c0_i32, %c0_i32_0 : i32, i32
  }
  func.func @transform_4(%arg0: i32) -> (i32, i32) {
    %c0_i32 = arith.constant 0 : i32
    %c0_i32_0 = arith.constant 0 : i32
    %c0_i32_1 = arith.constant 0 : i32
    return %c0_i32, %c0_i32_0 : i32, i32
  }
  func.func @transform_5(%arg0: i32) -> (i32, i32) {
    %c0_i32 = arith.constant 0 : i32
    %c0_i32_0 = arith.constant 0 : i32
    %c0_i32_1 = arith.constant 0 : i32
    return %c0_i32, %c0_i32_0 : i32, i32
  }
  func.func @transform_6(%arg0: i32) -> (i32, i32) {
    %c0_i32 = arith.constant 0 : i32
    %c0_i32_0 = arith.constant 0 : i32
    %c0_i32_1 = arith.constant 0 : i32
    return %c0_i32, %c0_i32_0 : i32, i32
  }
  func.func @transform_7(%arg0: i32) -> (i32, i32) {
    %c0_i32 = arith.constant 0 : i32
    %c0_i32_0 = arith.constant 0 : i32
    %c0_i32_1 = arith.constant 0 : i32
    return %c0_i32, %c0_i32_0 : i32, i32
  }
  func.func @transform_8(%arg0: i32) -> (i32, i32, i32) {
    %c0_i32 = arith.constant 0 : i32
    %c0_i32_0 = arith.constant 0 : i32
    %c0_i32_1 = arith.constant 0 : i32
    return %arg0, %c0_i32, %c0_i32_0 : i32, i32, i32
  }
}

</mosaic_0001>

<llo_original>
// kernel: custom-call
$region0: #{custom-call}
  %s0 = inlined_call_operand.vmem [shape: pred[1152], index: 0, kind: output, shape index: {}]

// kernel: down_block.1
$region0: #{down_block.1}
  #allocation0 [shape = 'u32[]', space=smem, size = 0x4, offset = 0x4, fixed_abs, tag = 'smem constant byte address 0x4 - core index']
  #allocation1 [shape = 'u32[144,128]{1,0:T(1,128)}', space=vmem, size = 0x12000, scoped, tag = 'internal scratch']
  %s0 = inlined_call_operand.vmem [shape: f32[2,8,1152], index: 0, kind: input, shape index: {}]
  %s1 = inlined_call_operand.vmem [shape: f32[8,1152], index: 1, kind: input, shape index: {}]
  %s2 = inlined_call_operand.vmem [shape: f32[8,8], index: 2, kind: input, shape index: {}]
  %s3 = inlined_call_operand.vmem [shape: f32[8,1], index: 3, kind: input, shape index: {}]
  %s4 = inlined_call_operand.vmem [shape: f32[8,1152], index: 4, kind: input, shape index: {}]
  %s5 = inlined_call_operand.vmem [shape: f32[8,16], index: 5, kind: input, shape index: {}]
  %s6 = inlined_call_operand.vmem [shape: f32[8,1], index: 6, kind: input, shape index: {}]
  %s7 = inlined_call_operand.vmem [shape: f32[1,1152], index: 7, kind: input, shape index: {}]
  %s8 = inlined_call_operand.vmem [shape: f32[2,8,128], index: 8, kind: output, shape index: {}]
  %s9 = sld [smem:[#allocation0]]
  $region65: #{down_block.1} parent=0
    _
  %s11 = ssub.s32 1, %s9
  %s12 = scalar_select 0, %s11, %s9
  loop: start=0, step=1, limit=4
  $region2: #{down_block.1} parent=0 // loop_pre_header
    _
  $region3: #{down_block.1} parent=0 // loop_header
    %s14 = sphi 0, %s18
    %p15 = scmp.ge.s32.totalorder %s14, 4
    %s24 = sphi 0, %s26
    %s27 = sphi 0, %s24
    %s28 = sphi 0, %s27
    %s44 = sphi 0, %s28
    %s48 = sphi 0, %s48
    %s50 = sphi 0, %s48
    %s51 = sphi 0, %s50
    %s65 = sphi 0, %s51
    %s69 = sphi 0, %s69
    %s71 = sphi 0, %s69
    %s72 = sphi 0, %s71
    %s86 = sphi 0, %s72
    %s90 = sphi 0, %s90
    %s92 = sphi 0, %s90
    %s93 = sphi 0, %s92
    %s107 = sphi 0, %s93
    %s111 = sphi 0, %s111
    %s113 = sphi 0, %s111
    %s114 = sphi 0, %s113
    %s128 = sphi 0, %s114
    %s132 = sphi 0, %s132
    %s134 = sphi 0, %s132
    %s135 = sphi 0, %s134
    %s149 = sphi 0, %s135
    %s153 = sphi 0, %s153
    %s155 = sphi 0, %s153
    %s156 = sphi 0, %s155
    %s170 = sphi 0, %s156
    %s174 = sphi 0, %s174
    %s176 = sphi 0, %s174
    %s177 = sphi 0, %s176
    %s191 = sphi 0, %s177
    %s197 = sphi 0, %s199
    %s200 = sphi 0, %s197
    %s201 = sphi 0, %s200
    %s217 = sphi 0, %s201
  $region4: #{down_block.1} parent=0 // loop_header_branch
    %17 = sbr.rel (%p15) target = $region8
  $region5: #{down_block.1} parent=0 // loop_body
    %s19 = ssub.s32 %s14, 1
    %s20 = ssub.s32 %s14, 2
    %s21 = sadd.s32 %s14, 1
    %s22 = ssub.s32 %s14, %s21
    %p23 = scmp.eq.s32.totalorder %s22, 0
    %s25 = sadd.s32 %s24, 1
    %s26 = scalar_select %p23, %s24, %s25
    %p29 = pneg %p23
    %p30 = scmp.eq.s32.totalorder %s14, 1
    %p31 = por %p29, %p30
    %p32 = scmp.ne.s32.totalorder %s24, %s27
    %p33 = scmp.eq.s32.totalorder %s14, 0
    %p34 = por %p32, %p33
    %p35 = scmp.ne.s32.totalorder %s24, %s27
    %p36 = scmp.eq.s32.totalorder %s19, 1
    %p37 = por %p35, %p36
    %p38 = scmp.ne.s32.totalorder %s27, %s28
    %p39 = scmp.eq.s32.totalorder %s19, 0
    %p40 = por %p38, %p39
    %p41 = scmp.ne.s32.totalorder %s27, %s28
    %p42 = scmp.eq.s32.totalorder %s20, 1
    %p43 = por %p41, %p42
    %p45 = scmp.ne.s32.totalorder %s28, %s44
    %p46 = scmp.eq.s32.totalorder %s20, 0
    %p47 = por %p45, %p46
    %s49 = sadd.s32 %s48, 1
    %p52 = scmp.eq.s32.totalorder %s14, 1
    %p53 = scmp.ne.s32.totalorder %s48, %s50
    %p54 = scmp.eq.s32.totalorder %s14, 0
    %p55 = por %p53, %p54
    %p56 = scmp.ne.s32.totalorder %s48, %s50
    %p57 = scmp.eq.s32.totalorder %s19, 1
    %p58 = por %p56, %p57
    %p59 = scmp.ne.s32.totalorder %s50, %s51
    %p60 = scmp.eq.s32.totalorder %s19, 0
    %p61 = por %p59, %p60
    %p62 = scmp.ne.s32.totalorder %s50, %s51
    %p63 = scmp.eq.s32.totalorder %s20, 1
    %p64 = por %p62, %p63
    %p66 = scmp.ne.s32.totalorder %s51, %s65
    %p67 = scmp.eq.s32.totalorder %s20, 0
    %p68 = por %p66, %p67
    %s70 = sadd.s32 %s69, 1
    %p73 = scmp.eq.s32.totalorder %s14, 1
    %p74 = scmp.ne.s32.totalorder %s69, %s71
    %p75 = scmp.eq.s32.totalorder %s14, 0
    %p76 = por %p74, %p75
    %p77 = scmp.ne.s32.totalorder %s69, %s71
    %p78 = scmp.eq.s32.totalorder %s19, 1
    %p79 = por %p77, %p78
    %p80 = scmp.ne.s32.totalorder %s71, %s72
    %p81 = scmp.eq.s32.totalorder %s19, 0
    %p82 = por %p80, %p81
    %p83 = scmp.ne.s32.totalorder %s71, %s72
    %p84 = scmp.eq.s32.totalorder %s20, 1
    %p85 = por %p83, %p84
    %p87 = scmp.ne.s32.totalorder %s72, %s86
    %p88 = scmp.eq.s32.totalorder %s20, 0
    %p89 = por %p87, %p88
    %s91 = sadd.s32 %s90, 1
    %p94 = scmp.eq.s32.totalorder %s14, 1
    %p95 = scmp.ne.s32.totalorder %s90, %s92
    %p96 = scmp.eq.s32.totalorder %s14, 0
    %p97 = por %p95, %p96
    %p98 = scmp.ne.s32.totalorder %s90, %s92
    %p99 = scmp.eq.s32.totalorder %s19, 1
    %p100 = por %p98, %p99
    %p101 = scmp.ne.s32.totalorder %s92, %s93
    %p102 = scmp.eq.s32.totalorder %s19, 0
    %p103 = por %p101, %p102
    %p104 = scmp.ne.s32.totalorder %s92, %s93
    %p105 = scmp.eq.s32.totalorder %s20, 1
    %p106 = por %p104, %p105
    %p108 = scmp.ne.s32.totalorder %s93, %s107
    %p109 = scmp.eq.s32.totalorder %s20, 0
    %p110 = por %p108, %p109
    %s112 = sadd.s32 %s111, 1
    %p115 = scmp.eq.s32.totalorder %s14, 1
    %p116 = scmp.ne.s32.totalorder %s111, %s113
    %p117 = scmp.eq.s32.totalorder %s14, 0
    %p118 = por %p116, %p117
    %p119 = scmp.ne.s32.totalorder %s111, %s113
    %p120 = scmp.eq.s32.totalorder %s19, 1
    %p121 = por %p119, %p120
    %p122 = scmp.ne.s32.totalorder %s113, %s114
    %p123 = scmp.eq.s32.totalorder %s19, 0
    %p124 = por %p122, %p123
    %p125 = scmp.ne.s32.totalorder %s113, %s114
    %p126 = scmp.eq.s32.totalorder %s20, 1
    %p127 = por %p125, %p126
    %p129 = scmp.ne.s32.totalorder %s114, %s128
    %p130 = scmp.eq.s32.totalorder %s20, 0
    %p131 = por %p129, %p130
    %s133 = sadd.s32 %s132, 1
    %p136 = scmp.eq.s32.totalorder %s14, 1
    %p137 = scmp.ne.s32.totalorder %s132, %s134
    %p138 = scmp.eq.s32.totalorder %s14, 0
    %p139 = por %p137, %p138
    %p140 = scmp.ne.s32.totalorder %s132, %s134
    %p141 = scmp.eq.s32.totalorder %s19, 1
    %p142 = por %p140, %p141
    %p143 = scmp.ne.s32.totalorder %s134, %s135
    %p144 = scmp.eq.s32.totalorder %s19, 0
    %p145 = por %p143, %p144
    %p146 = scmp.ne.s32.totalorder %s134, %s135
    %p147 = scmp.eq.s32.totalorder %s20, 1
    %p148 = por %p146, %p147
    %p150 = scmp.ne.s32.totalorder %s135, %s149
    %p151 = scmp.eq.s32.totalorder %s20, 0
    %p152 = por %p150, %p151
    %s154 = sadd.s32 %s153, 1
    %p157 = scmp.eq.s32.totalorder %s14, 1
    %p158 = scmp.ne.s32.totalorder %s153, %s155
    %p159 = scmp.eq.s32.totalorder %s14, 0
    %p160 = por %p158, %p159
    %p161 = scmp.ne.s32.totalorder %s153, %s155
    %p162 = scmp.eq.s32.totalorder %s19, 1
    %p163 = por %p161, %p162
    %p164 = scmp.ne.s32.totalorder %s155, %s156
    %p165 = scmp.eq.s32.totalorder %s19, 0
    %p166 = por %p164, %p165
    %p167 = scmp.ne.s32.totalorder %s155, %s156
    %p168 = scmp.eq.s32.totalorder %s20, 1
    %p169 = por %p167, %p168
    %p171 = scmp.ne.s32.totalorder %s156, %s170
    %p172 = scmp.eq.s32.totalorder %s20, 0
    %p173 = por %p171, %p172
    %s175 = sadd.s32 %s174, 1
    %p178 = scmp.eq.s32.totalorder %s14, 1
    %p179 = scmp.ne.s32.totalorder %s174, %s176
    %p180 = scmp.eq.s32.totalorder %s14, 0
    %p181 = por %p179, %p180
    %p182 = scmp.ne.s32.totalorder %s174, %s176
    %p183 = scmp.eq.s32.totalorder %s19, 1
    %p184 = por %p182, %p183
    %p185 = scmp.ne.s32.totalorder %s176, %s177
    %p186 = scmp.eq.s32.totalorder %s19, 0
    %p187 = por %p185, %p186
    %p188 = scmp.ne.s32.totalorder %s176, %s177
    %p189 = scmp.eq.s32.totalorder %s20, 1
    %p190 = por %p188, %p189
    %p192 = scmp.ne.s32.totalorder %s177, %s191
    %p193 = scmp.eq.s32.totalorder %s20, 0
    %p194 = por %p192, %p193
    %s195 = ssub.s32 %s14, %s21
    %p196 = scmp.eq.s32.totalorder %s195, 0
    %s198 = sadd.s32 %s197, 1
    %s199 = scalar_select %p196, %s197, %s198
    %p202 = pneg %p196
    %p203 = scmp.eq.s32.totalorder %s14, 1
    %p204 = por %p202, %p203
    %p205 = scmp.ne.s32.totalorder %s197, %s200
    %p206 = scmp.eq.s32.totalorder %s14, 0
    %p207 = por %p205, %p206
    %p208 = scmp.ne.s32.totalorder %s197, %s200
    %p209 = scmp.eq.s32.totalorder %s19, 1
    %p210 = por %p208, %p209
    %p211 = scmp.ne.s32.totalorder %s200, %s201
    %p212 = scmp.eq.s32.totalorder %s19, 0
    %p213 = por %p211, %p212
    %p214 = scmp.ne.s32.totalorder %s200, %s201
    %p215 = scmp.eq.s32.totalorder %s20, 1
    %p216 = por %p214, %p215
    %p218 = scmp.ne.s32.totalorder %s201, %s217
    %p219 = scmp.eq.s32.totalorder %s20, 0
    %p220 = por %p218, %p219
    %p221 = scmp.le.s32.totalorder 1, %s14
    %p222 = scmp.lt.s32.totalorder %s14, 3
    %p223 = pnand %p221, %p222
    %p224 = pneg %p223
    // Predicated region
    $region9: #{down_block.1} parent=5 // pred_check
      _
    $region10: #{down_block.1} parent=5 // pred_check_branch
      %226 = sbr.rel (%p223) target = $region12
    $region11: #{down_block.1} parent=5 // pred_region
      %s227 = ssub.s32 %s14, 1
      // Predicated region
      $region13: #{down_block.1} parent=11 // pred_check
        %p228 = pneg %p61
      $region14: #{down_block.1} parent=11 // pred_check_branch
        %230 = sbr.rel (%p228) target = $region16
      $region15: #{down_block.1} parent=11 // pred_region
        _
      $region16: #{down_block.1} parent=11 // pred_fallthru
        _
      // Predicated region
      $region17: #{down_block.1} parent=11 // pred_check
        %p231 = pneg %p82
      $region18: #{down_block.1} parent=11 // pred_check_branch
        %233 = sbr.rel (%p231) target = $region20
      $region19: #{down_block.1} parent=11 // pred_region
        _
      $region20: #{down_block.1} parent=11 // pred_fallthru
        _
      // Predicated region
      $region21: #{down_block.1} parent=11 // pred_check
        %p234 = pneg %p103
      $region22: #{down_block.1} parent=11 // pred_check_branch
        %236 = sbr.rel (%p234) target = $region24
      $region23: #{down_block.1} parent=11 // pred_region
        _
      $region24: #{down_block.1} parent=11 // pred_fallthru
        _
      // Predicated region
      $region25: #{down_block.1} parent=11 // pred_check
        %p237 = pneg %p124
      $region26: #{down_block.1} parent=11 // pred_check_branch
        %239 = sbr.rel (%p237) target = $region28
      $region27: #{down_block.1} parent=11 // pred_region
        _
      $region28: #{down_block.1} parent=11 // pred_fallthru
        _
      // Predicated region
      $region29: #{down_block.1} parent=11 // pred_check
        %p240 = pneg %p145
      $region30: #{down_block.1} parent=11 // pred_check_branch
        %242 = sbr.rel (%p240) target = $region32
      $region31: #{down_block.1} parent=11 // pred_region
        _
      $region32: #{down_block.1} parent=11 // pred_fallthru
        _
      // Predicated region
      $region33: #{down_block.1} parent=11 // pred_check
        %p243 = pneg %p166
      $region34: #{down_block.1} parent=11 // pred_check_branch
        %245 = sbr.rel (%p243) target = $region36
      $region35: #{down_block.1} parent=11 // pred_region
        _
      $region36: #{down_block.1} parent=11 // pred_fallthru
        _
      // Predicated region
      $region37: #{down_block.1} parent=11 // pred_check
        %p246 = pneg %p187
      $region38: #{down_block.1} parent=11 // pred_check_branch
        %248 = sbr.rel (%p246) target = $region40
      $region39: #{down_block.1} parent=11 // pred_region
        _
      $region40: #{down_block.1} parent=11 // pred_fallthru
        _
    $region12: #{down_block.1} parent=5 // pred_fallthru
      _
    %p249 = scmp.lt.s32.totalorder %s14, 2
    // Predicated region
    $region41: #{down_block.1} parent=5 // pred_check
      %p250 = pneg %p249
    $region42: #{down_block.1} parent=5 // pred_check_branch
      %252 = sbr.rel (%p250) target = $region44
    $region43: #{down_block.1} parent=5 // pred_region
      // Predicated region
      $region45: #{down_block.1} parent=43 // pred_check
        %p253 = pneg %p34
      $region46: #{down_block.1} parent=43 // pred_check_branch
        %255 = sbr.rel (%p253) target = $region48
      $region47: #{down_block.1} parent=43 // pred_region
        %p256 = scmp.lt.s32.totalorder %s14, 1
        %s257 = scalar_select %p256, %s14, 1
        %s258 = smul.addr %s257, 9
        %s259 = smul.addr %s258, 8
        %s260 = scalar_lea.vmem %s0, %s259
      $region48: #{down_block.1} parent=43 // pred_fallthru
        _
    $region44: #{down_block.1} parent=5 // pred_fallthru
      _
    %p261 = scmp.le.s32.totalorder 1, %s14
    %p262 = scmp.lt.s32.totalorder %s14, 3
    %p263 = pnand %p261, %p262
    %p264 = pneg %p263
    // Predicated region
    $region49: #{down_block.1} parent=5 // pred_check
      _
    $region50: #{down_block.1} parent=5 // pred_check_branch
      %266 = sbr.rel (%p263) target = $region52
    $region51: #{down_block.1} parent=5 // pred_region
      %s267 = ssub.s32 %s14, 1
      %p268 = scmp.lt.s32.totalorder %s19, 1
      %s269 = scalar_select %p268, %s19, 1
      %s270 = smul.addr %s269, 9
      %s271 = smul.addr %s270, 8
      %s272 = scalar_lea.vmem %s0, %s271
      %p273 = pneg %p40
      %p274 = pneg %p37
      %p275 = pneg %p61
      %p276 = pneg %p58
      %p277 = pneg %p82
      %p278 = pneg %p79
      %p279 = pneg %p103
      %p280 = pneg %p100
      %p281 = pneg %p124
      %p282 = pneg %p121
      %p283 = pneg %p145
      %p284 = pneg %p142
      %p285 = pneg %p166
      %p286 = pneg %p163
      %p287 = pneg %p187
      %p288 = pneg %p184
      %p289 = pneg %p213
      %p290 = pneg %p210
      %p291 = scmp.lt.s32.totalorder %s19, 1
      %s292 = scalar_select %p291, %s19, 1
      %s293 = smul.addr %s292, 8
      %s294 = scalar_lea.vmem %s8, %s293
      %p295 = scmp.lt.s32.totalorder %s19, 1
      %s296 = scalar_select %p295, %s19, 1
      %s297 = smul.addr %s296, 9
      %s298 = smul.addr %s297, 8
      %s299 = scalar_lea.vmem %s0, %s298
      %p300 = scmp.lt.s32.totalorder %s19, 1
      %s301 = scalar_select %p300, %s19, 1
      %s302 = smul.addr %s301, 8
      %s303 = scalar_lea.vmem %s8, %s302
      %v304 = vld [vmem:[%s299] sm:$0xff]
      %v305 = vld [vmem:[%s299 + $0x8] sm:$0xff]
      %v306 = vld [vmem:[%s299 + $0x10] sm:$0xff]
      %v307 = vld [vmem:[%s299 + $0x18] sm:$0xff]
      %v308 = vld [vmem:[%s299 + $0x20] sm:$0xff]
      %v309 = vld [vmem:[%s299 + $0x28] sm:$0xff]
      %v310 = vld [vmem:[%s299 + $0x30] sm:$0xff]
      %v311 = vld [vmem:[%s299 + $0x38] sm:$0xff]
      %v312 = vld [vmem:[%s299 + $0x40] sm:$0xff]
      %v313 = vld [vmem:[%s2] sm:$0xff]
      %v314 = vld [vmem:[%s3] sm:$0xff]
      %316 = vset.pattern.permute.xlu0 0
      %317 = vperm.xlu0 %316, %v314
      %v318 = vpop.permute.xlu0 %317
      %vm320 = vcmask 64512
      %v322 = vsel %vm320, %v313, 0
      %v324 = vand.u32 %v305, 4294901760
      %325 = vmatprep.subr.mxu0 %v324
      %v326 = vand.u32 %v304, 4294901760
      %327 = vmatpush1.msra.mxu0 %v326
      %328 = vmatprep.subr.mxu0 0.0
      %329 = vmatpush1.msra.mxu0 0.0
      %330 = vmatprep.subr.mxu0 0.0
      %331 = vmatpush1.msra.mxu0 0.0
      %332 = vmatprep.subr.mxu0 0.0
      %333 = vmatpush1.msra.mxu0 0.0
      %334 = vmatprep.subr.mxu0 0.0
      %335 = vmatpush1.msra.mxu0 0.0
      %336 = vmatprep.subr.mxu0 0.0
      %337 = vmatpush1.msra.mxu0 0.0
      %338 = vmatprep.subr.mxu0 0.0
      %339 = vmatpush1.msra.mxu0 0.0
      %340 = vmatprep.subr.mxu0 0.0
      %341 = vmatpush1.msra.mxu0 0.0
      %342 = vmatprep.subr.mxu0 0.0
      %343 = vmatpush1.msra.mxu0 0.0
      %344 = vmatprep.subr.mxu0 0.0
      %345 = vmatpush1.msra.mxu0 0.0
      %346 = vmatprep.subr.mxu0 0.0
      %347 = vmatpush1.msra.mxu0 0.0
      %348 = vmatprep.subr.mxu0 0.0
      %349 = vmatpush1.msra.mxu0 0.0
      %350 = vmatprep.subr.mxu0 0.0
      %351 = vmatpush1.msra.mxu0 0.0
      %352 = vmatprep.subr.mxu0 0.0
      %353 = vmatpush1.msra.mxu0 0.0
      %354 = vmatprep.subr.mxu0 0.0
      %355 = vmatpush1.msra.mxu0 0.0
      %356 = vmatprep.subr.mxu0 0.0
      %357 = vmatpush1.msra.mxu0 0.0
      %358 = vmatprep.subr.mxu0 0.0
      %359 = vmatpush1.msra.mxu0 0.0
      %360 = vmatprep.subr.mxu0 0.0
      %361 = vmatpush1.msra.mxu0 0.0
      %362 = vmatprep.subr.mxu0 0.0
      %363 = vmatpush1.msra.mxu0 0.0
      %364 = vmatprep.subr.mxu0 0.0
      %365 = vmatpush1.msra.mxu0 0.0
      %366 = vmatprep.subr.mxu0 0.0
      %367 = vmatpush1.msra.mxu0 0.0
      %368 = vmatprep.subr.mxu0 0.0
      %369 = vmatpush1.msra.mxu0 0.0
      %370 = vmatprep.subr.mxu0 0.0
      %371 = vmatpush1.msra.mxu0 0.0
      %372 = vmatprep.subr.mxu0 0.0
      %373 = vmatpush1.msra.mxu0 0.0
      %374 = vmatprep.subr.mxu0 0.0
      %375 = vmatpush1.msra.mxu0 0.0
      %376 = vmatprep.subr.mxu0 0.0
      %377 = vmatpush1.msra.mxu0 0.0
      %378 = vmatprep.subr.mxu0 0.0
      %379 = vmatpush1.msra.mxu0 0.0
      %380 = vmatprep.subr.mxu0 0.0
      %381 = vmatpush1.msra.mxu0 0.0
      %382 = vmatprep.subr.mxu0 0.0
      %383 = vmatpush1.msra.mxu0 0.0
      %384 = vmatprep.subr.mxu0 0.0
      %385 = vmatpush1.msra.mxu0 0.0
      %386 = vmatprep.subr.mxu0 0.0
      %387 = vmatpush1.msra.mxu0 0.0
      %388 = vmatprep.subr.mxu0 0.0
      %389 = vmatpush1.msra.mxu0 0.0
      %390 = vmatprep.mubr.f32.mxu0 0.0
      %v391 = vand.u32 %v322, 4294901760
      %v392 = vsub.f32 %v322, %v391
      %v393 = vand.u32 %v392, 4294901760
      %v394 = vsub.f32 %v392, %v393
      %v395 = vand.u32 %v394, 4294901760
      %396 = vmatmul.mubr.f32.gmra.mrb[0].mxu0 %v395
      %v397 = vpop.f32.mrb[0].mxu0
      %v398 = vadd.f32 %v318, %v397
      %v399 = vpop.f32.mrb[0].mxu0
      %v400 = vadd.f32 %v318, %v399
      %401 = vdwg.mxu0
      %v402 = vand.u32 %v305, 4294901760
      %v403 = vsub.f32 %v305, %v402
      %v404 = vand.u32 %v403, 4294901760
      %v405 = vsub.f32 %v403, %v404
      %v406 = vand.u32 %v405, 4294901760
      %407 = vmatprep.subr.mxu0 %v406
      %v408 = vand.u32 %v304, 4294901760
      %v409 = vsub.f32 %v304, %v408
      %v410 = vand.u32 %v409, 4294901760
      %v411 = vsub.f32 %v409, %v410
      %v412 = vand.u32 %v411, 4294901760
      %413 = vmatpush1.msra.mxu0 %v412
      %414 = vmatprep.subr.mxu0 0.0
      %415 = vmatpush1.msra.mxu0 0.0
      %416 = vmatprep.subr.mxu0 0.0
      %417 = vmatpush1.msra.mxu0 0.0
      %418 = vmatprep.subr.mxu0 0.0
      %419 = vmatpush1.msra.mxu0 0.0
      %420 = vmatprep.subr.mxu0 0.0
      %421 = vmatpush1.msra.mxu0 0.0
      %422 = vmatprep.subr.mxu0 0.0
      %423 = vmatpush1.msra.mxu0 0.0
      %424 = vmatprep.subr.mxu0 0.0
      %425 = vmatpush1.msra.mxu0 0.0
      %426 = vmatprep.subr.mxu0 0.0
      %427 = vmatpush1.msra.mxu0 0.0
      %428 = vmatprep.subr.mxu0 0.0
      %429 = vmatpush1.msra.mxu0 0.0
      %430 = vmatprep.subr.mxu0 0.0
      %431 = vmatpush1.msra.mxu0 0.0
      %432 = vmatprep.subr.mxu0 0.0
      %433 = vmatpush1.msra.mxu0 0.0
      %434 = vmatprep.subr.mxu0 0.0
      %435 = vmatpush1.msra.mxu0 0.0
      %436 = vmatprep.subr.mxu0 0.0
      %437 = vmatpush1.msra.mxu0 0.0
      %438 = vmatprep.subr.mxu0 0.0
      %439 = vmatpush1.msra.mxu0 0.0
      %440 = vmatprep.subr.mxu0 0.0
      %441 = vmatpush1.msra.mxu0 0.0
      %442 = vmatprep.subr.mxu0 0.0
      %443 = vmatpush1.msra.mxu0 0.0
      %444 = vmatprep.subr.mxu0 0.0
      %445 = vmatpush1.msra.mxu0 0.0
      %446 = vmatprep.subr.mxu0 0.0
      %447 = vmatpush1.msra.mxu0 0.0
      %448 = vmatprep.subr.mxu0 0.0
      %449 = vmatpush1.msra.mxu0 0.0
      %450 = vmatprep.subr.mxu0 0.0
      %451 = vmatpush1.msra.mxu0 0.0
      %452 = vmatprep.subr.mxu0 0.0
      %453 = vmatpush1.msra.mxu0 0.0
      %454 = vmatprep.subr.mxu0 0.0
      %455 = vmatpush1.msra.mxu0 0.0
      %456 = vmatprep.subr.mxu0 0.0
      %457 = vmatpush1.msra.mxu0 0.0
      %458 = vmatprep.subr.mxu0 0.0
      %459 = vmatpush1.msra.mxu0 0.0
      %460 = vmatprep.subr.mxu0 0.0
      %461 = vmatpush1.msra.mxu0 0.0
      %462 = vmatprep.subr.mxu0 0.0
      %463 = vmatpush1.msra.mxu0 0.0
      %464 = vmatprep.subr.mxu0 0.0
      %465 = vmatpush1.msra.mxu0 0.0
      %466 = vmatprep.subr.mxu0 0.0
      %467 = vmatpush1.msra.mxu0 0.0
      %468 = vmatprep.subr.mxu0 0.0
      %469 = vmatpush1.msra.mxu0 0.0
      %470 = vmatprep.subr.mxu0 0.0
      %471 = vmatpush1.msra.mxu0 0.0
      %472 = vmatprep.subr.mxu0 0.0
      %473 = vmatpush1.msra.mxu0 0.0
      %474 = vmatprep.subr.mxu0 0.0
      %475 = vmatpush1.msra.mxu0 0.0
      %476 = vmatprep.mubr.f32.mxu0 0.0
      %v477 = vand.u32 %v322, 4294901760
      %478 = vmatmul.mubr.f32.gmra.mrb[0].mxu0 %v477
      %v479 = vpop.f32.mrb[0].mxu0
      %v480 = vadd.f32 %v398, %v479
      %v481 = vpop.f32.mrb[0].mxu0
      %v482 = vadd.f32 %v400, %v481
      %483 = vdwg.mxu0
      %v484 = vand.u32 %v305, 4294901760
      %v485 = vsub.f32 %v305, %v484
      %486 = vmatprep.subr.mxu0 %v485
      %v487 = vand.u32 %v304, 4294901760
      %v488 = vsub.f32 %v304, %v487
      %489 = vmatpush1.msra.mxu0 %v488
      %490 = vmatprep.subr.mxu0 0.0
      %491 = vmatpush1.msra.mxu0 0.0
      %492 = vmatprep.subr.mxu0 0.0
      %493 = vmatpush1.msra.mxu0 0.0
      %494 = vmatprep.subr.mxu0 0.0
      %495 = vmatpush1.msra.mxu0 0.0
      %496 = vmatprep.subr.mxu0 0.0
      %497 = vmatpush1.msra.mxu0 0.0
      %498 = vmatprep.subr.mxu0 0.0
      %499 = vmatpush1.msra.mxu0 0.0
      %500 = vmatprep.subr.mxu0 0.0
      %501 = vmatpush1.msra.mxu0 0.0
      %502 = vmatprep.subr.mxu0 0.0
      %503 = vmatpush1.msra.mxu0 0.0
      %504 = vmatprep.subr.mxu0 0.0
      %505 = vmatpush1.msra.mxu0 0.0
      %506 = vmatprep.subr.mxu0 0.0
      %507 = vmatpush1.msra.mxu0 0.0
      %508 = vmatprep.subr.mxu0 0.0
      %509 = vmatpush1.msra.mxu0 0.0
      %510 = vmatprep.subr.mxu0 0.0
      %511 = vmatpush1.msra.mxu0 0.0
      %512 = vmatprep.subr.mxu0 0.0
      %513 = vmatpush1.msra.mxu0 0.0
      %514 = vmatprep.subr.mxu0 0.0
      %515 = vmatpush1.msra.mxu0 0.0
      %516 = vmatprep.subr.mxu0 0.0
      %517 = vmatpush1.msra.mxu0 0.0
      %518 = vmatprep.subr.mxu0 0.0
      %519 = vmatpush1.msra.mxu0 0.0
      %520 = vmatprep.subr.mxu0 0.0
      %521 = vmatpush1.msra.mxu0 0.0
      %522 = vmatprep.subr.mxu0 0.0
      %523 = vmatpush1.msra.mxu0 0.0
      %524 = vmatprep.subr.mxu0 0.0
      %525 = vmatpush1.msra.mxu0 0.0
      %526 = vmatprep.subr.mxu0 0.0
      %527 = vmatpush1.msra.mxu0 0.0
      %528 = vmatprep.subr.mxu0 0.0
      %529 = vmatpush1.msra.mxu0 0.0
      %530 = vmatprep.subr.mxu0 0.0
      %531 = vmatpush1.msra.mxu0 0.0
      %532 = vmatprep.subr.mxu0 0.0
      %533 = vmatpush1.msra.mxu0 0.0
      %534 = vmatprep.subr.mxu0 0.0
      %535 = vmatpush1.msra.mxu0 0.0
      %536 = vmatprep.subr.mxu0 0.0
      %537 = vmatpush1.msra.mxu0 0.0
      %538 = vmatprep.subr.mxu0 0.0
      %539 = vmatpush1.msra.mxu0 0.0
      %540 = vmatprep.subr.mxu0 0.0
      %541 = vmatpush1.msra.mxu0 0.0
      %542 = vmatprep.subr.mxu0 0.0
      %543 = vmatpush1.msra.mxu0 0.0
      %544 = vmatprep.subr.mxu0 0.0
      %545 = vmatpush1.msra.mxu0 0.0
      %546 = vmatprep.subr.mxu0 0.0
      %547 = vmatpush1.msra.mxu0 0.0
      %548 = vmatprep.subr.mxu0 0.0
      %549 = vmatpush1.msra.mxu0 0.0
      %550 = vmatprep.subr.mxu0 0.0
      %551 = vmatpush1.msra.mxu0 0.0
      %552 = vmatprep.mubr.f32.mxu0 0.0
      %v553 = vand.u32 %v322, 4294901760
      %v554 = vsub.f32 %v322, %v553
      %555 = vmatmul.mubr.f32.gmra.mrb[0].mxu0 %v554
      %v556 = vpop.f32.mrb[0].mxu0
      %v557 = vadd.f32 %v480, %v556
      %v558 = vpop.f32.mrb[0].mxu0
      %v559 = vadd.f32 %v482, %v558
      %560 = vdwg.mxu0
      %v561 = vand.u32 %v305, 4294901760
      %562 = vmatprep.subr.mxu0 %v561
      %v563 = vand.u32 %v304, 4294901760
      %564 = vmatpush1.msra.mxu0 %v563
      %565 = vmatprep.subr.mxu0 0.0
      %566 = vmatpush1.msra.mxu0 0.0
      %567 = vmatprep.subr.mxu0 0.0
      %568 = vmatpush1.msra.mxu0 0.0
      %569 = vmatprep.subr.mxu0 0.0
      %570 = vmatpush1.msra.mxu0 0.0
      %571 = vmatprep.subr.mxu0 0.0
      %572 = vmatpush1.msra.mxu0 0.0
      %573 = vmatprep.subr.mxu0 0.0
      %574 = vmatpush1.msra.mxu0 0.0
      %575 = vmatprep.subr.mxu0 0.0
      %576 = vmatpush1.msra.mxu0 0.0
      %577 = vmatprep.subr.mxu0 0.0
      %578 = vmatpush1.msra.mxu0 0.0
      %579 = vmatprep.subr.mxu0 0.0
      %580 = vmatpush1.msra.mxu0 0.0
      %581 = vmatprep.subr.mxu0 0.0
      %582 = vmatpush1.msra.mxu0 0.0
      %583 = vmatprep.subr.mxu0 0.0
      %584 = vmatpush1.msra.mxu0 0.0
      %585 = vmatprep.subr.mxu0 0.0
      %586 = vmatpush1.msra.mxu0 0.0
      %587 = vmatprep.subr.mxu0 0.0
      %588 = vmatpush1.msra.mxu0 0.0
      %589 = vmatprep.subr.mxu0 0.0
      %590 = vmatpush1.msra.mxu0 0.0
      %591 = vmatprep.subr.mxu0 0.0
      %592 = vmatpush1.msra.mxu0 0.0
      %593 = vmatprep.subr.mxu0 0.0
      %594 = vmatpush1.msra.mxu0 0.0
      %595 = vmatprep.subr.mxu0 0.0
      %596 = vmatpush1.msra.mxu0 0.0
      %597 = vmatprep.subr.mxu0 0.0
      %598 = vmatpush1.msra.mxu0 0.0
      %599 = vmatprep.subr.mxu0 0.0
      %600 = vmatpush1.msra.mxu0 0.0
      %601 = vmatprep.subr.mxu0 0.0
      %602 = vmatpush1.msra.mxu0 0.0
      %603 = vmatprep.subr.mxu0 0.0
      %604 = vmatpush1.msra.mxu0 0.0
      %605 = vmatprep.subr.mxu0 0.0
      %606 = vmatpush1.msra.mxu0 0.0
      %607 = vmatprep.subr.mxu0 0.0
      %608 = vmatpush1.msra.mxu0 0.0
      %609 = vmatprep.subr.mxu0 0.0
      %610 = vmatpush1.msra.mxu0 0.0
      %611 = vmatprep.subr.mxu0 0.0
      %612 = vmatpush1.msra.mxu0 0.0
      %613 = vmatprep.subr.mxu0 0.0
      %614 = vmatpush1.msra.mxu0 0.0
      %615 = vmatprep.subr.mxu0 0.0
      %616 = vmatpush1.msra.mxu0 0.0
      %617 = vmatprep.subr.mxu0 0.0
      %618 = vmatpush1.msra.mxu0 0.0
      %619 = vmatprep.subr.mxu0 0.0
      %620 = vmatpush1.msra.mxu0 0.0
      %621 = vmatprep.subr.mxu0 0.0
      %622 = vmatpush1.msra.mxu0 0.0
      %623 = vmatprep.subr.mxu0 0.0
      %624 = vmatpush1.msra.mxu0 0.0
      %625 = vmatprep.subr.mxu0 0.0
      %626 = vmatpush1.msra.mxu0 0.0
      %627 = vmatprep.mubr.f32.mxu0 0.0
      %v628 = vand.u32 %v322, 4294901760
      %v629 = vsub.f32 %v322, %v628
      %v630 = vand.u32 %v629, 4294901760
      %631 = vmatmul.mubr.f32.gmra.mrb[0].mxu0 %v630
      %v632 = vpop.f32.mrb[0].mxu0
      %v633 = vadd.f32 %v557, %v632
      %v634 = vpop.f32.mrb[0].mxu0
      %v635 = vadd.f32 %v559, %v634
      %636 = vdwg.mxu0
      %v637 = vand.u32 %v305, 4294901760
      %v638 = vsub.f32 %v305, %v637
      %v639 = vand.u32 %v638, 4294901760
      %640 = vmatprep.subr.mxu0 %v639
      %v641 = vand.u32 %v304, 4294901760
      %v642 = vsub.f32 %v304, %v641
      %v643 = vand.u32 %v642, 4294901760
      %644 = vmatpush1.msra.mxu0 %v643
      %645 = vmatprep.subr.mxu0 0.0
      %646 = vmatpush1.msra.mxu0 0.0
      %647 = vmatprep.subr.mxu0 0.0
      %648 = vmatpush1.msra.mxu0 0.0
      %649 = vmatprep.subr.mxu0 0.0
      %650 = vmatpush1.msra.mxu0 0.0
      %651 = vmatprep.subr.mxu0 0.0
      %652 = vmatpush1.msra.mxu0 0.0
      %653 = vmatprep.subr.mxu0 0.0
      %654 = vmatpush1.msra.mxu0 0.0
      %655 = vmatprep.subr.mxu0 0.0
      %656 = vmatpush1.msra.mxu0 0.0
      %657 = vmatprep.subr.mxu0 0.0
      %658 = vmatpush1.msra.mxu0 0.0
      %659 = vmatprep.subr.mxu0 0.0
      %660 = vmatpush1.msra.mxu0 0.0
      %661 = vmatprep.subr.mxu0 0.0
      %662 = vmatpush1.msra.mxu0 0.0
      %663 = vmatprep.subr.mxu0 0.0
      %664 = vmatpush1.msra.mxu0 0.0
      %665 = vmatprep.subr.mxu0 0.0
      %666 = vmatpush1.msra.mxu0 0.0
      %667 = vmatprep.subr.mxu0 0.0
      %668 = vmatpush1.msra.mxu0 0.0
      %669 = vmatprep.subr.mxu0 0.0
      %670 = vmatpush1.msra.mxu0 0.0
      %671 = vmatprep.subr.mxu0 0.0
      %672 = vmatpush1.msra.mxu0 0.0
      %673 = vmatprep.subr.mxu0 0.0
      %674 = vmatpush1.msra.mxu0 0.0
      %675 = vmatprep.subr.mxu0 0.0
      %676 = vmatpush1.msra.mxu0 0.0
      %677 = vmatprep.subr.mxu0 0.0
      %678 = vmatpush1.msra.mxu0 0.0
      %679 = vmatprep.subr.mxu0 0.0
      %680 = vmatpush1.msra.mxu0 0.0
      %681 = vmatprep.subr.mxu0 0.0
      %682 = vmatpush1.msra.mxu0 0.0
      %683 = vmatprep.subr.mxu0 0.0
      %684 = vmatpush1.msra.mxu0 0.0
      %685 = vmatprep.subr.mxu0 0.0
      %686 = vmatpush1.msra.mxu0 0.0
      %687 = vmatprep.subr.mxu0 0.0
      %688 = vmatpush1.msra.mxu0 0.0
      %689 = vmatprep.subr.mxu0 0.0
      %690 = vmatpush1.msra.mxu0 0.0
      %691 = vmatprep.subr.mxu0 0.0
      %692 = vmatpush1.msra.mxu0 0.0
      %693 = vmatprep.subr.mxu0 0.0
      %694 = vmatpush1.msra.mxu0 0.0
      %695 = vmatprep.subr.mxu0 0.0
      %696 = vmatpush1.msra.mxu0 0.0
      %697 = vmatprep.subr.mxu0 0.0
      %698 = vmatpush1.msra.mxu0 0.0
      %699 = vmatprep.subr.mxu0 0.0
      %700 = vmatpush1.msra.mxu0 0.0
      %701 = vmatprep.subr.mxu0 0.0
      %702 = vmatpush1.msra.mxu0 0.0
      %703 = vmatprep.subr.mxu0 0.0
      %704 = vmatpush1.msra.mxu0 0.0
      %705 = vmatprep.subr.mxu0 0.0
      %706 = vmatpush1.msra.mxu0 0.0
      %707 = vmatprep.mubr.f32.mxu0 0.0
      %v708 = vand.u32 %v322, 4294901760
      %709 = vmatmul.mubr.f32.gmra.mrb[0].mxu0 %v708
      %v710 = vpop.f32.mrb[0].mxu0
      %v711 = vadd.f32 %v633, %v710
      %v712 = vpop.f32.mrb[0].mxu0
      %v713 = vadd.f32 %v635, %v712
      %714 = vdwg.mxu0
      %v715 = vand.u32 %v305, 4294901760
      %716 = vmatprep.subr.mxu0 %v715
      %v717 = vand.u32 %v304, 4294901760
      %718 = vmatpush1.msra.mxu0 %v717
      %719 = vmatprep.subr.mxu0 0.0
      %720 = vmatpush1.msra.mxu0 0.0
      %721 = vmatprep.subr.mxu0 0.0
      %722 = vmatpush1.msra.mxu0 0.0
      %723 = vmatprep.subr.mxu0 0.0
      %724 = vmatpush1.msra.mxu0 0.0
      %725 = vmatprep.subr.mxu0 0.0
      %726 = vmatpush1.msra.mxu0 0.0
      %727 = vmatprep.subr.mxu0 0.0
      %728 = vmatpush1.msra.mxu0 0.0
      %729 = vmatprep.subr.mxu0 0.0
      %730 = vmatpush1.msra.mxu0 0.0
      %731 = vmatprep.subr.mxu0 0.0
      %732 = vmatpush1.msra.mxu0 0.0
      %733 = vmatprep.subr.mxu0 0.0
      %734 = vmatpush1.msra.mxu0 0.0
      %735 = vmatprep.subr.mxu0 0.0
      %736 = vmatpush1.msra.mxu0 0.0
      %737 = vmatprep.subr.mxu0 0.0
      %738 = vmatpush1.msra.mxu0 0.0
      %739 = vmatprep.subr.mxu0 0.0
      %740 = vmatpush1.msra.mxu0 0.0
      %741 = vmatprep.subr.mxu0 0.0
      %742 = vmatpush1.msra.mxu0 0.0
      %743 = vmatprep.subr.mxu0 0.0
      %744 = vmatpush1.msra.mxu0 0.0
      %745 = vmatprep.subr.mxu0 0.0
      %746 = vmatpush1.msra.mxu0 0.0
      %747 = vmatprep.subr.mxu0 0.0
      %748 = vmatpush1.msra.mxu0 0.0
      %749 = vmatprep.subr.mxu0 0.0
      %750 = vmatpush1.msra.mxu0 0.0
      %751 = vmatprep.subr.mxu0 0.0
      %752 = vmatpush1.msra.mxu0 0.0
      %753 = vmatprep.subr.mxu0 0.0
      %754 = vmatpush1.msra.mxu0 0.0
      %755 = vmatprep.subr.mxu0 0.0
      %756 = vmatpush1.msra.mxu0 0.0
      %757 = vmatprep.subr.mxu0 0.0
      %758 = vmatpush1.msra.mxu0 0.0
      %759 = vmatprep.subr.mxu0 0.0
      %760 = vmatpush1.msra.mxu0 0.0
      %761 = vmatprep.subr.mxu0 0.0
      %762 = vmatpush1.msra.mxu0 0.0
      %763 = vmatprep.subr.mxu0 0.0
      %764 = vmatpush1.msra.mxu0 0.0
      %765 = vmatprep.subr.mxu0 0.0
      %766 = vmatpush1.msra.mxu0 0.0
      %767 = vmatprep.subr.mxu0 0.0
      %768 = vmatpush1.msra.mxu0 0.0
      %769 = vmatprep.subr.mxu0 0.0
      %770 = vmatpush1.msra.mxu0 0.0
      %771 = vmatprep.subr.mxu0 0.0
      %772 = vmatpush1.msra.mxu0 0.0
      %773 = vmatprep.subr.mxu0 0.0
      %774 = vmatpush1.msra.mxu0 0.0
      %775 = vmatprep.subr.mxu0 0.0
      %776 = vmatpush1.msra.mxu0 0.0
      %777 = vmatprep.subr.mxu0 0.0
      %778 = vmatpush1.msra.mxu0 0.0
      %779 = vmatprep.subr.mxu0 0.0
      %780 = vmatpush1.msra.mxu0 0.0
      %781 = vmatprep.mubr.f32.mxu0 0.0
      %v782 = vand.u32 %v322, 4294901760
      %783 = vmatmul.mubr.f32.gmra.mrb[0].mxu0 %v782
      %v784 = vpop.f32.mrb[0].mxu0
      %v785 = vadd.f32 %v711, %v784
      %v786 = vpop.f32.mrb[0].mxu0
      %v787 = vadd.f32 %v713, %v786
      %788 = vdwg.mxu0
      %v789 = vand.u32 %v307, 4294901760
      %790 = vmatprep.subr.mxu0 %v789
      %v791 = vand.u32 %v306, 4294901760
      %792 = vmatpush1.msra.mxu0 %v791
      %793 = vmatprep.subr.mxu0 0.0
      %794 = vmatpush1.msra.mxu0 0.0
      %795 = vmatprep.subr.mxu0 0.0
      %796 = vmatpush1.msra.mxu0 0.0
      %797 = vmatprep.subr.mxu0 0.0
      %798 = vmatpush1.msra.mxu0 0.0
      %799 = vmatprep.subr.mxu0 0.0
      %800 = vmatpush1.msra.mxu0 0.0
      %801 = vmatprep.subr.mxu0 0.0
      %802 = vmatpush1.msra.mxu0 0.0
      %803 = vmatprep.subr.mxu0 0.0
      %804 = vmatpush1.msra.mxu0 0.0
      %805 = vmatprep.subr.mxu0 0.0
      %806 = vmatpush1.msra.mxu0 0.0
      %807 = vmatprep.subr.mxu0 0.0
      %808 = vmatpush1.msra.mxu0 0.0
      %809 = vmatprep.subr.mxu0 0.0
      %810 = vmatpush1.msra.mxu0 0.0
      %811 = vmatprep.subr.mxu0 0.0
      %812 = vmatpush1.msra.mxu0 0.0
      %813 = vmatprep.subr.mxu0 0.0
      %814 = vmatpush1.msra.mxu0 0.0
      %815 = vmatprep.subr.mxu0 0.0
      %816 = vmatpush1.msra.mxu0 0.0
      %817 = vmatprep.subr.mxu0 0.0
      %818 = vmatpush1.msra.mxu0 0.0
      %819 = vmatprep.subr.mxu0 0.0
      %820 = vmatpush1.msra.mxu0 0.0
      %821 = vmatprep.subr.mxu0 0.0
      %822 = vmatpush1.msra.mxu0 0.0
      %823 = vmatprep.subr.mxu0 0.0
      %824 = vmatpush1.msra.mxu0 0.0
      %825 = vmatprep.subr.mxu0 0.0
      %826 = vmatpush1.msra.mxu0 0.0
      %827 = vmatprep.subr.mxu0 0.0
      %828 = vmatpush1.msra.mxu0 0.0
      %829 = vmatprep.subr.mxu0 0.0
      %830 = vmatpush1.msra.mxu0 0.0
      %831 = vmatprep.subr.mxu0 0.0
      %832 = vmatpush1.msra.mxu0 0.0
      %833 = vmatprep.subr.mxu0 0.0
      %834 = vmatpush1.msra.mxu0 0.0
      %835 = vmatprep.subr.mxu0 0.0
      %836 = vmatpush1.msra.mxu0 0.0
      %837 = vmatprep.subr.mxu0 0.0
      %838 = vmatpush1.msra.mxu0 0.0
      %839 = vmatprep.subr.mxu0 0.0
      %840 = vmatpush1.msra.mxu0 0.0
      %841 = vmatprep.subr.mxu0 0.0
      %842 = vmatpush1.msra.mxu0 0.0
      %843 = vmatprep.subr.mxu0 0.0
      %844 = vmatpush1.msra.mxu0 0.0
      %845 = vmatprep.subr.mxu0 0.0
      %846 = vmatpush1.msra.mxu0 0.0
      %847 = vmatprep.subr.mxu0 0.0
      %848 = vmatpush1.msra.mxu0 0.0
      %849 = vmatprep.subr.mxu0 0.0
      %850 = vmatpush1.msra.mxu0 0.0
      %851 = vmatprep.subr.mxu0 0.0
      %852 = vmatpush1.msra.mxu0 0.0
      %853 = vmatprep.subr.mxu0 0.0
      %854 = vmatpush1.msra.mxu0 0.0
      %855 = vmatprep.mubr.f32.mxu0 0.0
      %v856 = vand.u32 %v322, 4294901760
      %v857 = vsub.f32 %v322, %v856
      %v858 = vand.u32 %v857, 4294901760
      %v859 = vsub.f32 %v857, %v858
      %v860 = vand.u32 %v859, 4294901760
      %861 = vmatmul.mubr.f32.gmra.mrb[0].mxu0 %v860
      %v862 = vpop.f32.mrb[0].mxu0
      %v863 = vadd.f32 %v318, %v862
      %v864 = vpop.f32.mrb[0].mxu0
      %v865 = vadd.f32 %v318, %v864
      %866 = vdwg.mxu0
      %v867 = vand.u32 %v307, 4294901760
      %v868 = vsub.f32 %v307, %v867
      %v869 = vand.u32 %v868, 4294901760
      %v870 = vsub.f32 %v868, %v869
      %v871 = vand.u32 %v870, 4294901760
      %872 = vmatprep.subr.mxu0 %v871
      %v873 = vand.u32 %v306, 4294901760
      %v874 = vsub.f32 %v306, %v873
      %v875 = vand.u32 %v874, 4294901760
      %v876 = vsub.f32 %v874, %v875
      %v877 = vand.u32 %v876, 4294901760
      %878 = vmatpush1.msra.mxu0 %v877
      %879 = vmatprep.subr.mxu0 0.0
      %880 = vmatpush1.msra.mxu0 0.0
      %881 = vmatprep.subr.mxu0 0.0
      %882 = vmatpush1.msra.mxu0 0.0
      %883 = vmatprep.subr.mxu0 0.0
      %884 = vmatpush1.msra.mxu0 0.0
      %885 = vmatprep.subr.mxu0 0.0
      %886 = vmatpush1.msra.mxu0 0.0
      %887 = vmatprep.subr.mxu0 0.0
      %888 = vmatpush1.msra.mxu0 0.0
      %889 = vmatprep.subr.mxu0 0.0
      %890 = vmatpush1.msra.mxu0 0.0
      %891 = vmatprep.subr.mxu0 0.0
      %892 = vmatpush1.msra.mxu0 0.0
      %893 = vmatprep.subr.mxu0 0.0
      %894 = vmatpush1.msra.mxu0 0.0
      %895 = vmatprep.subr.mxu0 0.0
      %896 = vmatpush1.msra.mxu0 0.0
      %897 = vmatprep.subr.mxu0 0.0
      %898 = vmatpush1.msra.mxu0 0.0
      %899 = vmatprep.subr.mxu0 0.0
      %900 = vmatpush1.msra.mxu0 0.0
      %901 = vmatprep.subr.mxu0 0.0
      %902 = vmatpush1.msra.mxu0 0.0
      %903 = vmatprep.subr.mxu0 0.0
      %904 = vmatpush1.msra.mxu0 0.0
      %905 = vmatprep.subr.mxu0 0.0
      %906 = vmatpush1.msra.mxu0 0.0
      %907 = vmatprep.subr.mxu0 0.0
      %908 = vmatpush1.msra.mxu0 0.0
      %909 = vmatprep.subr.mxu0 0.0
      %910 = vmatpush1.msra.mxu0 0.0
      %911 = vmatprep.subr.mxu0 0.0
      %912 = vmatpush1.msra.mxu0 0.0
      %913 = vmatprep.subr.mxu0 0.0
      %914 = vmatpush1.msra.mxu0 0.0
      %915 = vmatprep.subr.mxu0 0.0
      %916 = vmatpush1.msra.mxu0 0.0
      %917 = vmatprep.subr.mxu0 0.0
      %918 = vmatpush1.msra.mxu0 0.0
      %919 = vmatprep.subr.mxu0 0.0
      %920 = vmatpush1.msra.mxu0 0.0
      %921 = vmatprep.subr.mxu0 0.0
      %922 = vmatpush1.msra.mxu0 0.0
      %923 = vmatprep.subr.mxu0 0.0
      %924 = vmatpush1.msra.mxu0 0.0
      %925 = vmatprep.subr.mxu0 0.0
      %926 = vmatpush1.msra.mxu0 0.0
      %927 = vmatprep.subr.mxu0 0.0
      %928 = vmatpush1.msra.mxu0 0.0
      %929 = vmatprep.subr.mxu0 0.0
      %930 = vmatpush1.msra.mxu0 0.0
      %931 = vmatprep.subr.mxu0 0.0
      %932 = vmatpush1.msra.mxu0 0.0
      %933 = vmatprep.subr.mxu0 0.0
      %934 = vmatpush1.msra.mxu0 0.0
      %935 = vmatprep.subr.mxu0 0.0
      %936 = vmatpush1.msra.mxu0 0.0
      %937 = vmatprep.subr.mxu0 0.0
      %938 = vmatpush1.msra.mxu0 0.0
      %939 = vmatprep.subr.mxu0 0.0
      %940 = vmatpush1.msra.mxu0 0.0
      %941 = vmatprep.mubr.f32.mxu0 0.0
      %v942 = vand.u32 %v322, 4294901760
      %943 = vmatmul.mubr.f32.gmra.mrb[0].mxu0 %v942
      %v944 = vpop.f32.mrb[0].mxu0
      %v945 = vadd.f32 %v863, %v944
      %v946 = vpop.f32.mrb[0].mxu0
      %v947 = vadd.f32 %v865, %v946
      %948 = vdwg.mxu0
      %v949 = vand.u32 %v307, 4294901760
      %v950 = vsub.f32 %v307, %v949
      %951 = vmatprep.subr.mxu0 %v950
      %v952 = vand.u32 %v306, 4294901760
      %v953 = vsub.f32 %v306, %v952
      %954 = vmatpush1.msra.mxu0 %v953
      %955 = vmatprep.subr.mxu0 0.0
      %956 = vmatpush1.msra.mxu0 0.0
      %957 = vmatprep.subr.mxu0 0.0
      %958 = vmatpush1.msra.mxu0 0.0
      %959 = vmatprep.subr.mxu0 0.0
      %960 = vmatpush1.msra.mxu0 0.0
      %961 = vmatprep.subr.mxu0 0.0
      %962 = vmatpush1.msra.mxu0 0.0
      %963 = vmatprep.subr.mxu0 0.0
      %964 = vmatpush1.msra.mxu0 0.0
      %965 = vmatprep.subr.mxu0 0.0
      %966 = vmatpush1.msra.mxu0 0.0
      %967 = vmatprep.subr.mxu0 0.0
      %968 = vmatpush1.msra.mxu0 0.0
      %969 = vmatprep.subr.mxu0 0.0
      %970 = vmatpush1.msra.mxu0 0.0
      %971 = vmatprep.subr.mxu0 0.0
      %972 = vmatpush1.msra.mxu0 0.0
      %973 = vmatprep.subr.mxu0 0.0
      %974 = vmatpush1.msra.mxu0 0.0
      %975 = vmatprep.subr.mxu0 0.0
      %976 = vmatpush1.msra.mxu0 0.0
      %977 = vmatprep.subr.mxu0 0.0
      %978 = vmatpush1.msra.mxu0 0.0
      %979 = vmatprep.subr.mxu0 0.0
      %980 = vmatpush1.msra.mxu0 0.0
      %981 = vmatprep.subr.mxu0 0.0
      %982 = vmatpush1.msra.mxu0 0.0
      %983 = vmatprep.subr.mxu0 0.0
      %984 = vmatpush1.msra.mxu0 0.0
      %985 = vmatprep.subr.mxu0 0.0
      %986 = vmatpush1.msra.mxu0 0.0
      %987 = vmatprep.subr.mxu0 0.0
      %988 = vmatpush1.msra.mxu0 0.0
      %989 = vmatprep.subr.mxu0 0.0
      %990 = vmatpush1.msra.mxu0 0.0
      %991 = vmatprep.subr.mxu0 0.0
      %992 = vmatpush1.msra.mxu0 0.0
      %993 = vmatprep.subr.mxu0 0.0
      %994 = vmatpush1.msra.mxu0 0.0
      %995 = vmatprep.subr.mxu0 0.0
      %996 = vmatpush1.msra.mxu0 0.0
      %997 = vmatprep.subr.mxu0 0.0
      %998 = vmatpush1.msra.mxu0 0.0
      %999 = vmatprep.subr.mxu0 0.0
      %1000 = vmatpush1.msra.mxu0 0.0
      %1001 = vmatprep.subr.mxu0 0.0
      %1002 = vmatpush1.msra.mxu0 0.0
      %1003 = vmatprep.subr.mxu0 0.0
      %1004 = vmatpush1.msra.mxu0 0.0
      %1005 = vmatprep.subr.mxu0 0.0
      %1006 = vmatpush1.msra.mxu0 0.0
      %1007 = vmatprep.subr.mxu0 0.0
      %1008 = vmatpush1.msra.mxu0 0.0
      %1009 = vmatprep.subr.mxu0 0.0
      %1010 = vmatpush1.msra.mxu0 0.0
      %1011 = vmatprep.subr.mxu0 0.0
      %1012 = vmatpush1.msra.mxu0 0.0
      %1013 = vmatprep.subr.mxu0 0.0
      %1014 = vmatpush1.msra.mxu0 0.0
      %1015 = vmatprep.subr.mxu0 0.0
      %1016 = vmatpush1.msra.mxu0 0.0
      %1017 = vmatprep.mubr.f32.mxu0 0.0
      %v1018 = vand.u32 %v322, 4294901760
      %v1019 = vsub.f32 %v322, %v1018
      %1020 = vmatmul.mubr.f32.gmra.mrb[0].mxu0 %v1019
      %v1021 = vpop.f32.mrb[0].mxu0
      %v1022 = vadd.f32 %v945, %v1021
      %v1023 = vpop.f32.mrb[0].mxu0
      %v1024 = vadd.f32 %v947, %v1023
      %1025 = vdwg.mxu0
      %v1026 = vand.u32 %v307, 4294901760
      %1027 = vmatprep.subr.mxu0 %v1026
      %v1028 = vand.u32 %v306, 4294901760
      %1029 = vmatpush1.msra.mxu0 %v1028
      %1030 = vmatprep.subr.mxu0 0.0
      %1031 = vmatpush1.msra.mxu0 0.0
      %1032 = vmatprep.subr.mxu0 0.0
      %1033 = vmatpush1.msra.mxu0 0.0
      %1034 = vmatprep.subr.mxu0 0.0
      %1035 = vmatpush1.msra.mxu0 0.0
      %1036 = vmatprep.subr.mxu0 0.0
      %1037 = vmatpush1.msra.mxu0 0.0
      %1038 = vmatprep.subr.mxu0 0.0
      %1039 = vmatpush1.msra.mxu0 0.0
      %1040 = vmatprep.subr.mxu0 0.0
      %1041 = vmatpush1.msra.mxu0 0.0
      %1042 = vmatprep.subr.mxu0 0.0
      %1043 = vmatpush1.msra.mxu0 0.0
      %1044 = vmatprep.subr.mxu0 0.0
      %1045 = vmatpush1.msra.mxu0 0.0
      %1046 = vmatprep.subr.mxu0 0.0
      %1047 = vmatpush1.msra.mxu0 0.0
      %1048 = vmatprep.subr.mxu0 0.0
      %1049 = vmatpush1.msra.mxu0 0.0
      %1050 = vmatprep.subr.mxu0 0.0
      %1051 = vmatpush1.msra.mxu0 0.0
      %1052 = vmatprep.subr.mxu0 0.0
      %1053 = vmatpush1.msra.mxu0 0.0
      %1054 = vmatprep.subr.mxu0 0.0
      %1055 = vmatpush1.msra.mxu0 0.0
      %1056 = vmatprep.subr.mxu0 0.0
      %1057 = vmatpush1.msra.mxu0 0.0
      %1058 = vmatprep.subr.mxu0 0.0
      %1059 = vmatpush1.msra.mxu0 0.0
      %1060 = vmatprep.subr.mxu0 0.0
      %1061 = vmatpush1.msra.mxu0 0.0
      %1062 = vmatprep.subr.mxu0 0.0
      %1063 = vmatpush1.msra.mxu0 0.0
      %1064 = vmatprep.subr.mxu0 0.0
      %1065 = vmatpush1.msra.mxu0 0.0
      %1066 = vmatprep.subr.mxu0 0.0
      %1067 = vmatpush1.msra.mxu0 0.0
      %1068 = vmatprep.subr.mxu0 0.0
      %1069 = vmatpush1.msra.mxu0 0.0
      %1070 = vmatprep.subr.mxu0 0.0
      %1071 = vmatpush1.msra.mxu0 0.0
      %1072 = vmatprep.subr.mxu0 0.0
      %1073 = vmatpush1.msra.mxu0 0.0
      %1074 = vmatprep.subr.mxu0 0.0
      %1075 = vmatpush1.msra.mxu0 0.0
      %1076 = vmatprep.subr.mxu0 0.0
      %1077 = vmatpush1.msra.mxu0 0.0
      %1078 = vmatprep.subr.mxu0 0.0
      %1079 = vmatpush1.msra.mxu0 0.0
      %1080 = vmatprep.subr.mxu0 0.0
      %1081 = vmatpush1.msra.mxu0 0.0
      %1082 = vmatprep.subr.mxu0 0.0
      %1083 = vmatpush1.msra.mxu0 0.0
      %1084 = vmatprep.subr.mxu0 0.0
      %1085 = vmatpush1.msra.mxu0 0.0
      %1086 = vmatprep.subr.mxu0 0.0
      %1087 = vmatpush1.msra.mxu0 0.0
      %1088 = vmatprep.subr.mxu0 0.0
      %1089 = vmatpush1.msra.mxu0 0.0
      %1090 = vmatprep.subr.mxu0 0.0
      %1091 = vmatpush1.msra.mxu0 0.0
      %1092 = vmatprep.mubr.f32.mxu0 0.0
      %v1093 = vand.u32 %v322, 4294901760
      %v1094 = vsub.f32 %v322, %v1093
      %v1095 = vand.u32 %v1094, 4294901760
      %1096 = vmatmul.mubr.f32.gmra.mrb[0].mxu0 %v1095
      %v1097 = vpop.f32.mrb[0].mxu0
      %v1098 = vadd.f32 %v1022, %v1097
      %v1099 = vpop.f32.mrb[0].mxu0
      %v1100 = vadd.f32 %v1024, %v1099
      %1101 = vdwg.mxu0
      %v1102 = vand.u32 %v307, 4294901760
      %v1103 = vsub.f32 %v307, %v1102
      %v1104 = vand.u32 %v1103, 4294901760
      %1105 = vmatprep.subr.mxu0 %v1104
      %v1106 = vand.u32 %v306, 4294901760
      %v1107 = vsub.f32 %v306, %v1106
      %v1108 = vand.u32 %v1107, 4294901760
      %1109 = vmatpush1.msra.mxu0 %v1108
      %1110 = vmatprep.subr.mxu0 0.0
      %1111 = vmatpush1.msra.mxu0 0.0
      %1112 = vmatprep.subr.mxu0 0.0
      %1113 = vmatpush1.msra.mxu0 0.0
      %1114 = vmatprep.subr.mxu0 0.0
      %1115 = vmatpush1.msra.mxu0 0.0
      %1116 = vmatprep.subr.mxu0 0.0
      %1117 = vmatpush1.msra.mxu0 0.0
      %1118 = vmatprep.subr.mxu0 0.0
      %1119 = vmatpush1.msra.mxu0 0.0
      %1120 = vmatprep.subr.mxu0 0.0
      %1121 = vmatpush1.msra.mxu0 0.0
      %1122 = vmatprep.subr.mxu0 0.0
      %1123 = vmatpush1.msra.mxu0 0.0
      %1124 = vmatprep.subr.mxu0 0.0
      %1125 = vmatpush1.msra.mxu0 0.0
      %1126 = vmatprep.subr.mxu0 0.0
      %1127 = vmatpush1.msra.mxu0 0.0
      %1128 = vmatprep.subr.mxu0 0.0
      %1129 = vmatpush1.msra.mxu0 0.0
      %1130 = vmatprep.subr.mxu0 0.0
      %1131 = vmatpush1.msra.mxu0 0.0
      %1132 = vmatprep.subr.mxu0 0.0
      %1133 = vmatpush1.msra.mxu0 0.0
      %1134 = vmatprep.subr.mxu0 0.0
      %1135 = vmatpush1.msra.mxu0 0.0
      %1136 = vmatprep.subr.mxu0 0.0
      %1137 = vmatpush1.msra.mxu0 0.0
      %1138 = vmatprep.subr.mxu0 0.0
      %1139 = vmatpush1.msra.mxu0 0.0
      %1140 = vmatprep.subr.mxu0 0.0
      %1141 = vmatpush1.msra.mxu0 0.0
      %1142 = vmatprep.subr.mxu0 0.0
      %1143 = vmatpush1.msra.mxu0 0.0
      %1144 = vmatprep.subr.mxu0 0.0
      %1145 = vmatpush1.msra.mxu0 0.0
      %1146 = vmatprep.subr.mxu0 0.0
      %1147 = vmatpush1.msra.mxu0 0.0
      %1148 = vmatprep.subr.mxu0 0.0
      %1149 = vmatpush1.msra.mxu0 0.0
      %1150 = vmatprep.subr.mxu0 0.0
      %1151 = vmatpush1.msra.mxu0 0.0
      %1152 = vmatprep.subr.mxu0 0.0
      %1153 = vmatpush1.msra.mxu0 0.0
      %1154 = vmatprep.subr.mxu0 0.0
      %1155 = vmatpush1.msra.mxu0 0.0
      %1156 = vmatprep.subr.mxu0 0.0
      %1157 = vmatpush1.msra.mxu0 0.0
      %1158 = vmatprep.subr.mxu0 0.0
      %1159 = vmatpush1.msra.mxu0 0.0
      %1160 = vmatprep.subr.mxu0 0.0
      %1161 = vmatpush1.msra.mxu0 0.0
      %1162 = vmatprep.subr.mxu0 0.0
      %1163 = vmatpush1.msra.mxu0 0.0
      %1164 = vmatprep.subr.mxu0 0.0
      %1165 = vmatpush1.msra.mxu0 0.0
      %1166 = vmatprep.subr.mxu0 0.0
      %1167 = vmatpush1.msra.mxu0 0.0
      %1168 = vmatprep.subr.mxu0 0.0
      %1169 = vmatpush1.msra.mxu0 0.0
      %1170 = vmatprep.subr.mxu0 0.0
      %1171 = vmatpush1.msra.mxu0 0.0
      %1172 = vmatprep.mubr.f32.mxu0 0.0
      %v1173 = vand.u32 %v322, 4294901760
      %1174 = vmatmul.mubr.f32.gmra.mrb[0].mxu0 %v1173
      %v1175 = vpop.f32.mrb[0].mxu0
      %v1176 = vadd.f32 %v1098, %v1175
      %v1177 = vpop.f32.mrb[0].mxu0
      %v1178 = vadd.f32 %v1100, %v1177
      %1179 = vdwg.mxu0
      %v1180 = vand.u32 %v307, 4294901760
      %1181 = vmatprep.subr.mxu0 %v1180
      %v1182 = vand.u32 %v306, 4294901760
      %1183 = vmatpush1.msra.mxu0 %v1182
      %1184 = vmatprep.subr.mxu0 0.0
      %1185 = vmatpush1.msra.mxu0 0.0
      %1186 = vmatprep.subr.mxu0 0.0
      %1187 = vmatpush1.msra.mxu0 0.0
      %1188 = vmatprep.subr.mxu0 0.0
      %1189 = vmatpush1.msra.mxu0 0.0
      %1190 = vmatprep.subr.mxu0 0.0
      %1191 = vmatpush1.msra.mxu0 0.0
      %1192 = vmatprep.subr.mxu0 0.0
      %1193 = vmatpush1.msra.mxu0 0.0
      %1194 = vmatprep.subr.mxu0 0.0
      %1195 = vmatpush1.msra.mxu0 0.0
      %1196 = vmatprep.subr.mxu0 0.0
      %1197 = vmatpush1.msra.mxu0 0.0
      %1198 = vmatprep.subr.mxu0 0.0
      %1199 = vmatpush1.msra.mxu0 0.0
      %1200 = vmatprep.subr.mxu0 0.0
      %1201 = vmatpush1.msra.mxu0 0.0
      %1202 = vmatprep.subr.mxu0 0.0
      %1203 = vmatpush1.msra.mxu0 0.0
      %1204 = vmatprep.subr.mxu0 0.0
      %1205 = vmatpush1.msra.mxu0 0.0
      %1206 = vmatprep.subr.mxu0 0.0
      %1207 = vmatpush1.msra.mxu0 0.0
      %1208 = vmatprep.subr.mxu0 0.0
      %1209 = vmatpush1.msra.mxu0 0.0
      %1210 = vmatprep.subr.mxu0 0.0
      %1211 = vmatpush1.msra.mxu0 0.0
      %1212 = vmatprep.subr.mxu0 0.0
      %1213 = vmatpush1.msra.mxu0 0.0
      %1214 = vmatprep.subr.mxu0 0.0
      %1215 = vmatpush1.msra.mxu0 0.0
      %1216 = vmatprep.subr.mxu0 0.0
      %1217 = vmatpush1.msra.mxu0 0.0
      %1218 = vmatprep.subr.mxu0 0.0
      %1219 = vmatpush1.msra.mxu0 0.0
      %1220 = vmatprep.subr.mxu0 0.0
      %1221 = vmatpush1.msra.mxu0 0.0
      %1222 = vmatprep.subr.mxu0 0.0
      %1223 = vmatpush1.msra.mxu0 0.0
      %1224 = vmatprep.subr.mxu0 0.0
      %1225 = vmatpush1.msra.mxu0 0.0
      %1226 = vmatprep.subr.mxu0 0.0
      %1227 = vmatpush1.msra.mxu0 0.0
      %1228 = vmatprep.subr.mxu0 0.0
      %1229 = vmatpush1.msra.mxu0 0.0
      %1230 = vmatprep.subr.mxu0 0.0
      %1231 = vmatpush1.msra.mxu0 0.0
      %1232 = vmatprep.subr.mxu0 0.0
      %1233 = vmatpush1.msra.mxu0 0.0
      %1234 = vmatprep.subr.mxu0 0.0
      %1235 = vmatpush1.msra.mxu0 0.0
      %1236 = vmatprep.subr.mxu0 0.0
      %1237 = vmatpush1.msra.mxu0 0.0
      %1238 = vmatprep.subr.mxu0 0.0
      %1239 = vmatpush1.msra.mxu0 0.0
      %1240 = vmatprep.subr.mxu0 0.0
      %1241 = vmatpush1.msra.mxu0 0.0
      %1242 = vmatprep.subr.mxu0 0.0
      %1243 = vmatpush1.msra.mxu0 0.0
      %1244 = vmatprep.subr.mxu0 0.0
      %1245 = vmatpush1.msra.mxu0 0.0
      %1246 = vmatprep.mubr.f32.mxu0 0.0
      %v1247 = vand.u32 %v322, 4294901760
      %1248 = vmatmul.mubr.f32.gmra.mrb[0].mxu0 %v1247
      %v1249 = vpop.f32.mrb[0].mxu0
      %v1250 = vadd.f32 %v1176, %v1249
      %v1251 = vpop.f32.mrb[0].mxu0
      %v1252 = vadd.f32 %v1178, %v1251
      %1253 = vdwg.mxu0
      %v1254 = vand.u32 %v309, 4294901760
      %1255 = vmatprep.subr.mxu0 %v1254
      %v1256 = vand.u32 %v308, 4294901760
      %1257 = vmatpush1.msra.mxu0 %v1256
      %1258 = vmatprep.subr.mxu0 0.0
      %1259 = vmatpush1.msra.mxu0 0.0
      %1260 = vmatprep.subr.mxu0 0.0
      %1261 = vmatpush1.msra.mxu0 0.0
      %1262 = vmatprep.subr.mxu0 0.0
      %1263 = vmatpush1.msra.mxu0 0.0
      %1264 = vmatprep.subr.mxu0 0.0
      %1265 = vmatpush1.msra.mxu0 0.0
      %1266 = vmatprep.subr.mxu0 0.0
      %1267 = vmatpush1.msra.mxu0 0.0
      %1268 = vmatprep.subr.mxu0 0.0
      %1269 = vmatpush1.msra.mxu0 0.0
      %1270 = vmatprep.subr.mxu0 0.0
      %1271 = vmatpush1.msra.mxu0 0.0
      %1272 = vmatprep.subr.mxu0 0.0
      %1273 = vmatpush1.msra.mxu0 0.0
      %1274 = vmatprep.subr.mxu0 0.0
      %1275 = vmatpush1.msra.mxu0 0.0
      %1276 = vmatprep.subr.mxu0 0.0
      %1277 = vmatpush1.msra.mxu0 0.0
      %1278 = vmatprep.subr.mxu0 0.0
      %1279 = vmatpush1.msra.mxu0 0.0
      %1280 = vmatprep.subr.mxu0 0.0
      %1281 = vmatpush1.msra.mxu0 0.0
      %1282 = vmatprep.subr.mxu0 0.0
      %1283 = vmatpush1.msra.mxu0 0.0
      %1284 = vmatprep.subr.mxu0 0.0
      %1285 = vmatpush1.msra.mxu0 0.0
      %1286 = vmatprep.subr.mxu0 0.0
      %1287 = vmatpush1.msra.mxu0 0.0
      %1288 = vmatprep.subr.mxu0 0.0
      %1289 = vmatpush1.msra.mxu0 0.0
      %1290 = vmatprep.subr.mxu0 0.0
      %1291 = vmatpush1.msra.mxu0 0.0
      %1292 = vmatprep.subr.mxu0 0.0
      %1293 = vmatpush1.msra.mxu0 0.0
      %1294 = vmatprep.subr.mxu0 0.0
      %1295 = vmatpush1.msra.mxu0 0.0
      %1296 = vmatprep.subr.mxu0 0.0
      %1297 = vmatpush1.msra.mxu0 0.0
      %1298 = vmatprep.subr.mxu0 0.0
      %1299 = vmatpush1.msra.mxu0 0.0
      %1300 = vmatprep.subr.mxu0 0.0
      %1301 = vmatpush1.msra.mxu0 0.0
      %1302 = vmatprep.subr.mxu0 0.0
      %1303 = vmatpush1.msra.mxu0 0.0
      %1304 = vmatprep.subr.mxu0 0.0
      %1305 = vmatpush1.msra.mxu0 0.0
      %1306 = vmatprep.subr.mxu0 0.0
      %1307 = vmatpush1.msra.mxu0 0.0
      %1308 = vmatprep.subr.mxu0 0.0
      %1309 = vmatpush1.msra.mxu0 0.0
      %1310 = vmatprep.subr.mxu0 0.0
      %1311 = vmatpush1.msra.mxu0 0.0
      %1312 = vmatprep.subr.mxu0 0.0
      %1313 = vmatpush1.msra.mxu0 0.0
      %1314 = vmatprep.subr.mxu0 0.0
      %1315 = vmatpush1.msra.mxu0 0.0
      %1316 = vmatprep.subr.mxu0 0.0
      %1317 = vmatpush1.msra.mxu0 0.0
      %1318 = vmatprep.subr.mxu0 0.0
      %1319 = vmatpush1.msra.mxu0 0.0
      %1320 = vmatprep.mubr.f32.mxu0 0.0
      %v1321 = vand.u32 %v322, 4294901760
      %v1322 = vsub.f32 %v322, %v1321
      %v1323 = vand.u32 %v1322, 4294901760
      %v1324 = vsub.f32 %v1322, %v1323
      %v1325 = vand.u32 %v1324, 4294901760
      %1326 = vmatmul.mubr.f32.gmra.mrb[0].mxu0 %v1325
      %v1327 = vpop.f32.mrb[0].mxu0
      %v1328 = vadd.f32 %v318, %v1327
      %v1329 = vpop.f32.mrb[0].mxu0
      %v1330 = vadd.f32 %v318, %v1329
      %1331 = vdwg.mxu0
      %v1332 = vand.u32 %v309, 4294901760
      %v1333 = vsub.f32 %v309, %v1332
      %v1334 = vand.u32 %v1333, 4294901760
      %v1335 = vsub.f32 %v1333, %v1334
      %v1336 = vand.u32 %v1335, 4294901760
      %1337 = vmatprep.subr.mxu0 %v1336
      %v1338 = vand.u32 %v308, 4294901760
      %v1339 = vsub.f32 %v308, %v1338
      %v1340 = vand.u32 %v1339, 4294901760
      %v1341 = vsub.f32 %v1339, %v1340
      %v1342 = vand.u32 %v1341, 4294901760
      %1343 = vmatpush1.msra.mxu0 %v1342
      %1344 = vmatprep.subr.mxu0 0.0
      %1345 = vmatpush1.msra.mxu0 0.0
      %1346 = vmatprep.subr.mxu0 0.0
      %1347 = vmatpush1.msra.mxu0 0.0
      %1348 = vmatprep.subr.mxu0 0.0
      %1349 = vmatpush1.msra.mxu0 0.0
      %1350 = vmatprep.subr.mxu0 0.0
      %1351 = vmatpush1.msra.mxu0 0.0
      %1352 = vmatprep.subr.mxu0 0.0
      %1353 = vmatpush1.msra.mxu0 0.0
      %1354 = vmatprep.subr.mxu0 0.0
      %1355 = vmatpush1.msra.mxu0 0.0
      %1356 = vmatprep.subr.mxu0 0.0
      %1357 = vmatpush1.msra.mxu0 0.0
      %1358 = vmatprep.subr.mxu0 0.0
      %1359 = vmatpush1.msra.mxu0 0.0
      %1360 = vmatprep.subr.mxu0 0.0
      %1361 = vmatpush1.msra.mxu0 0.0
      %1362 = vmatprep.subr.mxu0 0.0
      %1363 = vmatpush1.msra.mxu0 0.0
      %1364 = vmatprep.subr.mxu0 0.0
      %1365 = vmatpush1.msra.mxu0 0.0
      %1366 = vmatprep.subr.mxu0 0.0
      %1367 = vmatpush1.msra.mxu0 0.0
      %1368 = vmatprep.subr.mxu0 0.0
      %1369 = vmatpush1.msra.mxu0 0.0
      %1370 = vmatprep.subr.mxu0 0.0
      %1371 = vmatpush1.msra.mxu0 0.0
      %1372 = vmatprep.subr.mxu0 0.0
      %1373 = vmatpush1.msra.mxu0 0.0
      %1374 = vmatprep.subr.mxu0 0.0
      %1375 = vmatpush1.msra.mxu0 0.0
      %1376 = vmatprep.subr.mxu0 0.0
      %1377 = vmatpush1.msra.mxu0 0.0
      %1378 = vmatprep.subr.mxu0 0.0
      %1379 = vmatpush1.msra.mxu0 0.0
      %1380 = vmatprep.subr.mxu0 0.0
      %1381 = vmatpush1.msra.mxu0 0.0
      %1382 = vmatprep.subr.mxu0 0.0
      %1383 = vmatpush1.msra.mxu0 0.0
      %1384 = vmatprep.subr.mxu0 0.0
      %1385 = vmatpush1.msra.mxu0 0.0
      %1386 = vmatprep.subr.mxu0 0.0
      %1387 = vmatpush1.msra.mxu0 0.0
      %1388 = vmatprep.subr.mxu0 0.0
      %1389 = vmatpush1.msra.mxu0 0.0
      %1390 = vmatprep.subr.mxu0 0.0
      %1391 = vmatpush1.msra.mxu0 0.0
      %1392 = vmatprep.subr.mxu0 0.0
      %1393 = vmatpush1.msra.mxu0 0.0
      %1394 = vmatprep.subr.mxu0 0.0
      %1395 = vmatpush1.msra.mxu0 0.0
      %1396 = vmatprep.subr.mxu0 0.0
      %1397 = vmatpush1.msra.mxu0 0.0
      %1398 = vmatprep.subr.mxu0 0.0
      %1399 = vmatpush1.msra.mxu0 0.0
      %1400 = vmatprep.subr.mxu0 0.0
      %1401 = vmatpush1.msra.mxu0 0.0
      %1402 = vmatprep.subr.mxu0 0.0
      %1403 = vmatpush1.msra.mxu0 0.0
      %1404 = vmatprep.subr.mxu0 0.0
      %1405 = vmatpush1.msra.mxu0 0.0
      %1406 = vmatprep.mubr.f32.mxu0 0.0
      %v1407 = vand.u32 %v322, 4294901760
      %1408 = vmatmul.mubr.f32.gmra.mrb[0].mxu0 %v1407
      %v1409 = vpop.f32.mrb[0].mxu0
      %v1410 = vadd.f32 %v1328, %v1409
      %v1411 = vpop.f32.mrb[0].mxu0
      %v1412 = vadd.f32 %v1330, %v1411
      %1413 = vdwg.mxu0
      %v1414 = vand.u32 %v309, 4294901760
      %v1415 = vsub.f32 %v309, %v1414
      %1416 = vmatprep.subr.mxu0 %v1415
      %v1417 = vand.u32 %v308, 4294901760
      %v1418 = vsub.f32 %v308, %v1417
      %1419 = vmatpush1.msra.mxu0 %v1418
      %1420 = vmatprep.subr.mxu0 0.0
      %1421 = vmatpush1.msra.mxu0 0.0
      %1422 = vmatprep.subr.mxu0 0.0
      %1423 = vmatpush1.msra.mxu0 0.0
      %1424 = vmatprep.subr.mxu0 0.0
      %1425 = vmatpush1.msra.mxu0 0.0
      %1426 = vmatprep.subr.mxu0 0.0
      %1427 = vmatpush1.msra.mxu0 0.0
      %1428 = vmatprep.subr.mxu0 0.0
      %1429 = vmatpush1.msra.mxu0 0.0
      %1430 = vmatprep.subr.mxu0 0.0
      %1431 = vmatpush1.msra.mxu0 0.0
      %1432 = vmatprep.subr.mxu0 0.0
      %1433 = vmatpush1.msra.mxu0 0.0
      %1434 = vmatprep.subr.mxu0 0.0
      %1435 = vmatpush1.msra.mxu0 0.0
      %1436 = vmatprep.subr.mxu0 0.0
      %1437 = vmatpush1.msra.mxu0 0.0
      %1438 = vmatprep.subr.mxu0 0.0
      %1439 = vmatpush1.msra.mxu0 0.0
      %1440 = vmatprep.subr.mxu0 0.0
      %1441 = vmatpush1.msra.mxu0 0.0
      %1442 = vmatprep.subr.mxu0 0.0
      %1443 = vmatpush1.msra.mxu0 0.0
      %1444 = vmatprep.subr.mxu0 0.0
      %1445 = vmatpush1.msra.mxu0 0.0
      %1446 = vmatprep.subr.mxu0 0.0
      %1447 = vmatpush1.msra.mxu0 0.0
      %1448 = vmatprep.subr.mxu0 0.0
      %1449 = vmatpush1.msra.mxu0 0.0
      %1450 = vmatprep.subr.mxu0 0.0
      %1451 = vmatpush1.msra.mxu0 0.0
      %1452 = vmatprep.subr.mxu0 0.0
      %1453 = vmatpush1.msra.mxu0 0.0
      %1454 = vmatprep.subr.mxu0 0.0
      %1455 = vmatpush1.msra.mxu0 0.0
      %1456 = vmatprep.subr.mxu0 0.0
      %1457 = vmatpush1.msra.mxu0 0.0
      %1458 = vmatprep.subr.mxu0 0.0
      %1459 = vmatpush1.msra.mxu0 0.0
      %1460 = vmatprep.subr.mxu0 0.0
      %1461 = vmatpush1.msra.mxu0 0.0
      %1462 = vmatprep.subr.mxu0 0.0
      %1463 = vmatpush1.msra.mxu0 0.0
      %1464 = vmatprep.subr.mxu0 0.0
      %1465 = vmatpush1.msra.mxu0 0.0
      %1466 = vmatprep.subr.mxu0 0.0
      %1467 = vmatpush1.msra.mxu0 0.0
      %1468 = vmatprep.subr.mxu0 0.0
      %1469 = vmatpush1.msra.mxu0 0.0
      %1470 = vmatprep.subr.mxu0 0.0
      %1471 = vmatpush1.msra.mxu0 0.0
      %1472 = vmatprep.subr.mxu0 0.0
      %1473 = vmatpush1.msra.mxu0 0.0
      %1474 = vmatprep.subr.mxu0 0.0
      %1475 = vmatpush1.msra.mxu0 0.0
      %1476 = vmatprep.subr.mxu0 0.0
      %1477 = vmatpush1.msra.mxu0 0.0
      %1478 = vmatprep.subr.mxu0 0.0
      %1479 = vmatpush1.msra.mxu0 0.0
      %1480 = vmatprep.subr.mxu0 0.0
      %1481 = vmatpush1.msra.mxu0 0.0
      %1482 = vmatprep.mubr.f32.mxu0 0.0
      %v1483 = vand.u32 %v322, 4294901760
      %v1484 = vsub.f32 %v322, %v1483
      %1485 = vmatmul.mubr.f32.gmra.mrb[0].mxu0 %v1484
      %v1486 = vpop.f32.mrb[0].mxu0
      %v1487 = vadd.f32 %v1410, %v1486
      %v1488 = vpop.f32.mrb[0].mxu0
      %v1489 = vadd.f32 %v1412, %v1488
      %1490 = vdwg.mxu0
      %v1491 = vand.u32 %v309, 4294901760
      %1492 = vmatprep.subr.mxu0 %v1491
      %v1493 = vand.u32 %v308, 4294901760
      %1494 = vmatpush1.msra.mxu0 %v1493
      %1495 = vmatprep.subr.mxu0 0.0
      %1496 = vmatpush1.msra.mxu0 0.0
      %1497 = vmatprep.subr.mxu0 0.0
      %1498 = vmatpush1.msra.mxu0 0.0
      %1499 = vmatprep.subr.mxu0 0.0
      %1500 = vmatpush1.msra.mxu0 0.0
      %1501 = vmatprep.subr.mxu0 0.0
      %1502 = vmatpush1.msra.mxu0 0.0
      %1503 = vmatprep.subr.mxu0 0.0
      %1504 = vmatpush1.msra.mxu0 0.0
      %1505 = vmatprep.subr.mxu0 0.0
      %1506 = vmatpush1.msra.mxu0 0.0
      %1507 = vmatprep.subr.mxu0 0.0
      %1508 = vmatpush1.msra.mxu0 0.0
      %1509 = vmatprep.subr.mxu0 0.0
      %1510 = vmatpush1.msra.mxu0 0.0
      %1511 = vmatprep.subr.mxu0 0.0
      %1512 = vmatpush1.msra.mxu0 0.0
      %1513 = vmatprep.subr.mxu0 0.0
      %1514 = vmatpush1.msra.mxu0 0.0
      %1515 = vmatprep.subr.mxu0 0.0
      %1516 = vmatpush1.msra.mxu0 0.0
      %1517 = vmatprep.subr.mxu0 0.0
      %1518 = vmatpush1.msra.mxu0 0.0
      %1519 = vmatprep.subr.mxu0 0.0
      %1520 = vmatpush1.msra.mxu0 0.0
      %1521 = vmatprep.subr.mxu0 0.0
      %1522 = vmatpush1.msra.mxu0 0.0
      %1523 = vmatprep.subr.mxu0 0.0
      %1524 = vmatpush1.msra.mxu0 0.0
      %1525 = vmatprep.subr.mxu0 0.0
      %1526 = vmatpush1.msra.mxu0 0.0
      %1527 = vmatprep.subr.mxu0 0.0
      %1528 = vmatpush1.msra.mxu0 0.0
      %1529 = vmatprep.subr.mxu0 0.0
      %1530 = vmatpush1.msra.mxu0 0.0
      %1531 = vmatprep.subr.mxu0 0.0
      %1532 = vmatpush1.msra.mxu0 0.0
      %1533 = vmatprep.subr.mxu0 0.0
      %1534 = vmatpush1.msra.mxu0 0.0
      %1535 = vmatprep.subr.mxu0 0.0
      %1536 = vmatpush1.msra.mxu0 0.0
      %1537 = vmatprep.subr.mxu0 0.0
      %1538 = vmatpush1.msra.mxu0 0.0
      %1539 = vmatprep.subr.mxu0 0.0
      %1540 = vmatpush1.msra.mxu0 0.0
      %1541 = vmatprep.subr.mxu0 0.0
      %1542 = vmatpush1.msra.mxu0 0.0
      %1543 = vmatprep.subr.mxu0 0.0
      %1544 = vmatpush1.msra.mxu0 0.0
      %1545 = vmatprep.subr.mxu0 0.0
      %1546 = vmatpush1.msra.mxu0 0.0
      %1547 = vmatprep.subr.mxu0 0.0
      %1548 = vmatpush1.msra.mxu0 0.0
      %1549 = vmatprep.subr.mxu0 0.0
      %1550 = vmatpush1.msra.mxu0 0.0
      %1551 = vmatprep.subr.mxu0 0.0
      %1552 = vmatpush1.msra.mxu0 0.0
      %1553 = vmatprep.subr.mxu0 0.0
      %1554 = vmatpush1.msra.mxu0 0.0
      %1555 = vmatprep.subr.mxu0 0.0
      %1556 = vmatpush1.msra.mxu0 0.0
      %1557 = vmatprep.mubr.f32.mxu0 0.0
      %v1558 = vand.u32 %v322, 4294901760
      %v1559 = vsub.f32 %v322, %v1558
      %v1560 = vand.u32 %v1559, 4294901760
      %1561 = vmatmul.mubr.f32.gmra.mrb[0].mxu0 %v1560
      %v1562 = vpop.f32.mrb[0].mxu0
      %v1563 = vadd.f32 %v1487, %v1562
      %v1564 = vpop.f32.mrb[0].mxu0
      %v1565 = vadd.f32 %v1489, %v1564
      %1566 = vdwg.mxu0
      %v1567 = vand.u32 %v309, 4294901760
      %v1568 = vsub.f32 %v309, %v1567
      %v1569 = vand.u32 %v1568, 4294901760
      %1570 = vmatprep.subr.mxu0 %v1569
      %v1571 = vand.u32 %v308, 4294901760
      %v1572 = vsub.f32 %v308, %v1571
      %v1573 = vand.u32 %v1572, 4294901760
      %1574 = vmatpush1.msra.mxu0 %v1573
      %1575 = vmatprep.subr.mxu0 0.0
      %1576 = vmatpush1.msra.mxu0 0.0
      %1577 = vmatprep.subr.mxu0 0.0
      %1578 = vmatpush1.msra.mxu0 0.0
      %1579 = vmatprep.subr.mxu0 0.0
      %1580 = vmatpush1.msra.mxu0 0.0
      %1581 = vmatprep.subr.mxu0 0.0
      %1582 = vmatpush1.msra.mxu0 0.0
      %1583 = vmatprep.subr.mxu0 0.0
      %1584 = vmatpush1.msra.mxu0 0.0
      %1585 = vmatprep.subr.mxu0 0.0
      %1586 = vmatpush1.msra.mxu0 0.0
      %1587 = vmatprep.subr.mxu0 0.0
      %1588 = vmatpush1.msra.mxu0 0.0
      %1589 = vmatprep.subr.mxu0 0.0
      %1590 = vmatpush1.msra.mxu0 0.0
      %1591 = vmatprep.subr.mxu0 0.0
      %1592 = vmatpush1.msra.mxu0 0.0
      %1593 = vmatprep.subr.mxu0 0.0
      %1594 = vmatpush1.msra.mxu0 0.0
      %1595 = vmatprep.subr.mxu0 0.0
      %1596 = vmatpush1.msra.mxu0 0.0
      %1597 = vmatprep.subr.mxu0 0.0
      %1598 = vmatpush1.msra.mxu0 0.0
      %1599 = vmatprep.subr.mxu0 0.0
      %1600 = vmatpush1.msra.mxu0 0.0
      %1601 = vmatprep.subr.mxu0 0.0
      %1602 = vmatpush1.msra.mxu0 0.0
      %1603 = vmatprep.subr.mxu0 0.0
      %1604 = vmatpush1.msra.mxu0 0.0
      %1605 = vmatprep.subr.mxu0 0.0
      %1606 = vmatpush1.msra.mxu0 0.0
      %1607 = vmatprep.subr.mxu0 0.0
      %1608 = vmatpush1.msra.mxu0 0.0
      %1609 = vmatprep.subr.mxu0 0.0
      %1610 = vmatpush1.msra.mxu0 0.0
      %1611 = vmatprep.subr.mxu0 0.0
      %1612 = vmatpush1.msra.mxu0 0.0
      %1613 = vmatprep.subr.mxu0 0.0
      %1614 = vmatpush1.msra.mxu0 0.0
      %1615 = vmatprep.subr.mxu0 0.0
      %1616 = vmatpush1.msra.mxu0 0.0
      %1617 = vmatprep.subr.mxu0 0.0
      %1618 = vmatpush1.msra.mxu0 0.0
      %1619 = vmatprep.subr.mxu0 0.0
      %1620 = vmatpush1.msra.mxu0 0.0
      %1621 = vmatprep.subr.mxu0 0.0
      %1622 = vmatpush1.msra.mxu0 0.0
      %1623 = vmatprep.subr.mxu0 0.0
      %1624 = vmatpush1.msra.mxu0 0.0
      %1625 = vmatprep.subr.mxu0 0.0
      %1626 = vmatpush1.msra.mxu0 0.0
      %1627 = vmatprep.subr.mxu0 0.0
      %1628 = vmatpush1.msra.mxu0 0.0
      %1629 = vmatprep.subr.mxu0 0.0
      %1630 = vmatpush1.msra.mxu0 0.0
      %1631 = vmatprep.subr.mxu0 0.0
      %1632 = vmatpush1.msra.mxu0 0.0
      %1633 = vmatprep.subr.mxu0 0.0
      %1634 = vmatpush1.msra.mxu0 0.0
      %1635 = vmatprep.subr.mxu0 0.0
      %1636 = vmatpush1.msra.mxu0 0.0
      %1637 = vmatprep.mubr.f32.mxu0 0.0
      %v1638 = vand.u32 %v322, 4294901760
      %1639 = vmatmul.mubr.f32.gmra.mrb[0].mxu0 %v1638
      %v1640 = vpop.f32.mrb[0].mxu0
      %v1641 = vadd.f32 %v1563, %v1640
      %v1642 = vpop.f32.mrb[0].mxu0
      %v1643 = vadd.f32 %v1565, %v1642
      %1644 = vdwg.mxu0
      %v1645 = vand.u32 %v309, 4294901760
      %1646 = vmatprep.subr.mxu0 %v1645
      %v1647 = vand.u32 %v308, 4294901760
      %1648 = vmatpush1.msra.mxu0 %v1647
      %1649 = vmatprep.subr.mxu0 0.0
      %1650 = vmatpush1.msra.mxu0 0.0
      %1651 = vmatprep.subr.mxu0 0.0
      %1652 = vmatpush1.msra.mxu0 0.0
      %1653 = vmatprep.subr.mxu0 0.0
      %1654 = vmatpush1.msra.mxu0 0.0
      %1655 = vmatprep.subr.mxu0 0.0
      %1656 = vmatpush1.msra.mxu0 0.0
      %1657 = vmatprep.subr.mxu0 0.0
      %1658 = vmatpush1.msra.mxu0 0.0
      %1659 = vmatprep.subr.mxu0 0.0
      %1660 = vmatpush1.msra.mxu0 0.0
      %1661 = vmatprep.subr.mxu0 0.0
      %1662 = vmatpush1.msra.mxu0 0.0
      %1663 = vmatprep.subr.mxu0 0.0
      %1664 = vmatpush1.msra.mxu0 0.0
      %1665 = vmatprep.subr.mxu0 0.0
      %1666 = vmatpush1.msra.mxu0 0.0
      %1667 = vmatprep.subr.mxu0 0.0
      %1668 = vmatpush1.msra.mxu0 0.0
      %1669 = vmatprep.subr.mxu0 0.0
      %1670 = vmatpush1.msra.mxu0 0.0
      %1671 = vmatprep.subr.mxu0 0.0
      %1672 = vmatpush1.msra.mxu0 0.0
      %1673 = vmatprep.subr.mxu0 0.0
      %1674 = vmatpush1.msra.mxu0 0.0
      %1675 = vmatprep.subr.mxu0 0.0
      %1676 = vmatpush1.msra.mxu0 0.0
      %1677 = vmatprep.subr.mxu0 0.0
      %1678 = vmatpush1.msra.mxu0 0.0
      %1679 = vmatprep.subr.mxu0 0.0
      %1680 = vmatpush1.msra.mxu0 0.0
      %1681 = vmatprep.subr.mxu0 0.0
      %1682 = vmatpush1.msra.mxu0 0.0
      %1683 = vmatprep.subr.mxu0 0.0
      %1684 = vmatpush1.msra.mxu0 0.0
      %1685 = vmatprep.subr.mxu0 0.0
      %1686 = vmatpush1.msra.mxu0 0.0
      %1687 = vmatprep.subr.mxu0 0.0
      %1688 = vmatpush1.msra.mxu0 0.0
      %1689 = vmatprep.subr.mxu0 0.0
      %1690 = vmatpush1.msra.mxu0 0.0
      %1691 = vmatprep.subr.mxu0 0.0
      %1692 = vmatpush1.msra.mxu0 0.0
      %1693 = vmatprep.subr.mxu0 0.0
      %1694 = vmatpush1.msra.mxu0 0.0
      %1695 = vmatprep.subr.mxu0 0.0
      %1696 = vmatpush1.msra.mxu0 0.0
      %1697 = vmatprep.subr.mxu0 0.0
      %1698 = vmatpush1.msra.mxu0 0.0
      %1699 = vmatprep.subr.mxu0 0.0
      %1700 = vmatpush1.msra.mxu0 0.0
      %1701 = vmatprep.subr.mxu0 0.0
      %1702 = vmatpush1.msra.mxu0 0.0
      %1703 = vmatprep.subr.mxu0 0.0
      %1704 = vmatpush1.msra.mxu0 0.0
      %1705 = vmatprep.subr.mxu0 0.0
      %1706 = vmatpush1.msra.mxu0 0.0
      %1707 = vmatprep.subr.mxu0 0.0
      %1708 = vmatpush1.msra.mxu0 0.0
      %1709 = vmatprep.subr.mxu0 0.0
      %1710 = vmatpush1.msra.mxu0 0.0
      %1711 = vmatprep.mubr.f32.mxu0 0.0
      %v1712 = vand.u32 %v322, 4294901760
      %1713 = vmatmul.mubr.f32.gmra.mrb[0].mxu0 %v1712
      %v1714 = vpop.f32.mrb[0].mxu0
      %v1715 = vadd.f32 %v1641, %v1714
      %v1716 = vpop.f32.mrb[0].mxu0
      %v1717 = vadd.f32 %v1643, %v1716
      %1718 = vdwg.mxu0
      %v1719 = vand.u32 %v311, 4294901760
      %1720 = vmatprep.subr.mxu0 %v1719
      %v1721 = vand.u32 %v310, 4294901760
      %1722 = vmatpush1.msra.mxu0 %v1721
      %1723 = vmatprep.subr.mxu0 0.0
      %1724 = vmatpush1.msra.mxu0 0.0
      %1725 = vmatprep.subr.mxu0 0.0
      %1726 = vmatpush1.msra.mxu0 0.0
      %1727 = vmatprep.subr.mxu0 0.0
      %1728 = vmatpush1.msra.mxu0 0.0
      %1729 = vmatprep.subr.mxu0 0.0
      %1730 = vmatpush1.msra.mxu0 0.0
      %1731 = vmatprep.subr.mxu0 0.0
      %1732 = vmatpush1.msra.mxu0 0.0
      %1733 = vmatprep.subr.mxu0 0.0
      %1734 = vmatpush1.msra.mxu0 0.0
      %1735 = vmatprep.subr.mxu0 0.0
      %1736 = vmatpush1.msra.mxu0 0.0
      %1737 = vmatprep.subr.mxu0 0.0
      %1738 = vmatpush1.msra.mxu0 0.0
      %1739 = vmatprep.subr.mxu0 0.0
      %1740 = vmatpush1.msra.mxu0 0.0
      %1741 = vmatprep.subr.mxu0 0.0
      %1742 = vmatpush1.msra.mxu0 0.0
      %1743 = vmatprep.subr.mxu0 0.0
      %1744 = vmatpush1.msra.mxu0 0.0
      %1745 = vmatprep.subr.mxu0 0.0
      %1746 = vmatpush1.msra.mxu0 0.0
      %1747 = vmatprep.subr.mxu0 0.0
      %1748 = vmatpush1.msra.mxu0 0.0
      %1749 = vmatprep.subr.mxu0 0.0
      %1750 = vmatpush1.msra.mxu0 0.0
      %1751 = vmatprep.subr.mxu0 0.0
      %1752 = vmatpush1.msra.mxu0 0.0
      %1753 = vmatprep.subr.mxu0 0.0
      %1754 = vmatpush1.msra.mxu0 0.0
      %1755 = vmatprep.subr.mxu0 0.0
      %1756 = vmatpush1.msra.mxu0 0.0
      %1757 = vmatprep.subr.mxu0 0.0
      %1758 = vmatpush1.msra.mxu0 0.0
      %1759 = vmatprep.subr.mxu0 0.0
      %1760 = vmatpush1.msra.mxu0 0.0
      %1761 = vmatprep.subr.mxu0 0.0
      %1762 = vmatpush1.msra.mxu0 0.0
      %1763 = vmatprep.subr.mxu0 0.0
      %1764 = vmatpush1.msra.mxu0 0.0
      %1765 = vmatprep.subr.mxu0 0.0
      %1766 = vmatpush1.msra.mxu0 0.0
      %1767 = vmatprep.subr.mxu0 0.0
      %1768 = vmatpush1.msra.mxu0 0.0
      %1769 = vmatprep.subr.mxu0 0.0
      %1770 = vmatpush1.msra.mxu0 0.0
      %1771 = vmatprep.subr.mxu0 0.0
      %1772 = vmatpush1.msra.mxu0 0.0
      %1773 = vmatprep.subr.mxu0 0.0
      %1774 = vmatpush1.msra.mxu0 0.0
      %1775 = vmatprep.subr.mxu0 0.0
      %1776 = vmatpush1.msra.mxu0 0.0
      %1777 = vmatprep.subr.mxu0 0.0
      %1778 = vmatpush1.msra.mxu0 0.0
      %1779 = vmatprep.subr.mxu0 0.0
      %1780 = vmatpush1.msra.mxu0 0.0
      %1781 = vmatprep.subr.mxu0 0.0
      %1782 = vmatpush1.msra.mxu0 0.0
      %1783 = vmatprep.subr.mxu0 0.0
      %1784 = vmatpush1.msra.mxu0 0.0
      %1785 = vmatprep.mubr.f32.mxu0 0.0
      %v1786 = vand.u32 %v322, 4294901760
      %v1787 = vsub.f32 %v322, %v1786
      %v1788 = vand.u32 %v1787, 4294901760
      %v1789 = vsub.f32 %v1787, %v1788
      %v1790 = vand.u32 %v1789, 4294901760
      %1791 = vmatmul.mubr.f32.gmra.mrb[0].mxu0 %v1790
      %v1792 = vpop.f32.mrb[0].mxu0
      %v1793 = vadd.f32 %v318, %v1792
      %v1794 = vpop.f32.mrb[0].mxu0
      %v1795 = vadd.f32 %v318, %v1794
      %1796 = vdwg.mxu0
      %v1797 = vand.u32 %v311, 4294901760
      %v1798 = vsub.f32 %v311, %v1797
      %v1799 = vand.u32 %v1798, 4294901760
      %v1800 = vsub.f32 %v1798, %v1799
      %v1801 = vand.u32 %v1800, 4294901760
      %1802 = vmatprep.subr.mxu0 %v1801
      %v1803 = vand.u32 %v310, 4294901760
      %v1804 = vsub.f32 %v310, %v1803
      %v1805 = vand.u32 %v1804, 4294901760
      %v1806 = vsub.f32 %v1804, %v1805
      %v1807 = vand.u32 %v1806, 4294901760
      %1808 = vmatpush1.msra.mxu0 %v1807
      %1809 = vmatprep.subr.mxu0 0.0
      %1810 = vmatpush1.msra.mxu0 0.0
      %1811 = vmatprep.subr.mxu0 0.0
      %1812 = vmatpush1.msra.mxu0 0.0
      %1813 = vmatprep.subr.mxu0 0.0
      %1814 = vmatpush1.msra.mxu0 0.0
      %1815 = vmatprep.subr.mxu0 0.0
      %1816 = vmatpush1.msra.mxu0 0.0
      %1817 = vmatprep.subr.mxu0 0.0
      %1818 = vmatpush1.msra.mxu0 0.0
      %1819 = vmatprep.subr.mxu0 0.0
      %1820 = vmatpush1.msra.mxu0 0.0
      %1821 = vmatprep.subr.mxu0 0.0
      %1822 = vmatpush1.msra.mxu0 0.0
      %1823 = vmatprep.subr.mxu0 0.0
      %1824 = vmatpush1.msra.mxu0 0.0
      %1825 = vmatprep.subr.mxu0 0.0
      %1826 = vmatpush1.msra.mxu0 0.0
      %1827 = vmatprep.subr.mxu0 0.0
      %1828 = vmatpush1.msra.mxu0 0.0
      %1829 = vmatprep.subr.mxu0 0.0
      %1830 = vmatpush1.msra.mxu0 0.0
      %1831 = vmatprep.subr.mxu0 0.0
      %1832 = vmatpush1.msra.mxu0 0.0
      %1833 = vmatprep.subr.mxu0 0.0
      %1834 = vmatpush1.msra.mxu0 0.0
      %1835 = vmatprep.subr.mxu0 0.0
      %1836 = vmatpush1.msra.mxu0 0.0
      %1837 = vmatprep.subr.mxu0 0.0
      %1838 = vmatpush1.msra.mxu0 0.0
      %1839 = vmatprep.subr.mxu0 0.0
      %1840 = vmatpush1.msra.mxu0 0.0
      %1841 = vmatprep.subr.mxu0 0.0
      %1842 = vmatpush1.msra.mxu0 0.0
      %1843 = vmatprep.subr.mxu0 0.0
      %1844 = vmatpush1.msra.mxu0 0.0
      %1845 = vmatprep.subr.mxu0 0.0
      %1846 = vmatpush1.msra.mxu0 0.0
      %1847 = vmatprep.subr.mxu0 0.0
      %1848 = vmatpush1.msra.mxu0 0.0
      %1849 = vmatprep.subr.mxu0 0.0
      %1850 = vmatpush1.msra.mxu0 0.0
      %1851 = vmatprep.subr.mxu0 0.0
      %1852 = vmatpush1.msra.mxu0 0.0
      %1853 = vmatprep.subr.mxu0 0.0
      %1854 = vmatpush1.msra.mxu0 0.0
      %1855 = vmatprep.subr.mxu0 0.0
      %1856 = vmatpush1.msra.mxu0 0.0
      %1857 = vmatprep.subr.mxu0 0.0
      %1858 = vmatpush1.msra.mxu0 0.0
      %1859 = vmatprep.subr.mxu0 0.0
      %1860 = vmatpush1.msra.mxu0 0.0
      %1861 = vmatprep.subr.mxu0 0.0
      %1862 = vmatpush1.msra.mxu0 0.0
      %1863 = vmatprep.subr.mxu0 0.0
      %1864 = vmatpush1.msra.mxu0 0.0
      %1865 = vmatprep.subr.mxu0 0.0
      %1866 = vmatpush1.msra.mxu0 0.0
      %1867 = vmatprep.subr.mxu0 0.0
      %1868 = vmatpush1.msra.mxu0 0.0
      %1869 = vmatprep.subr.mxu0 0.0
      %1870 = vmatpush1.msra.mxu0 0.0
      %1871 = vmatprep.mubr.f32.mxu0 0.0
      %v1872 = vand.u32 %v322, 4294901760
      %1873 = vmatmul.mubr.f32.gmra.mrb[0].mxu0 %v1872
      %v1874 = vpop.f32.mrb[0].mxu0
      %v1875 = vadd.f32 %v1793, %v1874
      %v1876 = vpop.f32.mrb[0].mxu0
      %v1877 = vadd.f32 %v1795, %v1876
      %1878 = vdwg.mxu0
      %v1879 = vand.u32 %v311, 4294901760
      %v1880 = vsub.f32 %v311, %v1879
      %1881 = vmatprep.subr.mxu0 %v1880
      %v1882 = vand.u32 %v310, 4294901760
      %v1883 = vsub.f32 %v310, %v1882
      %1884 = vmatpush1.msra.mxu0 %v1883
      %1885 = vmatprep.subr.mxu0 0.0
      %1886 = vmatpush1.msra.mxu0 0.0
      %1887 = vmatprep.subr.mxu0 0.0
      %1888 = vmatpush1.msra.mxu0 0.0
      %1889 = vmatprep.subr.mxu0 0.0
      %1890 = vmatpush1.msra.mxu0 0.0
      %1891 = vmatprep.subr.mxu0 0.0
      %1892 = vmatpush1.msra.mxu0 0.0
      %1893 = vmatprep.subr.mxu0 0.0
      %1894 = vmatpush1.msra.mxu0 0.0
      %1895 = vmatprep.subr.mxu0 0.0
      %1896 = vmatpush1.msra.mxu0 0.0
      %1897 = vmatprep.subr.mxu0 0.0
      %1898 = vmatpush1.msra.mxu0 0.0
      %1899 = vmatprep.subr.mxu0 0.0
      %1900 = vmatpush1.msra.mxu0 0.0
      %1901 = vmatprep.subr.mxu0 0.0
      %1902 = vmatpush1.msra.mxu0 0.0
      %1903 = vmatprep.subr.mxu0 0.0
      %1904 = vmatpush1.msra.mxu0 0.0
      %1905 = vmatprep.subr.mxu0 0.0
      %1906 = vmatpush1.msra.mxu0 0.0
      %1907 = vmatprep.subr.mxu0 0.0
      %1908 = vmatpush1.msra.mxu0 0.0
      %1909 = vmatprep.subr.mxu0 0.0
      %1910 = vmatpush1.msra.mxu0 0.0
      %1911 = vmatprep.subr.mxu0 0.0
      %1912 = vmatpush1.msra.mxu0 0.0
      %1913 = vmatprep.subr.mxu0 0.0
      %1914 = vmatpush1.msra.mxu0 0.0
      %1915 = vmatprep.subr.mxu0 0.0
      %1916 = vmatpush1.msra.mxu0 0.0
      %1917 = vmatprep.subr.mxu0 0.0
      %1918 = vmatpush1.msra.mxu0 0.0
      %1919 = vmatprep.subr.mxu0 0.0
      %1920 = vmatpush1.msra.mxu0 0.0
      %1921 = vmatprep.subr.mxu0 0.0
      %1922 = vmatpush1.msra.mxu0 0.0
      %1923 = vmatprep.subr.mxu0 0.0
      %1924 = vmatpush1.msra.mxu0 0.0
      %1925 = vmatprep.subr.mxu0 0.0
      %1926 = vmatpush1.msra.mxu0 0.0
      %1927 = vmatprep.subr.mxu0 0.0
      %1928 = vmatpush1.msra.mxu0 0.0
      %1929 = vmatprep.subr.mxu0 0.0
      %1930 = vmatpush1.msra.mxu0 0.0
      %1931 = vmatprep.subr.mxu0 0.0
      %1932 = vmatpush1.msra.mxu0 0.0
      %1933 = vmatprep.subr.mxu0 0.0
      %1934 = vmatpush1.msra.mxu0 0.0
      %1935 = vmatprep.subr.mxu0 0.0
      %1936 = vmatpush1.msra.mxu0 0.0
      %1937 = vmatprep.subr.mxu0 0.0
      %1938 = vmatpush1.msra.mxu0 0.0
      %1939 = vmatprep.subr.mxu0 0.0
      %1940 = vmatpush1.msra.mxu0 0.0
      %1941 = vmatprep.subr.mxu0 0.0
      %1942 = vmatpush1.msra.mxu0 0.0
      %1943 = vmatprep.subr.mxu0 0.0
      %1944 = vmatpush1.msra.mxu0 0.0
      %1945 = vmatprep.subr.mxu0 0.0
      %1946 = vmatpush1.msra.mxu0 0.0
      %1947 = vmatprep.mubr.f32.mxu0 0.0
      %v1948 = vand.u32 %v322, 4294901760
      %v1949 = vsub.f32 %v322, %v1948
      %1950 = vmatmul.mubr.f32.gmra.mrb[0].mxu0 %v1949
      %v1951 = vpop.f32.mrb[0].mxu0
      %v1952 = vadd.f32 %v1875, %v1951
      %v1953 = vpop.f32.mrb[0].mxu0
      %v1954 = vadd.f32 %v1877, %v1953
      %1955 = vdwg.mxu0
      %v1956 = vand.u32 %v311, 4294901760
      %1957 = vmatprep.subr.mxu0 %v1956
      %v1958 = vand.u32 %v310, 4294901760
      %1959 = vmatpush1.msra.mxu0 %v1958
      %1960 = vmatprep.subr.mxu0 0.0
      %1961 = vmatpush1.msra.mxu0 0.0
      %1962 = vmatprep.subr.mxu0 0.0
      %1963 = vmatpush1.msra.mxu0 0.0
      %1964 = vmatprep.subr.mxu0 0.0
      %1965 = vmatpush1.msra.mxu0 0.0
      %1966 = vmatprep.subr.mxu0 0.0
      %1967 = vmatpush1.msra.mxu0 0.0
      %1968 = vmatprep.subr.mxu0 0.0
      %1969 = vmatpush1.msra.mxu0 0.0
      %1970 = vmatprep.subr.mxu0 0.0
      %1971 = vmatpush1.msra.mxu0 0.0
      %1972 = vmatprep.subr.mxu0 0.0
      %1973 = vmatpush1.msra.mxu0 0.0
      %1974 = vmatprep.subr.mxu0 0.0
      %1975 = vmatpush1.msra.mxu0 0.0
      %1976 = vmatprep.subr.mxu0 0.0
      %1977 = vmatpush1.msra.mxu0 0.0
      %1978 = vmatprep.subr.mxu0 0.0
      %1979 = vmatpush1.msra.mxu0 0.0
      %1980 = vmatprep.subr.mxu0 0.0
      %1981 = vmatpush1.msra.mxu0 0.0
      %1982 = vmatprep.subr.mxu0 0.0
      %1983 = vmatpush1.msra.mxu0 0.0
      %1984 = vmatprep.subr.mxu0 0.0
      %1985 = vmatpush1.msra.mxu0 0.0
      %1986 = vmatprep.subr.mxu0 0.0
      %1987 = vmatpush1.msra.mxu0 0.0
      %1988 = vmatprep.subr.mxu0 0.0
      %1989 = vmatpush1.msra.mxu0 0.0
      %1990 = vmatprep.subr.mxu0 0.0
      %1991 = vmatpush1.msra.mxu0 0.0
      %1992 = vmatprep.subr.mxu0 0.0
      %1993 = vmatpush1.msra.mxu0 0.0
      %1994 = vmatprep.subr.mxu0 0.0
      %1995 = vmatpush1.msra.mxu0 0.0
      %1996 = vmatprep.subr.mxu0 0.0
      %1997 = vmatpush1.msra.mxu0 0.0
      %1998 = vmatprep.subr.mxu0 0.0
      %1999 = vmatpush1.msra.mxu0 0.0
      %2000 = vmatprep.subr.mxu0 0.0
      %2001 = vmatpush1.msra.mxu0 0.0
      %2002 = vmatprep.subr.mxu0 0.0
      %2003 = vmatpush1.msra.mxu0 0.0
      %2004 = vmatprep.subr.mxu0 0.0
      %2005 = vmatpush1.msra.mxu0 0.0
      %2006 = vmatprep.subr.mxu0 0.0
      %2007 = vmatpush1.msra.mxu0 0.0
      %2008 = vmatprep.subr.mxu0 0.0
      %2009 = vmatpush1.msra.mxu0 0.0
      %2010 = vmatprep.subr.mxu0 0.0
      %2011 = vmatpush1.msra.mxu0 0.0
      %2012 = vmatprep.subr.mxu0 0.0
      %2013 = vmatpush1.msra.mxu0 0.0
      %2014 = vmatprep.subr.mxu0 0.0
      %2015 = vmatpush1.msra.mxu0 0.0
      %2016 = vmatprep.subr.mxu0 0.0
      %2017 = vmatpush1.msra.mxu0 0.0
      %2018 = vmatprep.subr.mxu0 0.0
      %2019 = vmatpush1.msra.mxu0 0.0
      %2020 = vmatprep.subr.mxu0 0.0
      %2021 = vmatpush1.msra.mxu0 0.0
      %2022 = vmatprep.mubr.f32.mxu0 0.0
      %v2023 = vand.u32 %v322, 4294901760
      %v2024 = vsub.f32 %v322, %v2023
      %v2025 = vand.u32 %v2024, 4294901760
      %2026 = vmatmul.mubr.f32.gmra.mrb[0].mxu0 %v2025
      %v2027 = vpop.f32.mrb[0].mxu0
      %v2028 = vadd.f32 %v1952, %v2027
      %v2029 = vpop.f32.mrb[0].mxu0
      %v2030 = vadd.f32 %v1954, %v2029
      %2031 = vdwg.mxu0
      %v2032 = vand.u32 %v311, 4294901760
      %v2033 = vsub.f32 %v311, %v2032
      %v2034 = vand.u32 %v2033, 4294901760
      %2035 = vmatprep.subr.mxu0 %v2034
      %v2036 = vand.u32 %v310, 4294901760
      %v2037 = vsub.f32 %v310, %v2036
      %v2038 = vand.u32 %v2037, 4294901760
      %2039 = vmatpush1.msra.mxu0 %v2038
      %2040 = vmatprep.subr.mxu0 0.0
      %2041 = vmatpush1.msra.mxu0 0.0
      %2042 = vmatprep.subr.mxu0 0.0
      %2043 = vmatpush1.msra.mxu0 0.0
      %2044 = vmatprep.subr.mxu0 0.0
      %2045 = vmatpush1.msra.mxu0 0.0
      %2046 = vmatprep.subr.mxu0 0.0
      %2047 = vmatpush1.msra.mxu0 0.0
      %2048 = vmatprep.subr.mxu0 0.0
      %2049 = vmatpush1.msra.mxu0 0.0
      %2050 = vmatprep.subr.mxu0 0.0
      %2051 = vmatpush1.msra.mxu0 0.0
      %2052 = vmatprep.subr.mxu0 0.0
      %2053 = vmatpush1.msra.mxu0 0.0
      %2054 = vmatprep.subr.mxu0 0.0
      %2055 = vmatpush1.msra.mxu0 0.0
      %2056 = vmatprep.subr.mxu0 0.0
      %2057 = vmatpush1.msra.mxu0 0.0
      %2058 = vmatprep.subr.mxu0 0.0
      %2059 = vmatpush1.msra.mxu0 0.0
      %2060 = vmatprep.subr.mxu0 0.0
      %2061 = vmatpush1.msra.mxu0 0.0
      %2062 = vmatprep.subr.mxu0 0.0
      %2063 = vmatpush1.msra.mxu0 0.0
      %2064 = vmatprep.subr.mxu0 0.0
      %2065 = vmatpush1.msra.mxu0 0.0
      %2066 = vmatprep.subr.mxu0 0.0
      %2067 = vmatpush1.msra.mxu0 0.0
      %2068 = vmatprep.subr.mxu0 0.0
      %2069 = vmatpush1.msra.mxu0 0.0
      %2070 = vmatprep.subr.mxu0 0.0
      %2071 = vmatpush1.msra.mxu0 0.0
      %2072 = vmatprep.subr.mxu0 0.0
      %2073 = vmatpush1.msra.mxu0 0.0
      %2074 = vmatprep.subr.mxu0 0.0
      %2075 = vmatpush1.msra.mxu0 0.0
      %2076 = vmatprep.subr.mxu0 0.0
      %2077 = vmatpush1.msra.mxu0 0.0
      %2078 = vmatprep.subr.mxu0 0.0
      %2079 = vmatpush1.msra.mxu0 0.0
      %2080 = vmatprep.subr.mxu0 0.0
      %2081 = vmatpush1.msra.mxu0 0.0
      %2082 = vmatprep.subr.mxu0 0.0
      %2083 = vmatpush1.msra.mxu0 0.0
      %2084 = vmatprep.subr.mxu0 0.0
      %2085 = vmatpush1.msra.mxu0 0.0
      %2086 = vmatprep.subr.mxu0 0.0
      %2087 = vmatpush1.msra.mxu0 0.0
      %2088 = vmatprep.subr.mxu0 0.0
      %2089 = vmatpush1.msra.mxu0 0.0
      %2090 = vmatprep.subr.mxu0 0.0
      %2091 = vmatpush1.msra.mxu0 0.0
      %2092 = vmatprep.subr.mxu0 0.0
      %2093 = vmatpush1.msra.mxu0 0.0
      %2094 = vmatprep.subr.mxu0 0.0
      %2095 = vmatpush1.msra.mxu0 0.0
      %2096 = vmatprep.subr.mxu0 0.0
      %2097 = vmatpush1.msra.mxu0 0.0
      %2098 = vmatprep.subr.mxu0 0.0
      %2099 = vmatpush1.msra.mxu0 0.0
      %2100 = vmatprep.subr.mxu0 0.0
      %2101 = vmatpush1.msra.mxu0 0.0
      %2102 = vmatprep.mubr.f32.mxu0 0.0
      %v2103 = vand.u32 %v322, 4294901760
      %2104 = vmatmul.mubr.f32.gmra.mrb[0].mxu0 %v2103
      %v2105 = vpop.f32.mrb[0].mxu0
      %v2106 = vadd.f32 %v2028, %v2105
      %v2107 = vpop.f32.mrb[0].mxu0
      %v2108 = vadd.f32 %v2030, %v2107
      %2109 = vdwg.mxu0
      %v2110 = vand.u32 %v311, 4294901760
      %2111 = vmatprep.subr.mxu0 %v2110
      %v2112 = vand.u32 %v310, 4294901760
      %2113 = vmatpush1.msra.mxu0 %v2112
      %2114 = vmatprep.subr.mxu0 0.0
      %2115 = vmatpush1.msra.mxu0 0.0
      %2116 = vmatprep.subr.mxu0 0.0
      %2117 = vmatpush1.msra.mxu0 0.0
      %2118 = vmatprep.subr.mxu0 0.0
      %2119 = vmatpush1.msra.mxu0 0.0
      %2120 = vmatprep.subr.mxu0 0.0
      %2121 = vmatpush1.msra.mxu0 0.0
      %2122 = vmatprep.subr.mxu0 0.0
      %2123 = vmatpush1.msra.mxu0 0.0
      %2124 = vmatprep.subr.mxu0 0.0
      %2125 = vmatpush1.msra.mxu0 0.0
      %2126 = vmatprep.subr.mxu0 0.0
      %2127 = vmatpush1.msra.mxu0 0.0
      %2128 = vmatprep.subr.mxu0 0.0
      %2129 = vmatpush1.msra.mxu0 0.0
      %2130 = vmatprep.subr.mxu0 0.0
      %2131 = vmatpush1.msra.mxu0 0.0
      %2132 = vmatprep.subr.mxu0 0.0
      %2133 = vmatpush1.msra.mxu0 0.0
      %2134 = vmatprep.subr.mxu0 0.0
      %2135 = vmatpush1.msra.mxu0 0.0
      %2136 = vmatprep.subr.mxu0 0.0
      %2137 = vmatpush1.msra.mxu0 0.0
      %2138 = vmatprep.subr.mxu0 0.0
      %2139 = vmatpush1.msra.mxu0 0.0
      %2140 = vmatprep.subr.mxu0 0.0
      %2141 = vmatpush1.msra.mxu0 0.0
      %2142 = vmatprep.subr.mxu0 0.0
      %2143 = vmatpush1.msra.mxu0 0.0
      %2144 = vmatprep.subr.mxu0 0.0
      %2145 = vmatpush1.msra.mxu0 0.0
      %2146 = vmatprep.subr.mxu0 0.0
      %2147 = vmatpush1.msra.mxu0 0.0
      %2148 = vmatprep.subr.mxu0 0.0
      %2149 = vmatpush1.msra.mxu0 0.0
      %2150 = vmatprep.subr.mxu0 0.0
      %2151 = vmatpush1.msra.mxu0 0.0
      %2152 = vmatprep.subr.mxu0 0.0
      %2153 = vmatpush1.msra.mxu0 0.0
      %2154 = vmatprep.subr.mxu0 0.0
      %2155 = vmatpush1.msra.mxu0 0.0
      %2156 = vmatprep.subr.mxu0 0.0
      %2157 = vmatpush1.msra.mxu0 0.0
      %2158 = vmatprep.subr.mxu0 0.0
      %2159 = vmatpush1.msra.mxu0 0.0
      %2160 = vmatprep.subr.mxu0 0.0
      %2161 = vmatpush1.msra.mxu0 0.0
      %2162 = vmatprep.subr.mxu0 0.0
      %2163 = vmatpush1.msra.mxu0 0.0
      %2164 = vmatprep.subr.mxu0 0.0
      %2165 = vmatpush1.msra.mxu0 0.0
      %2166 = vmatprep.subr.mxu0 0.0
      %2167 = vmatpush1.msra.mxu0 0.0
      %2168 = vmatprep.subr.mxu0 0.0
      %2169 = vmatpush1.msra.mxu0 0.0
      %2170 = vmatprep.subr.mxu0 0.0
      %2171 = vmatpush1.msra.mxu0 0.0
      %2172 = vmatprep.subr.mxu0 0.0
      %2173 = vmatpush1.msra.mxu0 0.0
      %2174 = vmatprep.subr.mxu0 0.0
      %2175 = vmatpush1.msra.mxu0 0.0
      %2176 = vmatprep.mubr.f32.mxu0 0.0
      %v2177 = vand.u32 %v322, 4294901760
      %2178 = vmatmul.mubr.f32.gmra.mrb[0].mxu0 %v2177
      %v2179 = vpop.f32.mrb[0].mxu0
      %v2180 = vadd.f32 %v2106, %v2179
      %v2181 = vpop.f32.mrb[0].mxu0
      %v2182 = vadd.f32 %v2108, %v2181
      %2183 = vdwg.mxu0
      %2184 = vmatprep.subr.mxu0 0.0
      %v2185 = vand.u32 %v312, 4294901760
      %2186 = vmatpush1.msra.mxu0 %v2185
      %2187 = vmatprep.subr.mxu0 0.0
      %2188 = vmatpush1.msra.mxu0 0.0
      %2189 = vmatprep.subr.mxu0 0.0
      %2190 = vmatpush1.msra.mxu0 0.0
      %2191 = vmatprep.subr.mxu0 0.0
      %2192 = vmatpush1.msra.mxu0 0.0
      %2193 = vmatprep.subr.mxu0 0.0
      %2194 = vmatpush1.msra.mxu0 0.0
      %2195 = vmatprep.subr.mxu0 0.0
      %2196 = vmatpush1.msra.mxu0 0.0
      %2197 = vmatprep.subr.mxu0 0.0
      %2198 = vmatpush1.msra.mxu0 0.0
      %2199 = vmatprep.subr.mxu0 0.0
      %2200 = vmatpush1.msra.mxu0 0.0
      %2201 = vmatprep.subr.mxu0 0.0
      %2202 = vmatpush1.msra.mxu0 0.0
      %2203 = vmatprep.subr.mxu0 0.0
      %2204 = vmatpush1.msra.mxu0 0.0
      %2205 = vmatprep.subr.mxu0 0.0
      %2206 = vmatpush1.msra.mxu0 0.0
      %2207 = vmatprep.subr.mxu0 0.0
      %2208 = vmatpush1.msra.mxu0 0.0
      %2209 = vmatprep.subr.mxu0 0.0
      %2210 = vmatpush1.msra.mxu0 0.0
      %2211 = vmatprep.subr.mxu0 0.0
      %2212 = vmatpush1.msra.mxu0 0.0
      %2213 = vmatprep.subr.mxu0 0.0
      %2214 = vmatpush1.msra.mxu0 0.0
      %2215 = vmatprep.subr.mxu0 0.0
      %2216 = vmatpush1.msra.mxu0 0.0
      %2217 = vmatprep.subr.mxu0 0.0
      %2218 = vmatpush1.msra.mxu0 0.0
      %2219 = vmatprep.subr.mxu0 0.0
      %2220 = vmatpush1.msra.mxu0 0.0
      %2221 = vmatprep.subr.mxu0 0.0
      %2222 = vmatpush1.msra.mxu0 0.0
      %2223 = vmatprep.subr.mxu0 0.0
      %2224 = vmatpush1.msra.mxu0 0.0
      %2225 = vmatprep.subr.mxu0 0.0
      %2226 = vmatpush1.msra.mxu0 0.0
      %2227 = vmatprep.subr.mxu0 0.0
      %2228 = vmatpush1.msra.mxu0 0.0
      %2229 = vmatprep.subr.mxu0 0.0
      %2230 = vmatpush1.msra.mxu0 0.0
      %2231 = vmatprep.subr.mxu0 0.0
      %2232 = vmatpush1.msra.mxu0 0.0
      %2233 = vmatprep.subr.mxu0 0.0
      %2234 = vmatpush1.msra.mxu0 0.0
      %2235 = vmatprep.subr.mxu0 0.0
      %2236 = vmatpush1.msra.mxu0 0.0
      %2237 = vmatprep.subr.mxu0 0.0
      %2238 = vmatpush1.msra.mxu0 0.0
      %2239 = vmatprep.subr.mxu0 0.0
      %2240 = vmatpush1.msra.mxu0 0.0
      %2241 = vmatprep.subr.mxu0 0.0
      %2242 = vmatpush1.msra.mxu0 0.0
      %2243 = vmatprep.subr.mxu0 0.0
      %2244 = vmatpush1.msra.mxu0 0.0
      %2245 = vmatprep.subr.mxu0 0.0
      %2246 = vmatpush1.msra.mxu0 0.0
      %2247 = vmatprep.subr.mxu0 0.0
      %2248 = vmatpush1.msra.mxu0 0.0
      %2249 = vmatprep.mubr.f32.mxu0 0.0
      %v2250 = vand.u32 %v322, 4294901760
      %v2251 = vsub.f32 %v322, %v2250
      %v2252 = vand.u32 %v2251, 4294901760
      %v2253 = vsub.f32 %v2251, %v2252
      %v2254 = vand.u32 %v2253, 4294901760
      %2255 = vmatmul.mubr.f32.gmra.mrb[0].mxu0 %v2254
      %v2256 = vpop.f32.mrb[0].mxu0
      %v2257 = vadd.f32 %v318, %v2256
      %v2258 = vpop.f32.mrb[0].mxu0
      %2259 = vdwg.mxu0
      %2260 = vmatprep.subr.mxu0 0.0
      %v2261 = vand.u32 %v312, 4294901760
      %v2262 = vsub.f32 %v312, %v2261
      %v2263 = vand.u32 %v2262, 4294901760
      %v2264 = vsub.f32 %v2262, %v2263
      %v2265 = vand.u32 %v2264, 4294901760
      %2266 = vmatpush1.msra.mxu0 %v2265
      %2267 = vmatprep.subr.mxu0 0.0
      %2268 = vmatpush1.msra.mxu0 0.0
      %2269 = vmatprep.subr.mxu0 0.0
      %2270 = vmatpush1.msra.mxu0 0.0
      %2271 = vmatprep.subr.mxu0 0.0
      %2272 = vmatpush1.msra.mxu0 0.0
      %2273 = vmatprep.subr.mxu0 0.0
      %2274 = vmatpush1.msra.mxu0 0.0
      %2275 = vmatprep.subr.mxu0 0.0
      %2276 = vmatpush1.msra.mxu0 0.0
      %2277 = vmatprep.subr.mxu0 0.0
      %2278 = vmatpush1.msra.mxu0 0.0
      %2279 = vmatprep.subr.mxu0 0.0
      %2280 = vmatpush1.msra.mxu0 0.0
      %2281 = vmatprep.subr.mxu0 0.0
      %2282 = vmatpush1.msra.mxu0 0.0
      %2283 = vmatprep.subr.mxu0 0.0
      %2284 = vmatpush1.msra.mxu0 0.0
      %2285 = vmatprep.subr.mxu0 0.0
      %2286 = vmatpush1.msra.mxu0 0.0
      %2287 = vmatprep.subr.mxu0 0.0
      %2288 = vmatpush1.msra.mxu0 0.0
      %2289 = vmatprep.subr.mxu0 0.0
      %2290 = vmatpush1.msra.mxu0 0.0
      %2291 = vmatprep.subr.mxu0 0.0
      %2292 = vmatpush1.msra.mxu0 0.0
      %2293 = vmatprep.subr.mxu0 0.0
      %2294 = vmatpush1.msra.mxu0 0.0
      %2295 = vmatprep.subr.mxu0 0.0
      %2296 = vmatpush1.msra.mxu0 0.0
      %2297 = vmatprep.subr.mxu0 0.0
      %2298 = vmatpush1.msra.mxu0 0.0
      %2299 = vmatprep.subr.mxu0 0.0
      %2300 = vmatpush1.msra.mxu0 0.0
      %2301 = vmatprep.subr.mxu0 0.0
      %2302 = vmatpush1.msra.mxu0 0.0
      %2303 = vmatprep.subr.mxu0 0.0
      %2304 = vmatpush1.msra.mxu0 0.0
      %2305 = vmatprep.subr.mxu0 0.0
      %2306 = vmatpush1.msra.mxu0 0.0
      %2307 = vmatprep.subr.mxu0 0.0
      %2308 = vmatpush1.msra.mxu0 0.0
      %2309 = vmatprep.subr.mxu0 0.0
      %2310 = vmatpush1.msra.mxu0 0.0
      %2311 = vmatprep.subr.mxu0 0.0
      %2312 = vmatpush1.msra.mxu0 0.0
      %2313 = vmatprep.subr.mxu0 0.0
      %2314 = vmatpush1.msra.mxu0 0.0
      %2315 = vmatprep.subr.mxu0 0.0
      %2316 = vmatpush1.msra.mxu0 0.0
      %2317 = vmatprep.subr.mxu0 0.0
      %2318 = vmatpush1.msra.mxu0 0.0
      %2319 = vmatprep.subr.mxu0 0.0
      %2320 = vmatpush1.msra.mxu0 0.0
      %2321 = vmatprep.subr.mxu0 0.0
      %2322 = vmatpush1.msra.mxu0 0.0
      %2323 = vmatprep.subr.mxu0 0.0
      %2324 = vmatpush1.msra.mxu0 0.0
      %2325 = vmatprep.subr.mxu0 0.0
      %2326 = vmatpush1.msra.mxu0 0.0
      %2327 = vmatprep.subr.mxu0 0.0
      %2328 = vmatpush1.msra.mxu0 0.0
      %2329 = vmatprep.mubr.f32.mxu0 0.0
      %v2330 = vand.u32 %v322, 4294901760
      %2331 = vmatmul.mubr.f32.gmra.mrb[0].mxu0 %v2330
      %v2332 = vpop.f32.mrb[0].mxu0
      %v2333 = vadd.f32 %v2257, %v2332
      %v2334 = vpop.f32.mrb[0].mxu0
      %2335 = vdwg.mxu0
      %2336 = vmatprep.subr.mxu0 0.0
      %v2337 = vand.u32 %v312, 4294901760
      %v2338 = vsub.f32 %v312, %v2337
      %2339 = vmatpush1.msra.mxu0 %v2338
      %2340 = vmatprep.subr.mxu0 0.0
      %2341 = vmatpush1.msra.mxu0 0.0
      %2342 = vmatprep.subr.mxu0 0.0
      %2343 = vmatpush1.msra.mxu0 0.0
      %2344 = vmatprep.subr.mxu0 0.0
      %2345 = vmatpush1.msra.mxu0 0.0
      %2346 = vmatprep.subr.mxu0 0.0
      %2347 = vmatpush1.msra.mxu0 0.0
      %2348 = vmatprep.subr.mxu0 0.0
      %2349 = vmatpush1.msra.mxu0 0.0
      %2350 = vmatprep.subr.mxu0 0.0
      %2351 = vmatpush1.msra.mxu0 0.0
      %2352 = vmatprep.subr.mxu0 0.0
      %2353 = vmatpush1.msra.mxu0 0.0
      %2354 = vmatprep.subr.mxu0 0.0
      %2355 = vmatpush1.msra.mxu0 0.0
      %2356 = vmatprep.subr.mxu0 0.0
      %2357 = vmatpush1.msra.mxu0 0.0
      %2358 = vmatprep.subr.mxu0 0.0
      %2359 = vmatpush1.msra.mxu0 0.0
      %2360 = vmatprep.subr.mxu0 0.0
      %2361 = vmatpush1.msra.mxu0 0.0
      %2362 = vmatprep.subr.mxu0 0.0
      %2363 = vmatpush1.msra.mxu0 0.0
      %2364 = vmatprep.subr.mxu0 0.0
      %2365 = vmatpush1.msra.mxu0 0.0
      %2366 = vmatprep.subr.mxu0 0.0
      %2367 = vmatpush1.msra.mxu0 0.0
      %2368 = vmatprep.subr.mxu0 0.0
      %2369 = vmatpush1.msra.mxu0 0.0
      %2370 = vmatprep.subr.mxu0 0.0
      %2371 = vmatpush1.msra.mxu0 0.0
      %2372 = vmatprep.subr.mxu0 0.0
      %2373 = vmatpush1.msra.mxu0 0.0
      %2374 = vmatprep.subr.mxu0 0.0
      %2375 = vmatpush1.msra.mxu0 0.0
      %2376 = vmatprep.subr.mxu0 0.0
      %2377 = vmatpush1.msra.mxu0 0.0
      %2378 = vmatprep.subr.mxu0 0.0
      %2379 = vmatpush1.msra.mxu0 0.0
      %2380 = vmatprep.subr.mxu0 0.0
      %2381 = vmatpush1.msra.mxu0 0.0
      %2382 = vmatprep.subr.mxu0 0.0
      %2383 = vmatpush1.msra.mxu0 0.0
      %2384 = vmatprep.subr.mxu0 0.0
      %2385 = vmatpush1.msra.mxu0 0.0
      %2386 = vmatprep.subr.mxu0 0.0
      %2387 = vmatpush1.msra.mxu0 0.0
      %2388 = vmatprep.subr.mxu0 0.0
      %2389 = vmatpush1.msra.mxu0 0.0
      %2390 = vmatprep.subr.mxu0 0.0
      %2391 = vmatpush1.msra.mxu0 0.0
      %2392 = vmatprep.subr.mxu0 0.0
      %2393 = vmatpush1.msra.mxu0 0.0
      %2394 = vmatprep.subr.mxu0 0.0
      %2395 = vmatpush1.msra.mxu0 0.0
      %2396 = vmatprep.subr.mxu0 0.0
      %2397 = vmatpush1.msra.mxu0 0.0
      %2398 = vmatprep.subr.mxu0 0.0
      %2399 = vmatpush1.msra.mxu0 0.0
      %2400 = vmatprep.subr.mxu0 0.0
      %2401 = vmatpush1.msra.mxu0 0.0
      %2402 = vmatprep.mubr.f32.mxu0 0.0
      %v2403 = vand.u32 %v322, 4294901760
      %v2404 = vsub.f32 %v322, %v2403
      %2405 = vmatmul.mubr.f32.gmra.mrb[0].mxu0 %v2404
      %v2406 = vpop.f32.mrb[0].mxu0
      %v2407 = vadd.f32 %v2333, %v2406
      %v2408 = vpop.f32.mrb[0].mxu0
      %2409 = vdwg.mxu0
      %2410 = vmatprep.subr.mxu0 0.0
      %v2411 = vand.u32 %v312, 4294901760
      %2412 = vmatpush1.msra.mxu0 %v2411
      %2413 = vmatprep.subr.mxu0 0.0
      %2414 = vmatpush1.msra.mxu0 0.0
      %2415 = vmatprep.subr.mxu0 0.0
      %2416 = vmatpush1.msra.mxu0 0.0
      %2417 = vmatprep.subr.mxu0 0.0
      %2418 = vmatpush1.msra.mxu0 0.0
      %2419 = vmatprep.subr.mxu0 0.0
      %2420 = vmatpush1.msra.mxu0 0.0
      %2421 = vmatprep.subr.mxu0 0.0
      %2422 = vmatpush1.msra.mxu0 0.0
      %2423 = vmatprep.subr.mxu0 0.0
      %2424 = vmatpush1.msra.mxu0 0.0
      %2425 = vmatprep.subr.mxu0 0.0
      %2426 = vmatpush1.msra.mxu0 0.0
      %2427 = vmatprep.subr.mxu0 0.0
      %2428 = vmatpush1.msra.mxu0 0.0
      %2429 = vmatprep.subr.mxu0 0.0
      %2430 = vmatpush1.msra.mxu0 0.0
      %2431 = vmatprep.subr.mxu0 0.0
      %2432 = vmatpush1.msra.mxu0 0.0
      %2433 = vmatprep.subr.mxu0 0.0
      %2434 = vmatpush1.msra.mxu0 0.0
      %2435 = vmatprep.subr.mxu0 0.0
      %2436 = vmatpush1.msra.mxu0 0.0
      %2437 = vmatprep.subr.mxu0 0.0
      %2438 = vmatpush1.msra.mxu0 0.0
      %2439 = vmatprep.subr.mxu0 0.0
      %2440 = vmatpush1.msra.mxu0 0.0
      %2441 = vmatprep.subr.mxu0 0.0
      %2442 = vmatpush1.msra.mxu0 0.0
      %2443 = vmatprep.subr.mxu0 0.0
      %2444 = vmatpush1.msra.mxu0 0.0
      %2445 = vmatprep.subr.mxu0 0.0
      %2446 = vmatpush1.msra.mxu0 0.0
      %2447 = vmatprep.subr.mxu0 0.0
      %2448 = vmatpush1.msra.mxu0 0.0
      %2449 = vmatprep.subr.mxu0 0.0
      %2450 = vmatpush1.msra.mxu0 0.0
      %2451 = vmatprep.subr.mxu0 0.0
      %2452 = vmatpush1.msra.mxu0 0.0
      %2453 = vmatprep.subr.mxu0 0.0
      %2454 = vmatpush1.msra.mxu0 0.0
      %2455 = vmatprep.subr.mxu0 0.0
      %2456 = vmatpush1.msra.mxu0 0.0
      %2457 = vmatprep.subr.mxu0 0.0
      %2458 = vmatpush1.msra.mxu0 0.0
      %2459 = vmatprep.subr.mxu0 0.0
      %2460 = vmatpush1.msra.mxu0 0.0
      %2461 = vmatprep.subr.mxu0 0.0
      %2462 = vmatpush1.msra.mxu0 0.0
      %2463 = vmatprep.subr.mxu0 0.0
      %2464 = vmatpush1.msra.mxu0 0.0
      %2465 = vmatprep.subr.mxu0 0.0
      %2466 = vmatpush1.msra.mxu0 0.0
      %2467 = vmatprep.subr.mxu0 0.0
      %2468 = vmatpush1.msra.mxu0 0.0
      %2469 = vmatprep.subr.mxu0 0.0
      %2470 = vmatpush1.msra.mxu0 0.0
      %2471 = vmatprep.subr.mxu0 0.0
      %2472 = vmatpush1.msra.mxu0 0.0
      %2473 = vmatprep.subr.mxu0 0.0
      %2474 = vmatpush1.msra.mxu0 0.0
      %2475 = vmatprep.mubr.f32.mxu0 0.0
      %v2476 = vand.u32 %v322, 4294901760
      %v2477 = vsub.f32 %v322, %v2476
      %v2478 = vand.u32 %v2477, 4294901760
      %2479 = vmatmul.mubr.f32.gmra.mrb[0].mxu0 %v2478
      %v2480 = vpop.f32.mrb[0].mxu0
      %v2481 = vadd.f32 %v2407, %v2480
      %v2482 = vpop.f32.mrb[0].mxu0
      %2483 = vdwg.mxu0
      %2484 = vmatprep.subr.mxu0 0.0
      %v2485 = vand.u32 %v312, 4294901760
      %v2486 = vsub.f32 %v312, %v2485
      %v2487 = vand.u32 %v2486, 4294901760
      %2488 = vmatpush1.msra.mxu0 %v2487
      %2489 = vmatprep.subr.mxu0 0.0
      %2490 = vmatpush1.msra.mxu0 0.0
      %2491 = vmatprep.subr.mxu0 0.0
      %2492 = vmatpush1.msra.mxu0 0.0
      %2493 = vmatprep.subr.mxu0 0.0
      %2494 = vmatpush1.msra.mxu0 0.0
      %2495 = vmatprep.subr.mxu0 0.0
      %2496 = vmatpush1.msra.mxu0 0.0
      %2497 = vmatprep.subr.mxu0 0.0
      %2498 = vmatpush1.msra.mxu0 0.0
      %2499 = vmatprep.subr.mxu0 0.0
      %2500 = vmatpush1.msra.mxu0 0.0
      %2501 = vmatprep.subr.mxu0 0.0
      %2502 = vmatpush1.msra.mxu0 0.0
      %2503 = vmatprep.subr.mxu0 0.0
      %2504 = vmatpush1.msra.mxu0 0.0
      %2505 = vmatprep.subr.mxu0 0.0
      %2506 = vmatpush1.msra.mxu0 0.0
      %2507 = vmatprep.subr.mxu0 0.0
      %2508 = vmatpush1.msra.mxu0 0.0
      %2509 = vmatprep.subr.mxu0 0.0
      %2510 = vmatpush1.msra.mxu0 0.0
      %2511 = vmatprep.subr.mxu0 0.0
      %2512 = vmatpush1.msra.mxu0 0.0
      %2513 = vmatprep.subr.mxu0 0.0
      %2514 = vmatpush1.msra.mxu0 0.0
      %2515 = vmatprep.subr.mxu0 0.0
      %2516 = vmatpush1.msra.mxu0 0.0
      %2517 = vmatprep.subr.mxu0 0.0
      %2518 = vmatpush1.msra.mxu0 0.0
      %2519 = vmatprep.subr.mxu0 0.0
      %2520 = vmatpush1.msra.mxu0 0.0
      %2521 = vmatprep.subr.mxu0 0.0
      %2522 = vmatpush1.msra.mxu0 0.0
      %2523 = vmatprep.subr.mxu0 0.0
      %2524 = vmatpush1.msra.mxu0 0.0
      %2525 = vmatprep.subr.mxu0 0.0
      %2526 = vmatpush1.msra.mxu0 0.0
      %2527 = vmatprep.subr.mxu0 0.0
      %2528 = vmatpush1.msra.mxu0 0.0
      %2529 = vmatprep.subr.mxu0 0.0
      %2530 = vmatpush1.msra.mxu0 0.0
      %2531 = vmatprep.subr.mxu0 0.0
      %2532 = vmatpush1.msra.mxu0 0.0
      %2533 = vmatprep.subr.mxu0 0.0
      %2534 = vmatpush1.msra.mxu0 0.0
      %2535 = vmatprep.subr.mxu0 0.0
      %2536 = vmatpush1.msra.mxu0 0.0
      %2537 = vmatprep.subr.mxu0 0.0
      %2538 = vmatpush1.msra.mxu0 0.0
      %2539 = vmatprep.subr.mxu0 0.0
      %2540 = vmatpush1.msra.mxu0 0.0
      %2541 = vmatprep.subr.mxu0 0.0
      %2542 = vmatpush1.msra.mxu0 0.0
      %2543 = vmatprep.subr.mxu0 0.0
      %2544 = vmatpush1.msra.mxu0 0.0
      %2545 = vmatprep.subr.mxu0 0.0
      %2546 = vmatpush1.msra.mxu0 0.0
      %2547 = vmatprep.subr.mxu0 0.0
      %2548 = vmatpush1.msra.mxu0 0.0
      %2549 = vmatprep.subr.mxu0 0.0
      %2550 = vmatpush1.msra.mxu0 0.0
      %2551 = vmatprep.mubr.f32.mxu0 0.0
      %v2552 = vand.u32 %v322, 4294901760
      %2553 = vmatmul.mubr.f32.gmra.mrb[0].mxu0 %v2552
      %v2554 = vpop.f32.mrb[0].mxu0
      %v2555 = vadd.f32 %v2481, %v2554
      %v2556 = vpop.f32.mrb[0].mxu0
      %2557 = vdwg.mxu0
      %2558 = vmatprep.subr.mxu0 0.0
      %v2559 = vand.u32 %v312, 4294901760
      %2560 = vmatpush1.msra.mxu0 %v2559
      %2561 = vmatprep.subr.mxu0 0.0
      %2562 = vmatpush1.msra.mxu0 0.0
      %2563 = vmatprep.subr.mxu0 0.0
      %2564 = vmatpush1.msra.mxu0 0.0
      %2565 = vmatprep.subr.mxu0 0.0
      %2566 = vmatpush1.msra.mxu0 0.0
      %2567 = vmatprep.subr.mxu0 0.0
      %2568 = vmatpush1.msra.mxu0 0.0
      %2569 = vmatprep.subr.mxu0 0.0
      %2570 = vmatpush1.msra.mxu0 0.0
      %2571 = vmatprep.subr.mxu0 0.0
      %2572 = vmatpush1.msra.mxu0 0.0
      %2573 = vmatprep.subr.mxu0 0.0
      %2574 = vmatpush1.msra.mxu0 0.0
      %2575 = vmatprep.subr.mxu0 0.0
      %2576 = vmatpush1.msra.mxu0 0.0
      %2577 = vmatprep.subr.mxu0 0.0
      %2578 = vmatpush1.msra.mxu0 0.0
      %2579 = vmatprep.subr.mxu0 0.0
      %2580 = vmatpush1.msra.mxu0 0.0
      %2581 = vmatprep.subr.mxu0 0.0
      %2582 = vmatpush1.msra.mxu0 0.0
      %2583 = vmatprep.subr.mxu0 0.0
      %2584 = vmatpush1.msra.mxu0 0.0
      %2585 = vmatprep.subr.mxu0 0.0
      %2586 = vmatpush1.msra.mxu0 0.0
      %2587 = vmatprep.subr.mxu0 0.0
      %2588 = vmatpush1.msra.mxu0 0.0
      %2589 = vmatprep.subr.mxu0 0.0
      %2590 = vmatpush1.msra.mxu0 0.0
      %2591 = vmatprep.subr.mxu0 0.0
      %2592 = vmatpush1.msra.mxu0 0.0
      %2593 = vmatprep.subr.mxu0 0.0
      %2594 = vmatpush1.msra.mxu0 0.0
      %2595 = vmatprep.subr.mxu0 0.0
      %2596 = vmatpush1.msra.mxu0 0.0
      %2597 = vmatprep.subr.mxu0 0.0
      %2598 = vmatpush1.msra.mxu0 0.0
      %2599 = vmatprep.subr.mxu0 0.0
      %2600 = vmatpush1.msra.mxu0 0.0
      %2601 = vmatprep.subr.mxu0 0.0
      %2602 = vmatpush1.msra.mxu0 0.0
      %2603 = vmatprep.subr.mxu0 0.0
      %2604 = vmatpush1.msra.mxu0 0.0
      %2605 = vmatprep.subr.mxu0 0.0
      %2606 = vmatpush1.msra.mxu0 0.0
      %2607 = vmatprep.subr.mxu0 0.0
      %2608 = vmatpush1.msra.mxu0 0.0
      %2609 = vmatprep.subr.mxu0 0.0
      %2610 = vmatpush1.msra.mxu0 0.0
      %2611 = vmatprep.subr.mxu0 0.0
      %2612 = vmatpush1.msra.mxu0 0.0
      %2613 = vmatprep.subr.mxu0 0.0
      %2614 = vmatpush1.msra.mxu0 0.0
      %2615 = vmatprep.subr.mxu0 0.0
      %2616 = vmatpush1.msra.mxu0 0.0
      %2617 = vmatprep.subr.mxu0 0.0
      %2618 = vmatpush1.msra.mxu0 0.0
      %2619 = vmatprep.subr.mxu0 0.0
      %2620 = vmatpush1.msra.mxu0 0.0
      %2621 = vmatprep.subr.mxu0 0.0
      %2622 = vmatpush1.msra.mxu0 0.0
      %2623 = vmatprep.mubr.f32.mxu0 0.0
      %v2624 = vand.u32 %v322, 4294901760
      %2625 = vmatmul.mubr.f32.gmra.mrb[0].mxu0 %v2624
      %v2626 = vpop.f32.mrb[0].mxu0
      %v2627 = vadd.f32 %v2555, %v2626
      %v2628 = vpop.f32.mrb[0].mxu0
      %2629 = vdwg.mxu0
      %v2630 = vmax.f32 %v785, 0.0
      %v2631 = vmax.f32 %v787, 0.0
      %v2632 = vmax.f32 %v1250, 0.0
      %v2633 = vmax.f32 %v1252, 0.0
      %v2634 = vmax.f32 %v1715, 0.0
      %v2635 = vmax.f32 %v1717, 0.0
      %v2636 = vmax.f32 %v2180, 0.0
      %v2637 = vmax.f32 %v2182, 0.0
      %v2638 = vmax.f32 %v2627, 0.0
      %v2639 = vld [vmem:[%s7] sm:$0xff]
      %v2640 = vld [vmem:[%s7 + $0x8] sm:$0x1]
      %v2643 = vlaneseq
      %v2644 = vshrl.u32 %v2643, 7
      %v2645 = vsub.s32 0, %v2644
      %v2646 = vrot.slane %v2639, %v2645
      %v2647 = vlaneseq
      %v2648 = vshrl.u32 %v2647, 7
      %v2649 = vsub.s32 1, %v2648
      %v2650 = vrot.slane %v2639, %v2649
      %v2651 = vlaneseq
      %v2652 = vshrl.u32 %v2651, 7
      %v2653 = vsub.s32 2, %v2652
      %v2654 = vrot.slane %v2639, %v2653
      %v2655 = vlaneseq
      %v2656 = vshrl.u32 %v2655, 7
      %v2657 = vsub.s32 3, %v2656
      %v2658 = vrot.slane %v2639, %v2657
      %v2659 = vlaneseq
      %v2660 = vshrl.u32 %v2659, 7
      %v2661 = vsub.s32 4, %v2660
      %v2662 = vrot.slane %v2639, %v2661
      %v2663 = vlaneseq
      %v2664 = vshrl.u32 %v2663, 7
      %v2665 = vsub.s32 5, %v2664
      %v2666 = vrot.slane %v2639, %v2665
      %v2667 = vlaneseq
      %v2668 = vshrl.u32 %v2667, 7
      %v2669 = vsub.s32 6, %v2668
      %v2670 = vrot.slane %v2639, %v2669
      %v2671 = vlaneseq
      %v2672 = vshrl.u32 %v2671, 7
      %v2673 = vsub.s32 7, %v2672
      %v2674 = vrot.slane %v2639, %v2673
      %v2675 = vlaneseq
      %v2676 = vshrl.u32 %v2675, 7
      %v2677 = vsub.s32 0, %v2676
      %v2678 = vrot.slane %v2640, %v2677
      %v2688 = vmul.f32 %v2630, %v2646
      %v2689 = vmul.f32 %v2631, %v2650
      %v2690 = vmul.f32 %v2632, %v2654
      %v2691 = vmul.f32 %v2633, %v2658
      %v2692 = vmul.f32 %v2634, %v2662
      %v2693 = vmul.f32 %v2635, %v2666
      %v2694 = vmul.f32 %v2636, %v2670
      %v2695 = vmul.f32 %v2637, %v2674
      %v2696 = vmul.f32 %v2638, %v2678
      %v2697 = vld [vmem:[%s1] sm:$0xff]
      %v2698 = vld [vmem:[%s299] sm:$0xff]
      %v2699 = vmul.f32 %v2697, %v2698
      %v2700 = vadd.f32 %v2699, 0.0
      %v2701 = vld [vmem:[%s4] sm:$0xff]
      %v2702 = vmul.f32 %v2701, %v2688
      %v2703 = vadd.f32 %v2702, 0.0
      %v2704 = vld [vmem:[%s1 + $0x8] sm:$0xff]
      %v2705 = vld [vmem:[%s299 + $0x8] sm:$0xff]
      %v2706 = vmul.f32 %v2704, %v2705
      %v2707 = vadd.f32 %v2700, %v2706
      %v2708 = vld [vmem:[%s4 + $0x8] sm:$0xff]
      %v2709 = vmul.f32 %v2708, %v2689
      %v2710 = vadd.f32 %v2703, %v2709
      %v2711 = vld [vmem:[%s1 + $0x10] sm:$0xff]
      %v2712 = vld [vmem:[%s299 + $0x10] sm:$0xff]
      %v2713 = vmul.f32 %v2711, %v2712
      %v2714 = vadd.f32 %v2707, %v2713
      %v2715 = vld [vmem:[%s4 + $0x10] sm:$0xff]
      %v2716 = vmul.f32 %v2715, %v2690
      %v2717 = vadd.f32 %v2710, %v2716
      %v2718 = vld [vmem:[%s1 + $0x18] sm:$0xff]
      %v2719 = vld [vmem:[%s299 + $0x18] sm:$0xff]
      %v2720 = vmul.f32 %v2718, %v2719
      %v2721 = vadd.f32 %v2714, %v2720
      %v2722 = vld [vmem:[%s4 + $0x18] sm:$0xff]
      %v2723 = vmul.f32 %v2722, %v2691
      %v2724 = vadd.f32 %v2717, %v2723
      %v2725 = vld [vmem:[%s1 + $0x20] sm:$0xff]
      %v2726 = vld [vmem:[%s299 + $0x20] sm:$0xff]
      %v2727 = vmul.f32 %v2725, %v2726
      %v2728 = vadd.f32 %v2721, %v2727
      %v2729 = vld [vmem:[%s4 + $0x20] sm:$0xff]
      %v2730 = vmul.f32 %v2729, %v2692
      %v2731 = vadd.f32 %v2724, %v2730
      %v2732 = vld [vmem:[%s1 + $0x28] sm:$0xff]
      %v2733 = vld [vmem:[%s299 + $0x28] sm:$0xff]
      %v2734 = vmul.f32 %v2732, %v2733
      %v2735 = vadd.f32 %v2728, %v2734
      %v2736 = vld [vmem:[%s4 + $0x28] sm:$0xff]
      %v2737 = vmul.f32 %v2736, %v2693
      %v2738 = vadd.f32 %v2731, %v2737
      %v2739 = vld [vmem:[%s1 + $0x30] sm:$0xff]
      %v2740 = vld [vmem:[%s299 + $0x30] sm:$0xff]
      %v2741 = vmul.f32 %v2739, %v2740
      %v2742 = vadd.f32 %v2735, %v2741
      %v2743 = vld [vmem:[%s4 + $0x30] sm:$0xff]
      %v2744 = vmul.f32 %v2743, %v2694
      %v2745 = vadd.f32 %v2738, %v2744
      %v2746 = vld [vmem:[%s1 + $0x38] sm:$0xff]
      %v2747 = vld [vmem:[%s299 + $0x38] sm:$0xff]
      %v2748 = vmul.f32 %v2746, %v2747
      %v2749 = vadd.f32 %v2742, %v2748
      %v2750 = vld [vmem:[%s4 + $0x38] sm:$0xff]
      %v2751 = vmul.f32 %v2750, %v2695
      %v2752 = vadd.f32 %v2745, %v2751
      %v2753 = vld [vmem:[%s1 + $0x40] sm:$0xff]
      %v2754 = vmul.f32 %v2753, %v312
      %v2755 = vadd.f32 %v2749, %v2754
      %v2756 = vld [vmem:[%s4 + $0x40] sm:$0xff]
      %v2757 = vmul.f32 %v2756, %v2696
      %v2758 = vadd.f32 %v2752, %v2757
      %v2759 = vld [vmem:[%s5] sm:$0xff]
      %v2760 = vld [vmem:[%s6] sm:$0xff]
      %2762 = vset.pattern.permute.xlu0 0
      %2763 = vperm.xlu0 %2762, %v2760
      %v2764 = vpop.permute.xlu0 %2763
      %vm2766 = vcmask 130048
      %v2768 = vsel %vm2766, %v2759, 0
      %2770 = vmatprep.subr.mxu0 0.0
      %v2771 = vand.u32 %v2755, 4294901760
      %2772 = vmatpush1.msra.mxu0 %v2771
      %2773 = vmatprep.subr.mxu0 0.0
      %v2774 = vand.u32 %v2758, 4294901760
      %2775 = vmatpush1.msra.mxu0 %v2774
      %2776 = vmatprep.subr.mxu0 0.0
      %2777 = vmatpush1.msra.mxu0 0.0
      %2778 = vmatprep.subr.mxu0 0.0
      %2779 = vmatpush1.msra.mxu0 0.0
      %2780 = vmatprep.subr.mxu0 0.0
      %2781 = vmatpush1.msra.mxu0 0.0
      %2782 = vmatprep.subr.mxu0 0.0
      %2783 = vmatpush1.msra.mxu0 0.0
      %2784 = vmatprep.subr.mxu0 0.0
      %2785 = vmatpush1.msra.mxu0 0.0
      %2786 = vmatprep.subr.mxu0 0.0
      %2787 = vmatpush1.msra.mxu0 0.0
      %2788 = vmatprep.subr.mxu0 0.0
      %2789 = vmatpush1.msra.mxu0 0.0
      %2790 = vmatprep.subr.mxu0 0.0
      %2791 = vmatpush1.msra.mxu0 0.0
      %2792 = vmatprep.subr.mxu0 0.0
      %2793 = vmatpush1.msra.mxu0 0.0
      %2794 = vmatprep.subr.mxu0 0.0
      %2795 = vmatpush1.msra.mxu0 0.0
      %2796 = vmatprep.subr.mxu0 0.0
      %2797 = vmatpush1.msra.mxu0 0.0
      %2798 = vmatprep.subr.mxu0 0.0
      %2799 = vmatpush1.msra.mxu0 0.0
      %2800 = vmatprep.subr.mxu0 0.0
      %2801 = vmatpush1.msra.mxu0 0.0
      %2802 = vmatprep.subr.mxu0 0.0
      %2803 = vmatpush1.msra.mxu0 0.0
      %2804 = vmatprep.subr.mxu0 0.0
      %2805 = vmatpush1.msra.mxu0 0.0
      %2806 = vmatprep.subr.mxu0 0.0
      %2807 = vmatpush1.msra.mxu0 0.0
      %2808 = vmatprep.subr.mxu0 0.0
      %2809 = vmatpush1.msra.mxu0 0.0
      %2810 = vmatprep.subr.mxu0 0.0
      %2811 = vmatpush1.msra.mxu0 0.0
      %2812 = vmatprep.subr.mxu0 0.0
      %2813 = vmatpush1.msra.mxu0 0.0
      %2814 = vmatprep.subr.mxu0 0.0
      %2815 = vmatpush1.msra.mxu0 0.0
      %2816 = vmatprep.subr.mxu0 0.0
      %2817 = vmatpush1.msra.mxu0 0.0
      %2818 = vmatprep.subr.mxu0 0.0
      %2819 = vmatpush1.msra.mxu0 0.0
      %2820 = vmatprep.subr.mxu0 0.0
      %2821 = vmatpush1.msra.mxu0 0.0
      %2822 = vmatprep.subr.mxu0 0.0
      %2823 = vmatpush1.msra.mxu0 0.0
      %2824 = vmatprep.subr.mxu0 0.0
      %2825 = vmatpush1.msra.mxu0 0.0
      %2826 = vmatprep.subr.mxu0 0.0
      %2827 = vmatpush1.msra.mxu0 0.0
      %2828 = vmatprep.subr.mxu0 0.0
      %2829 = vmatpush1.msra.mxu0 0.0
      %2830 = vmatprep.subr.mxu0 0.0
      %2831 = vmatpush1.msra.mxu0 0.0
      %2832 = vmatprep.subr.mxu0 0.0
      %2833 = vmatpush1.msra.mxu0 0.0
      %2834 = vmatprep.subr.mxu0 0.0
      %2835 = vmatpush1.msra.mxu0 0.0
      %2836 = vmatprep.mubr.f32.mxu0 0.0
      %v2837 = vand.u32 %v2768, 4294901760
      %v2838 = vsub.f32 %v2768, %v2837
      %v2839 = vand.u32 %v2838, 4294901760
      %v2840 = vsub.f32 %v2838, %v2839
      %v2841 = vand.u32 %v2840, 4294901760
      %2842 = vmatmul.mubr.f32.gmra.mrb[0].mxu0 %v2841
      %v2843 = vpop.f32.mrb[0].mxu0
      %v2844 = vadd.f32 %v2764, %v2843
      %v2845 = vpop.f32.mrb[0].mxu0
      %2846 = vdwg.mxu0
      %2847 = vmatprep.subr.mxu0 0.0
      %v2848 = vand.u32 %v2755, 4294901760
      %v2849 = vsub.f32 %v2755, %v2848
      %v2850 = vand.u32 %v2849, 4294901760
      %v2851 = vsub.f32 %v2849, %v2850
      %v2852 = vand.u32 %v2851, 4294901760
      %2853 = vmatpush1.msra.mxu0 %v2852
      %2854 = vmatprep.subr.mxu0 0.0
      %v2855 = vand.u32 %v2758, 4294901760
      %v2856 = vsub.f32 %v2758, %v2855
      %v2857 = vand.u32 %v2856, 4294901760
      %v2858 = vsub.f32 %v2856, %v2857
      %v2859 = vand.u32 %v2858, 4294901760
      %2860 = vmatpush1.msra.mxu0 %v2859
      %2861 = vmatprep.subr.mxu0 0.0
      %2862 = vmatpush1.msra.mxu0 0.0
      %2863 = vmatprep.subr.mxu0 0.0
      %2864 = vmatpush1.msra.mxu0 0.0
      %2865 = vmatprep.subr.mxu0 0.0
      %2866 = vmatpush1.msra.mxu0 0.0
      %2867 = vmatprep.subr.mxu0 0.0
      %2868 = vmatpush1.msra.mxu0 0.0
      %2869 = vmatprep.subr.mxu0 0.0
      %2870 = vmatpush1.msra.mxu0 0.0
      %2871 = vmatprep.subr.mxu0 0.0
      %2872 = vmatpush1.msra.mxu0 0.0
      %2873 = vmatprep.subr.mxu0 0.0
      %2874 = vmatpush1.msra.mxu0 0.0
      %2875 = vmatprep.subr.mxu0 0.0
      %2876 = vmatpush1.msra.mxu0 0.0
      %2877 = vmatprep.subr.mxu0 0.0
      %2878 = vmatpush1.msra.mxu0 0.0
      %2879 = vmatprep.subr.mxu0 0.0
      %2880 = vmatpush1.msra.mxu0 0.0
      %2881 = vmatprep.subr.mxu0 0.0
      %2882 = vmatpush1.msra.mxu0 0.0
      %2883 = vmatprep.subr.mxu0 0.0
      %2884 = vmatpush1.msra.mxu0 0.0
      %2885 = vmatprep.subr.mxu0 0.0
      %2886 = vmatpush1.msra.mxu0 0.0
      %2887 = vmatprep.subr.mxu0 0.0
      %2888 = vmatpush1.msra.mxu0 0.0
      %2889 = vmatprep.subr.mxu0 0.0
      %2890 = vmatpush1.msra.mxu0 0.0
      %2891 = vmatprep.subr.mxu0 0.0
      %2892 = vmatpush1.msra.mxu0 0.0
      %2893 = vmatprep.subr.mxu0 0.0
      %2894 = vmatpush1.msra.mxu0 0.0
      %2895 = vmatprep.subr.mxu0 0.0
      %2896 = vmatpush1.msra.mxu0 0.0
      %2897 = vmatprep.subr.mxu0 0.0
      %2898 = vmatpush1.msra.mxu0 0.0
      %2899 = vmatprep.subr.mxu0 0.0
      %2900 = vmatpush1.msra.mxu0 0.0
      %2901 = vmatprep.subr.mxu0 0.0
      %2902 = vmatpush1.msra.mxu0 0.0
      %2903 = vmatprep.subr.mxu0 0.0
      %2904 = vmatpush1.msra.mxu0 0.0
      %2905 = vmatprep.subr.mxu0 0.0
      %2906 = vmatpush1.msra.mxu0 0.0
      %2907 = vmatprep.subr.mxu0 0.0
      %2908 = vmatpush1.msra.mxu0 0.0
      %2909 = vmatprep.subr.mxu0 0.0
      %2910 = vmatpush1.msra.mxu0 0.0
      %2911 = vmatprep.subr.mxu0 0.0
      %2912 = vmatpush1.msra.mxu0 0.0
      %2913 = vmatprep.subr.mxu0 0.0
      %2914 = vmatpush1.msra.mxu0 0.0
      %2915 = vmatprep.subr.mxu0 0.0
      %2916 = vmatpush1.msra.mxu0 0.0
      %2917 = vmatprep.subr.mxu0 0.0
      %2918 = vmatpush1.msra.mxu0 0.0
      %2919 = vmatprep.subr.mxu0 0.0
      %2920 = vmatpush1.msra.mxu0 0.0
      %2921 = vmatprep.mubr.f32.mxu0 0.0
      %v2922 = vand.u32 %v2768, 4294901760
      %2923 = vmatmul.mubr.f32.gmra.mrb[0].mxu0 %v2922
      %v2924 = vpop.f32.mrb[0].mxu0
      %v2925 = vadd.f32 %v2844, %v2924
      %v2926 = vpop.f32.mrb[0].mxu0
      %2927 = vdwg.mxu0
      %2928 = vmatprep.subr.mxu0 0.0
      %v2929 = vand.u32 %v2755, 4294901760
      %v2930 = vsub.f32 %v2755, %v2929
      %2931 = vmatpush1.msra.mxu0 %v2930
      %2932 = vmatprep.subr.mxu0 0.0
      %v2933 = vand.u32 %v2758, 4294901760
      %v2934 = vsub.f32 %v2758, %v2933
      %2935 = vmatpush1.msra.mxu0 %v2934
      %2936 = vmatprep.subr.mxu0 0.0
      %2937 = vmatpush1.msra.mxu0 0.0
      %2938 = vmatprep.subr.mxu0 0.0
      %2939 = vmatpush1.msra.mxu0 0.0
      %2940 = vmatprep.subr.mxu0 0.0
      %2941 = vmatpush1.msra.mxu0 0.0
      %2942 = vmatprep.subr.mxu0 0.0
      %2943 = vmatpush1.msra.mxu0 0.0
      %2944 = vmatprep.subr.mxu0 0.0
      %2945 = vmatpush1.msra.mxu0 0.0
      %2946 = vmatprep.subr.mxu0 0.0
      %2947 = vmatpush1.msra.mxu0 0.0
      %2948 = vmatprep.subr.mxu0 0.0
      %2949 = vmatpush1.msra.mxu0 0.0
      %2950 = vmatprep.subr.mxu0 0.0
      %2951 = vmatpush1.msra.mxu0 0.0
      %2952 = vmatprep.subr.mxu0 0.0
      %2953 = vmatpush1.msra.mxu0 0.0
      %2954 = vmatprep.subr.mxu0 0.0
      %2955 = vmatpush1.msra.mxu0 0.0
      %2956 = vmatprep.subr.mxu0 0.0
      %2957 = vmatpush1.msra.mxu0 0.0
      %2958 = vmatprep.subr.mxu0 0.0
      %2959 = vmatpush1.msra.mxu0 0.0
      %2960 = vmatprep.subr.mxu0 0.0
      %2961 = vmatpush1.msra.mxu0 0.0
      %2962 = vmatprep.subr.mxu0 0.0
      %2963 = vmatpush1.msra.mxu0 0.0
      %2964 = vmatprep.subr.mxu0 0.0
      %2965 = vmatpush1.msra.mxu0 0.0
      %2966 = vmatprep.subr.mxu0 0.0
      %2967 = vmatpush1.msra.mxu0 0.0
      %2968 = vmatprep.subr.mxu0 0.0
      %2969 = vmatpush1.msra.mxu0 0.0
      %2970 = vmatprep.subr.mxu0 0.0
      %2971 = vmatpush1.msra.mxu0 0.0
      %2972 = vmatprep.subr.mxu0 0.0
      %2973 = vmatpush1.msra.mxu0 0.0
      %2974 = vmatprep.subr.mxu0 0.0
      %2975 = vmatpush1.msra.mxu0 0.0
      %2976 = vmatprep.subr.mxu0 0.0
      %2977 = vmatpush1.msra.mxu0 0.0
      %2978 = vmatprep.subr.mxu0 0.0
      %2979 = vmatpush1.msra.mxu0 0.0
      %2980 = vmatprep.subr.mxu0 0.0
      %2981 = vmatpush1.msra.mxu0 0.0
      %2982 = vmatprep.subr.mxu0 0.0
      %2983 = vmatpush1.msra.mxu0 0.0
      %2984 = vmatprep.subr.mxu0 0.0
      %2985 = vmatpush1.msra.mxu0 0.0
      %2986 = vmatprep.subr.mxu0 0.0
      %2987 = vmatpush1.msra.mxu0 0.0
      %2988 = vmatprep.subr.mxu0 0.0
      %2989 = vmatpush1.msra.mxu0 0.0
      %2990 = vmatprep.subr.mxu0 0.0
      %2991 = vmatpush1.msra.mxu0 0.0
      %2992 = vmatprep.subr.mxu0 0.0
      %2993 = vmatpush1.msra.mxu0 0.0
      %2994 = vmatprep.subr.mxu0 0.0
      %2995 = vmatpush1.msra.mxu0 0.0
      %2996 = vmatprep.mubr.f32.mxu0 0.0
      %v2997 = vand.u32 %v2768, 4294901760
      %v2998 = vsub.f32 %v2768, %v2997
      %2999 = vmatmul.mubr.f32.gmra.mrb[0].mxu0 %v2998
      %v3000 = vpop.f32.mrb[0].mxu0
      %v3001 = vadd.f32 %v2925, %v3000
      %v3002 = vpop.f32.mrb[0].mxu0
      %3003 = vdwg.mxu0
      %3004 = vmatprep.subr.mxu0 0.0
      %v3005 = vand.u32 %v2755, 4294901760
      %3006 = vmatpush1.msra.mxu0 %v3005
      %3007 = vmatprep.subr.mxu0 0.0
      %v3008 = vand.u32 %v2758, 4294901760
      %3009 = vmatpush1.msra.mxu0 %v3008
      %3010 = vmatprep.subr.mxu0 0.0
      %3011 = vmatpush1.msra.mxu0 0.0
      %3012 = vmatprep.subr.mxu0 0.0
      %3013 = vmatpush1.msra.mxu0 0.0
      %3014 = vmatprep.subr.mxu0 0.0
      %3015 = vmatpush1.msra.mxu0 0.0
      %3016 = vmatprep.subr.mxu0 0.0
      %3017 = vmatpush1.msra.mxu0 0.0
      %3018 = vmatprep.subr.mxu0 0.0
      %3019 = vmatpush1.msra.mxu0 0.0
      %3020 = vmatprep.subr.mxu0 0.0
      %3021 = vmatpush1.msra.mxu0 0.0
      %3022 = vmatprep.subr.mxu0 0.0
      %3023 = vmatpush1.msra.mxu0 0.0
      %3024 = vmatprep.subr.mxu0 0.0
      %3025 = vmatpush1.msra.mxu0 0.0
      %3026 = vmatprep.subr.mxu0 0.0
      %3027 = vmatpush1.msra.mxu0 0.0
      %3028 = vmatprep.subr.mxu0 0.0
      %3029 = vmatpush1.msra.mxu0 0.0
      %3030 = vmatprep.subr.mxu0 0.0
      %3031 = vmatpush1.msra.mxu0 0.0
      %3032 = vmatprep.subr.mxu0 0.0
      %3033 = vmatpush1.msra.mxu0 0.0
      %3034 = vmatprep.subr.mxu0 0.0
      %3035 = vmatpush1.msra.mxu0 0.0
      %3036 = vmatprep.subr.mxu0 0.0
      %3037 = vmatpush1.msra.mxu0 0.0
      %3038 = vmatprep.subr.mxu0 0.0
      %3039 = vmatpush1.msra.mxu0 0.0
      %3040 = vmatprep.subr.mxu0 0.0
      %3041 = vmatpush1.msra.mxu0 0.0
      %3042 = vmatprep.subr.mxu0 0.0
      %3043 = vmatpush1.msra.mxu0 0.0
      %3044 = vmatprep.subr.mxu0 0.0
      %3045 = vmatpush1.msra.mxu0 0.0
      %3046 = vmatprep.subr.mxu0 0.0
      %3047 = vmatpush1.msra.mxu0 0.0
      %3048 = vmatprep.subr.mxu0 0.0
      %3049 = vmatpush1.msra.mxu0 0.0
      %3050 = vmatprep.subr.mxu0 0.0
      %3051 = vmatpush1.msra.mxu0 0.0
      %3052 = vmatprep.subr.mxu0 0.0
      %3053 = vmatpush1.msra.mxu0 0.0
      %3054 = vmatprep.subr.mxu0 0.0
      %3055 = vmatpush1.msra.mxu0 0.0
      %3056 = vmatprep.subr.mxu0 0.0
      %3057 = vmatpush1.msra.mxu0 0.0
      %3058 = vmatprep.subr.mxu0 0.0
      %3059 = vmatpush1.msra.mxu0 0.0
      %3060 = vmatprep.subr.mxu0 0.0
      %3061 = vmatpush1.msra.mxu0 0.0
      %3062 = vmatprep.subr.mxu0 0.0
      %3063 = vmatpush1.msra.mxu0 0.0
      %3064 = vmatprep.subr.mxu0 0.0
      %3065 = vmatpush1.msra.mxu0 0.0
      %3066 = vmatprep.subr.mxu0 0.0
      %3067 = vmatpush1.msra.mxu0 0.0
      %3068 = vmatprep.subr.mxu0 0.0
      %3069 = vmatpush1.msra.mxu0 0.0
      %3070 = vmatprep.mubr.f32.mxu0 0.0
      %v3071 = vand.u32 %v2768, 4294901760
      %v3072 = vsub.f32 %v2768, %v3071
      %v3073 = vand.u32 %v3072, 4294901760
      %3074 = vmatmul.mubr.f32.gmra.mrb[0].mxu0 %v3073
      %v3075 = vpop.f32.mrb[0].mxu0
      %v3076 = vadd.f32 %v3001, %v3075
      %v3077 = vpop.f32.mrb[0].mxu0
      %3078 = vdwg.mxu0
      %3079 = vmatprep.subr.mxu0 0.0
      %v3080 = vand.u32 %v2755, 4294901760
      %v3081 = vsub.f32 %v2755, %v3080
      %v3082 = vand.u32 %v3081, 4294901760
      %3083 = vmatpush1.msra.mxu0 %v3082
      %3084 = vmatprep.subr.mxu0 0.0
      %v3085 = vand.u32 %v2758, 4294901760
      %v3086 = vsub.f32 %v2758, %v3085
      %v3087 = vand.u32 %v3086, 4294901760
      %3088 = vmatpush1.msra.mxu0 %v3087
      %3089 = vmatprep.subr.mxu0 0.0
      %3090 = vmatpush1.msra.mxu0 0.0
      %3091 = vmatprep.subr.mxu0 0.0
      %3092 = vmatpush1.msra.mxu0 0.0
      %3093 = vmatprep.subr.mxu0 0.0
      %3094 = vmatpush1.msra.mxu0 0.0
      %3095 = vmatprep.subr.mxu0 0.0
      %3096 = vmatpush1.msra.mxu0 0.0
      %3097 = vmatprep.subr.mxu0 0.0
      %3098 = vmatpush1.msra.mxu0 0.0
      %3099 = vmatprep.subr.mxu0 0.0
      %3100 = vmatpush1.msra.mxu0 0.0
      %3101 = vmatprep.subr.mxu0 0.0
      %3102 = vmatpush1.msra.mxu0 0.0
      %3103 = vmatprep.subr.mxu0 0.0
      %3104 = vmatpush1.msra.mxu0 0.0
      %3105 = vmatprep.subr.mxu0 0.0
      %3106 = vmatpush1.msra.mxu0 0.0
      %3107 = vmatprep.subr.mxu0 0.0
      %3108 = vmatpush1.msra.mxu0 0.0
      %3109 = vmatprep.subr.mxu0 0.0
      %3110 = vmatpush1.msra.mxu0 0.0
      %3111 = vmatprep.subr.mxu0 0.0
      %3112 = vmatpush1.msra.mxu0 0.0
      %3113 = vmatprep.subr.mxu0 0.0
      %3114 = vmatpush1.msra.mxu0 0.0
      %3115 = vmatprep.subr.mxu0 0.0
      %3116 = vmatpush1.msra.mxu0 0.0
      %3117 = vmatprep.subr.mxu0 0.0
      %3118 = vmatpush1.msra.mxu0 0.0
      %3119 = vmatprep.subr.mxu0 0.0
      %3120 = vmatpush1.msra.mxu0 0.0
      %3121 = vmatprep.subr.mxu0 0.0
      %3122 = vmatpush1.msra.mxu0 0.0
      %3123 = vmatprep.subr.mxu0 0.0
      %3124 = vmatpush1.msra.mxu0 0.0
      %3125 = vmatprep.subr.mxu0 0.0
      %3126 = vmatpush1.msra.mxu0 0.0
      %3127 = vmatprep.subr.mxu0 0.0
      %3128 = vmatpush1.msra.mxu0 0.0
      %3129 = vmatprep.subr.mxu0 0.0
      %3130 = vmatpush1.msra.mxu0 0.0
      %3131 = vmatprep.subr.mxu0 0.0
      %3132 = vmatpush1.msra.mxu0 0.0
      %3133 = vmatprep.subr.mxu0 0.0
      %3134 = vmatpush1.msra.mxu0 0.0
      %3135 = vmatprep.subr.mxu0 0.0
      %3136 = vmatpush1.msra.mxu0 0.0
      %3137 = vmatprep.subr.mxu0 0.0
      %3138 = vmatpush1.msra.mxu0 0.0
      %3139 = vmatprep.subr.mxu0 0.0
      %3140 = vmatpush1.msra.mxu0 0.0
      %3141 = vmatprep.subr.mxu0 0.0
      %3142 = vmatpush1.msra.mxu0 0.0
      %3143 = vmatprep.subr.mxu0 0.0
      %3144 = vmatpush1.msra.mxu0 0.0
      %3145 = vmatprep.subr.mxu0 0.0
      %3146 = vmatpush1.msra.mxu0 0.0
      %3147 = vmatprep.subr.mxu0 0.0
      %3148 = vmatpush1.msra.mxu0 0.0
      %3149 = vmatprep.mubr.f32.mxu0 0.0
      %v3150 = vand.u32 %v2768, 4294901760
      %3151 = vmatmul.mubr.f32.gmra.mrb[0].mxu0 %v3150
      %v3152 = vpop.f32.mrb[0].mxu0
      %v3153 = vadd.f32 %v3076, %v3152
      %v3154 = vpop.f32.mrb[0].mxu0
      %3155 = vdwg.mxu0
      %3156 = vmatprep.subr.mxu0 0.0
      %v3157 = vand.u32 %v2755, 4294901760
      %3158 = vmatpush1.msra.mxu0 %v3157
      %3159 = vmatprep.subr.mxu0 0.0
      %v3160 = vand.u32 %v2758, 4294901760
      %3161 = vmatpush1.msra.mxu0 %v3160
      %3162 = vmatprep.subr.mxu0 0.0
      %3163 = vmatpush1.msra.mxu0 0.0
      %3164 = vmatprep.subr.mxu0 0.0
      %3165 = vmatpush1.msra.mxu0 0.0
      %3166 = vmatprep.subr.mxu0 0.0
      %3167 = vmatpush1.msra.mxu0 0.0
      %3168 = vmatprep.subr.mxu0 0.0
      %3169 = vmatpush1.msra.mxu0 0.0
      %3170 = vmatprep.subr.mxu0 0.0
      %3171 = vmatpush1.msra.mxu0 0.0
      %3172 = vmatprep.subr.mxu0 0.0
      %3173 = vmatpush1.msra.mxu0 0.0
      %3174 = vmatprep.subr.mxu0 0.0
      %3175 = vmatpush1.msra.mxu0 0.0
      %3176 = vmatprep.subr.mxu0 0.0
      %3177 = vmatpush1.msra.mxu0 0.0
      %3178 = vmatprep.subr.mxu0 0.0
      %3179 = vmatpush1.msra.mxu0 0.0
      %3180 = vmatprep.subr.mxu0 0.0
      %3181 = vmatpush1.msra.mxu0 0.0
      %3182 = vmatprep.subr.mxu0 0.0
      %3183 = vmatpush1.msra.mxu0 0.0
      %3184 = vmatprep.subr.mxu0 0.0
      %3185 = vmatpush1.msra.mxu0 0.0
      %3186 = vmatprep.subr.mxu0 0.0
      %3187 = vmatpush1.msra.mxu0 0.0
      %3188 = vmatprep.subr.mxu0 0.0
      %3189 = vmatpush1.msra.mxu0 0.0
      %3190 = vmatprep.subr.mxu0 0.0
      %3191 = vmatpush1.msra.mxu0 0.0
      %3192 = vmatprep.subr.mxu0 0.0
      %3193 = vmatpush1.msra.mxu0 0.0
      %3194 = vmatprep.subr.mxu0 0.0
      %3195 = vmatpush1.msra.mxu0 0.0
      %3196 = vmatprep.subr.mxu0 0.0
      %3197 = vmatpush1.msra.mxu0 0.0
      %3198 = vmatprep.subr.mxu0 0.0
      %3199 = vmatpush1.msra.mxu0 0.0
      %3200 = vmatprep.subr.mxu0 0.0
      %3201 = vmatpush1.msra.mxu0 0.0
      %3202 = vmatprep.subr.mxu0 0.0
      %3203 = vmatpush1.msra.mxu0 0.0
      %3204 = vmatprep.subr.mxu0 0.0
      %3205 = vmatpush1.msra.mxu0 0.0
      %3206 = vmatprep.subr.mxu0 0.0
      %3207 = vmatpush1.msra.mxu0 0.0
      %3208 = vmatprep.subr.mxu0 0.0
      %3209 = vmatpush1.msra.mxu0 0.0
      %3210 = vmatprep.subr.mxu0 0.0
      %3211 = vmatpush1.msra.mxu0 0.0
      %3212 = vmatprep.subr.mxu0 0.0
      %3213 = vmatpush1.msra.mxu0 0.0
      %3214 = vmatprep.subr.mxu0 0.0
      %3215 = vmatpush1.msra.mxu0 0.0
      %3216 = vmatprep.subr.mxu0 0.0
      %3217 = vmatpush1.msra.mxu0 0.0
      %3218 = vmatprep.subr.mxu0 0.0
      %3219 = vmatpush1.msra.mxu0 0.0
      %3220 = vmatprep.subr.mxu0 0.0
      %3221 = vmatpush1.msra.mxu0 0.0
      %3222 = vmatprep.mubr.f32.mxu0 0.0
      %v3223 = vand.u32 %v2768, 4294901760
      %3224 = vmatmul.mubr.f32.gmra.mrb[0].mxu0 %v3223
      %v3225 = vpop.f32.mrb[0].mxu0
      %v3226 = vadd.f32 %v3153, %v3225
      %v3227 = vpop.f32.mrb[0].mxu0
      %3228 = vdwg.mxu0
      %v3229 = vmax.f32 %v3226, 0.0
      %3230 = vst [vmem:[%s303] sm:$0xff] %v3229
      %p3231 = scmp.lt.s32.totalorder %s19, 1
      %s3232 = scalar_select %p3231, %s19, 1
      %s3233 = smul.addr %s3232, 8
      %s3234 = scalar_lea.vmem %s8, %s3233
      // Predicated region
      $region53: #{down_block.1} parent=51 // pred_check
        %p3235 = pneg %p210
      $region54: #{down_block.1} parent=51 // pred_check_branch
        %3237 = sbr.rel (%p3235) target = $region56
      $region55: #{down_block.1} parent=51 // pred_region
        _
      $region56: #{down_block.1} parent=51 // pred_fallthru
        _
    $region52: #{down_block.1} parent=5 // pred_fallthru
      _
    %p3238 = scmp.le.s32.totalorder 2, %s14
    // Predicated region
    $region57: #{down_block.1} parent=5 // pred_check
      %p3239 = pneg %p3238
    $region58: #{down_block.1} parent=5 // pred_check_branch
      %3241 = sbr.rel (%p3239) target = $region60
    $region59: #{down_block.1} parent=5 // pred_region
      %s3242 = ssub.s32 %s14, 2
      // Predicated region
      $region61: #{down_block.1} parent=59 // pred_check
        %p3243 = pneg %p216
      $region62: #{down_block.1} parent=59 // pred_check_branch
        %3245 = sbr.rel (%p3243) target = $region64
      $region63: #{down_block.1} parent=59 // pred_region
        %p3246 = scmp.lt.s32.totalorder %s20, 1
        %s3247 = scalar_select %p3246, %s20, 1
        %s3248 = smul.addr %s3247, 8
        %s3249 = scalar_lea.vmem %s8, %s3248
      $region64: #{down_block.1} parent=59 // pred_fallthru
        _
    $region60: #{down_block.1} parent=5 // pred_fallthru
      _
  $region6: #{down_block.1} parent=0 // loop_footer
    %s18 = sadd.s32 1, %s14
  $region7: #{down_block.1} parent=0 // loop_footer_branch
    %13 = sbr.rel target = $region3
  $region8: #{down_block.1} parent=0 // loop_exit
    _

</llo_original>
